<compile_context>
chip_gen: v7x
topology: tpu7x:2x2x1
jax: 0.10.0
libtpu: 0.0.40
codegen_flags: <defaults>
</compile_context>

<pallas_src>
import jax
import jax.numpy as jnp
from jax.experimental import pallas as pl
from jax.experimental.pallas import tpu as pltpu


# ----------------------------- Pallas kernels ------------------------------

def _conv_mm_kernel(p_ref, w_ref, b_ref, o_ref):
    # Conv-as-matmul: (rows, C*k*k) @ (C*k*k, Cout) + bias, ReLU.
    acc = jnp.dot(p_ref[...], w_ref[...], preferred_element_type=jnp.float32)
    o_ref[...] = jnp.maximum(acc + b_ref[...], 0.0)


def conv_relu_pallas(patches, w, b, *, row_tile=256):
    P, CKK = patches.shape
    Cout = w.shape[1]
    if P % row_tile != 0:
        row_tile = P
    grid = (P // row_tile,)
    return pl.pallas_call(
        _conv_mm_kernel,
        out_shape=jax.ShapeDtypeStruct((P, Cout), jnp.float32),
        grid=grid,
        in_specs=[pl.BlockSpec((row_tile, CKK), lambda i: (i, 0)),
                  pl.BlockSpec((CKK, Cout), lambda i: (0, 0)),
                  pl.BlockSpec((1, Cout), lambda i: (0, 0))],
        out_specs=pl.BlockSpec((row_tile, Cout), lambda i: (i, 0)),
        compiler_params=pltpu.CompilerParams(
            dimension_semantics=("parallel",),
            vmem_limit_bytes=32 * 1024 * 1024),
    )(patches, w, b)


def _dueling_head_kernel(convf_ref, acct_ref, w1c_ref, w1acct_ref, b1_ref,
                         w2v_ref, b2v_ref, w3v_ref, b3v_ref,
                         w2a_ref, b2a_ref, w3a_ref, b3a_ref,
                         out_ref, h1_acc):
    k = pl.program_id(0)

    @pl.when(k == 0)
    def _init():
        # Account features handled as a tiny separate matmul so the main
        # contraction stays exactly K-aligned (2048).
        h1_acc[...] = (
            jnp.dot(acct_ref[...], w1acct_ref[...],
                    preferred_element_type=jnp.float32) + b1_ref[...])

    # Merged (value | advantage) first layer, K-tiled: f32 activations x bf16
    # weights, f32 accumulation.
    h1_acc[...] += jnp.dot(convf_ref[...], w1c_ref[...],
                           preferred_element_type=jnp.float32)

    @pl.when(k == pl.num_programs(0) - 1)
    def _finalize():
        h1 = jnp.maximum(h1_acc[...], 0.0)
        half = h1.shape[1] // 2
        hv, ha = h1[:, :half], h1[:, half:]

        # value head: 512 -> 256 -> 1
        hv = jnp.maximum(
            jnp.dot(hv, w2v_ref[...], preferred_element_type=jnp.float32)
            + b2v_ref[...], 0.0)
        value = (jnp.dot(hv, w3v_ref[...], preferred_element_type=jnp.float32)
                 + b3v_ref[...])

        # advantage head: 512 -> 256 -> n_actions
        ha = jnp.maximum(
            jnp.dot(ha, w2a_ref[...], preferred_element_type=jnp.float32)
            + b2a_ref[...], 0.0)
        adv = (jnp.dot(ha, w3a_ref[...], preferred_element_type=jnp.float32)
               + b3a_ref[...])

        # dueling combine: value + advantage - mean(advantage, dim=1, keepdim)
        out_ref[...] = value + adv - jnp.mean(adv, axis=1, keepdims=True)


def dueling_head_pallas(conv_feat, account, kp, *, tk=512):
    N, Kc = conv_feat.shape
    if Kc % tk != 0:
        tk = Kc
    grid = (Kc // tk,)
    H1 = kp["w1_conv"].shape[1]           # 1024 (merged value|advantage)
    n_actions = kp["w3a"].shape[1]

    args = (conv_feat, account,
            kp["w1_conv"], kp["w1_acct"], kp["b1"],
            kp["w2v"], kp["b2v"], kp["w3v"], kp["b3v"],
            kp["w2a"], kp["b2a"], kp["w3a"], kp["b3a"])

    def _const(shape):
        return pl.BlockSpec(shape, lambda k: (0, 0))

    in_specs = ([pl.BlockSpec((N, tk), lambda k: (0, k)),     # conv features
                 _const(account.shape),                       # account feats
                 pl.BlockSpec((tk, H1), lambda k: (k, 0))]    # merged W1
                + [_const(a.shape) for a in args[3:]])        # fetched once

    return pl.pallas_call(
        _dueling_head_kernel,
        out_shape=jax.ShapeDtypeStruct((N, n_actions), jnp.float32),
        grid=grid,
        in_specs=in_specs,
        out_specs=pl.BlockSpec((N, n_actions), lambda k: (0, 0)),
        scratch_shapes=[pltpu.VMEM((N, H1), jnp.float32)],
        compiler_params=pltpu.CompilerParams(
            dimension_semantics=("arbitrary",),
            vmem_limit_bytes=32 * 1024 * 1024),
    )(*args)


# ------------------------------- JAX glue ----------------------------------

def im2col_nchw(x, k=3, pad=1):
    """x: (N, C, H, W) -> patches (N*H*W, C*k*k), flattened in (C, kH, kW) order."""
    # TODO(synk): at large batch, move im2col into the fused kernel (shifted
    # reads); at N=2 the 9x read amplification of x is negligible (reviewer).
    N, C, H, W = x.shape
    xp = jnp.pad(x, ((0, 0), (0, 0), (pad, pad), (pad, pad)))
    cols = jnp.stack([xp[:, :, di:di + H, dj:dj + W]
                      for di in range(k) for dj in range(k)], axis=2)
    cols = cols.reshape(N, C * k * k, H * W)
    cols = cols.transpose(0, 2, 1).reshape(N * H * W, C * k * k)
    return cols


def prepare_head_params(params, H, W):
    """Host-side one-time weight prep: merge value|advantage first layers,
    fold the NCHW->NHWC permutation into the W1 rows, cast weights to bf16."""
    conv_ch = params["conv_w"].shape[0]
    HW = H * W
    CHW = conv_ch * HW
    w1v, b1v, w2v, b2v, w3v, b3v = params["value"]
    w1a, b1a, w2a, b2a, w3a, b3a = params["advantage"]

    w1 = jnp.concatenate([w1v, w1a], axis=1)            # (D, 1024)
    q = jnp.arange(CHW)
    perm = (q % conv_ch) * HW + q // conv_ch            # NHWC col -> NCHW row
    w1_conv = w1[:CHW][perm]                            # (CHW, 1024)
    w1_acct = w1[CHW:]                                  # (acct_feats, 1024)
    b1 = jnp.concatenate([b1v, b1a], axis=1)            # (1, 1024)

    bf16 = lambda a: a.astype(jnp.bfloat16)
    return {
        "w1_conv": bf16(w1_conv), "w1_acct": bf16(w1_acct), "b1": b1,
        "w2v": bf16(w2v), "b2v": b2v, "w3v": bf16(w3v), "b3v": b3v,
        "w2a": bf16(w2a), "b2a": b2a, "w3a": bf16(w3a), "b3a": b3a,
    }


def dueling_net_forward(x, current_account, params, head_params):
    """Forward pass of DuelingNet (raw_data='None', legal_actions=None)."""
    # TODO(synk): legal_actions masking path not implemented (see header).
    N, C, H, W = x.shape
    wc, bc = params["conv_w"], params["conv_b"]
    Cout = wc.shape[0]

    patches = im2col_nchw(x)                              # (N*H*W, C*k*k)
    wc_mat = wc.reshape(Cout, -1).T                       # (C*k*k, Cout)
    conv_out = conv_relu_pallas(patches, wc_mat, bc.reshape(1, Cout))  # (N*H*W, Cout)

    # Contiguous (free) reshape; the NCHW flatten order of torch is recovered
    # via the row permutation baked into head_params["w1_conv"].
    conv_feat = conv_out.reshape(N, H * W * Cout)
    account = current_account.reshape(N, -1)

    return dueling_head_pallas(conv_feat, account, head_params)


def dueling_net_reference(x, current_account, params):
    """Pure-JAX reference (uses the same bf16-rounded head weights)."""
    N, C, H, W = x.shape
    wc, bc = params["conv_w"], params["conv_b"]
    Cout = wc.shape[0]
    patches = im2col_nchw(x)
    conv = jnp.maximum(patches @ wc.reshape(Cout, -1).T + bc[None, :], 0.0)
    conv = conv.reshape(N, H, W, Cout).transpose(0, 3, 1, 2).reshape(N, -1)
    feat = jnp.concatenate([conv, current_account.reshape(N, -1)], axis=1)

    def mlp(f, p):
        w1, b1, w2, b2, w3, b3 = p
        h = jnp.maximum(f @ w1.astype(jnp.float32) + b1, 0.0)
        h = jnp.maximum(h @ w2.astype(jnp.float32) + b2, 0.0)
        return h @ w3.astype(jnp.float32) + b3

    value = mlp(feat, params["value"])
    adv = mlp(feat, params["advantage"])
    return value + adv - jnp.mean(adv, axis=1, keepdims=True)


def make_params(key, in_ch, H, W, n_actions, account_feats=3, conv_ch=8):
    D = conv_ch * H * W + account_feats
    ks = jax.random.split(key, 4)
    s = 0.05

    def rnd(k, shape):
        return (s * jax.random.normal(k, shape)).astype(jnp.float32)

    def head(k0, out_dim):
        kk = jax.random.split(k0, 6)
        # weights in bf16 (DMA-dominant), biases in f32
        return (rnd(kk[0], (D, 512)).astype(jnp.bfloat16), rnd(kk[1], (1, 512)),
                rnd(kk[2], (512, 256)).astype(jnp.bfloat16), rnd(kk[3], (1, 256)),
                rnd(kk[4], (256, out_dim)).astype(jnp.bfloat16),
                rnd(kk[5], (1, out_dim)))

    return {
        "conv_w": rnd(ks[0], (conv_ch, in_ch, 3, 3)),
        "conv_b": rnd(ks[1], (conv_ch,)),
        "value": head(ks[2], 1),
        "advantage": head(ks[3], n_actions),
    }


if __name__ == "__main__":
    key = jax.random.PRNGKey(0)
    k_x, k_a, k_p = jax.random.split(key, 3)

    N, C, H, W = 2, 4, 16, 16
    n_actions = 5
    account_feats = 3

    x = jax.random.normal(k_x, (N, C, H, W), dtype=jnp.float32)
    current_account = jax.random.normal(k_a, (N, account_feats), dtype=jnp.float32)
    params = make_params(k_p, C, H, W, n_actions, account_feats)
    head_params = prepare_head_params(params, H, W)

    fwd = jax.jit(dueling_net_forward)
    out = fwd(x, current_account, params, head_params)
    out = jax.block_until_ready(out)

    ref = dueling_net_reference(x, current_account, params)
    assert out.shape == (N, n_actions)
    assert jnp.allclose(out, ref, atol=2e-3, rtol=2e-3), "mismatch vs reference"

    print("KERNEL_OK")
</pallas_src>

<mosaic_0001>
module attributes {stable_mosaic.version = 11 : i64} {
  func.func @_conv_mm_kernel(%arg0: i32, %arg1: memref<256x36xf32, #tpu.memory_space<vmem>>, %arg2: memref<36x8xf32, #tpu.memory_space<vmem>>, %arg3: memref<1x8xf32, #tpu.memory_space<vmem>>, %arg4: memref<256x8xf32, #tpu.memory_space<vmem>>) attributes {dimension_semantics = [#tpu.dimension_semantics<parallel>], iteration_bounds = array<i64: 2>, scalar_prefetch = 0 : i64, scratch_operands = 0 : i64, tpu.core_type = #tpu.core_type<tc>, window_params = [{transform_indices = @transform_0, window_bounds = array<i64: 256, 36>}, {pipeline_mode = #tpu.pipeline_mode<synchronous>, transform_indices = @transform_1, window_bounds = array<i64: 36, 8>}, {pipeline_mode = #tpu.pipeline_mode<synchronous>, transform_indices = @transform_2, window_bounds = array<i64: 1, 8>}, {transform_indices = @transform_3, window_bounds = array<i64: 256, 8>}]} {
    %c0 = arith.constant 0 : index
    %c0_0 = arith.constant 0 : index
    %0 = vector.load %arg1[%c0, %c0_0] : memref<256x36xf32, #tpu.memory_space<vmem>>, vector<256x36xf32>
    %c0_1 = arith.constant 0 : index
    %c0_2 = arith.constant 0 : index
    %1 = vector.load %arg2[%c0_1, %c0_2] : memref<36x8xf32, #tpu.memory_space<vmem>>, vector<36x8xf32>
    %cst = arith.constant dense<0.000000e+00> : vector<256x8xf32>
    %2 = tpu.matmul %0, %1, %cst {dimension_numbers = #tpu.dot_dimension_numbers<[1], [0], [0], [1], [0, 0, 1, 1], [], []>} : vector<256x36xf32>, vector<36x8xf32>, vector<256x8xf32> -> vector<256x8xf32>
    %c0_3 = arith.constant 0 : index
    %c0_4 = arith.constant 0 : index
    %3 = vector.load %arg3[%c0_3, %c0_4] : memref<1x8xf32, #tpu.memory_space<vmem>>, vector<1x8xf32>
    %4 = vector.broadcast %3 : vector<1x8xf32> to vector<256x8xf32>
    %5 = arith.addf %2, %4 : vector<256x8xf32>
    %cst_5 = arith.constant 0.000000e+00 : f32
    %6 = vector.broadcast %cst_5 : f32 to vector<256x8xf32>
    %7 = arith.maximumf %5, %6 : vector<256x8xf32>
    %c0_6 = arith.constant 0 : index
    %c0_7 = arith.constant 0 : index
    %8 = vector.load %arg4[%c0_6, %c0_7] : memref<256x8xf32, #tpu.memory_space<vmem>>, vector<256x8xf32>
    tpu.vector_store %arg4[%c0_6, %c0_7], %7 {strides = array<i32>} : memref<256x8xf32, #tpu.memory_space<vmem>>, vector<256x8xf32>,
    return
  }
  func.func @transform_0(%arg0: i32) -> (i32, i32) {
    %c0_i32 = arith.constant 0 : i32
    %c0_i32_0 = arith.constant 0 : i32
    return %arg0, %c0_i32 : i32, i32
  }
  func.func @transform_1(%arg0: i32) -> (i32, i32) {
    %c0_i32 = arith.constant 0 : i32
    %c0_i32_0 = arith.constant 0 : i32
    %c0_i32_1 = arith.constant 0 : i32
    return %c0_i32, %c0_i32_0 : i32, i32
  }
  func.func @transform_2(%arg0: i32) -> (i32, i32) {
    %c0_i32 = arith.constant 0 : i32
    %c0_i32_0 = arith.constant 0 : i32
    %c0_i32_1 = arith.constant 0 : i32
    return %c0_i32, %c0_i32_0 : i32, i32
  }
  func.func @transform_3(%arg0: i32) -> (i32, i32) {
    %c0_i32 = arith.constant 0 : i32
    %c0_i32_0 = arith.constant 0 : i32
    return %arg0, %c0_i32 : i32, i32
  }
}

module attributes {stable_mosaic.version = 11 : i64} {
  func.func @_dueling_head_kernel(%arg0: i32, %arg1: memref<2x512xf32, #tpu.memory_space<vmem>>, %arg2: memref<2x3xf32, #tpu.memory_space<vmem>>, %arg3: memref<512x1024xbf16, #tpu.memory_space<vmem>>, %arg4: memref<3x1024xbf16, #tpu.memory_space<vmem>>, %arg5: memref<1x1024xf32, #tpu.memory_space<vmem>>, %arg6: memref<512x256xbf16, #tpu.memory_space<vmem>>, %arg7: memref<1x256xf32, #tpu.memory_space<vmem>>, %arg8: memref<256x1xbf16, #tpu.memory_space<vmem>>, %arg9: memref<1x1xf32, #tpu.memory_space<vmem>>, %arg10: memref<512x256xbf16, #tpu.memory_space<vmem>>, %arg11: memref<1x256xf32, #tpu.memory_space<vmem>>, %arg12: memref<256x5xbf16, #tpu.memory_space<vmem>>, %arg13: memref<1x5xf32, #tpu.memory_space<vmem>>, %arg14: memref<2x5xf32, #tpu.memory_space<vmem>>, %arg15: memref<2x1024xf32, #tpu.memory_space<vmem>>) attributes {dimension_semantics = [#tpu.dimension_semantics<arbitrary>], iteration_bounds = array<i64: 4>, scalar_prefetch = 0 : i64, scratch_operands = 1 : i64, tpu.core_type = #tpu.core_type<tc>, window_params = [{transform_indices = @transform_0, window_bounds = array<i64: 2, 512>}, {pipeline_mode = #tpu.pipeline_mode<synchronous>, transform_indices = @transform_1, window_bounds = array<i64: 2, 3>}, {transform_indices = @transform_2, window_bounds = array<i64: 512, 1024>}, {pipeline_mode = #tpu.pipeline_mode<synchronous>, transform_indices = @transform_3, window_bounds = array<i64: 3, 1024>}, {pipeline_mode = #tpu.pipeline_mode<synchronous>, transform_indices = @transform_4, window_bounds = array<i64: 1, 1024>}, {pipeline_mode = #tpu.pipeline_mode<synchronous>, transform_indices = @transform_5, window_bounds = array<i64: 512, 256>}, {pipeline_mode = #tpu.pipeline_mode<synchronous>, transform_indices = @transform_6, window_bounds = array<i64: 1, 256>}, {pipeline_mode = #tpu.pipeline_mode<synchronous>, transform_indices = @transform_7, window_bounds = array<i64: 256, 1>}, {pipeline_mode = #tpu.pipeline_mode<synchronous>, transform_indices = @transform_8, window_bounds = array<i64: 1, 1>}, {pipeline_mode = #tpu.pipeline_mode<synchronous>, transform_indices = @transform_9, window_bounds = array<i64: 512, 256>}, {pipeline_mode = #tpu.pipeline_mode<synchronous>, transform_indices = @transform_10, window_bounds = array<i64: 1, 256>}, {pipeline_mode = #tpu.pipeline_mode<synchronous>, transform_indices = @transform_11, window_bounds = array<i64: 256, 5>}, {pipeline_mode = #tpu.pipeline_mode<synchronous>, transform_indices = @transform_12, window_bounds = array<i64: 1, 5>}, {pipeline_mode = #tpu.pipeline_mode<synchronous>, transform_indices = @transform_13, window_bounds = array<i64: 2, 5>}]} {
    %c0_i32 = arith.constant 0 : i32
    %0 = arith.cmpi eq, %arg0, %c0_i32 : i32
    %1 = arith.extui %0 : i1 to i32
    %c0_i32_0 = arith.constant 0 : i32
    %2 = arith.cmpi ne, %1, %c0_i32_0 : i32
    scf.if %2 {
      %c0_9 = arith.constant 0 : index
      %c0_10 = arith.constant 0 : index
      %12 = vector.load %arg2[%c0_9, %c0_10] : memref<2x3xf32, #tpu.memory_space<vmem>>, vector<2x3xf32>
      %c0_11 = arith.constant 0 : index
      %c0_12 = arith.constant 0 : index
      %13 = vector.load %arg4[%c0_11, %c0_12] : memref<3x1024xbf16, #tpu.memory_space<vmem>>, vector<3x1024xbf16>
      %cst_13 = arith.constant dense<0.000000e+00> : vector<2x1024xf32>
      %14 = tpu.matmul %12, %13, %cst_13 {dimension_numbers = #tpu.dot_dimension_numbers<[1], [0], [0], [1], [0, 0, 1, 1], [], []>} : vector<2x3xf32>, vector<3x1024xbf16>, vector<2x1024xf32> -> vector<2x1024xf32>
      %c0_14 = arith.constant 0 : index
      %c0_15 = arith.constant 0 : index
      %15 = vector.load %arg5[%c0_14, %c0_15] : memref<1x1024xf32, #tpu.memory_space<vmem>>, vector<1x1024xf32>
      %16 = vector.broadcast %15 : vector<1x1024xf32> to vector<2x1024xf32>
      %17 = arith.addf %14, %16 : vector<2x1024xf32>
      %c0_16 = arith.constant 0 : index
      %c0_17 = arith.constant 0 : index
      %18 = vector.load %arg15[%c0_16, %c0_17] : memref<2x1024xf32, #tpu.memory_space<vmem>>, vector<2x1024xf32>
      tpu.vector_store %arg15[%c0_16, %c0_17], %17 {strides = array<i32>} : memref<2x1024xf32, #tpu.memory_space<vmem>>, vector<2x1024xf32>,
    } else {
    }
    %c0 = arith.constant 0 : index
    %c0_1 = arith.constant 0 : index
    %3 = vector.load %arg15[%c0, %c0_1] : memref<2x1024xf32, #tpu.memory_space<vmem>>, vector<2x1024xf32>
    %c0_2 = arith.constant 0 : index
    %c0_3 = arith.constant 0 : index
    %4 = vector.load %arg1[%c0_2, %c0_3] : memref<2x512xf32, #tpu.memory_space<vmem>>, vector<2x512xf32>
    %c0_4 = arith.constant 0 : index
    %c0_5 = arith.constant 0 : index
    %5 = vector.load %arg3[%c0_4, %c0_5] : memref<512x1024xbf16, #tpu.memory_space<vmem>>, vector<512x1024xbf16>
    %cst = arith.constant dense<0.000000e+00> : vector<2x1024xf32>
    %6 = tpu.matmul %4, %5, %cst {dimension_numbers = #tpu.dot_dimension_numbers<[1], [0], [0], [1], [0, 0, 1, 1], [], []>} : vector<2x512xf32>, vector<512x1024xbf16>, vector<2x1024xf32> -> vector<2x1024xf32>
    %7 = arith.addf %3, %6 : vector<2x1024xf32>
    %c0_6 = arith.constant 0 : index
    %c0_7 = arith.constant 0 : index
    %8 = vector.load %arg15[%c0_6, %c0_7] : memref<2x1024xf32, #tpu.memory_space<vmem>>, vector<2x1024xf32>
    tpu.vector_store %arg15[%c0_6, %c0_7], %7 {strides = array<i32>} : memref<2x1024xf32, #tpu.memory_space<vmem>>, vector<2x1024xf32>,
    %c3_i32 = arith.constant 3 : i32
    %9 = arith.cmpi eq, %arg0, %c3_i32 : i32
    %10 = arith.extui %9 : i1 to i32
    %c0_i32_8 = arith.constant 0 : i32
    %11 = arith.cmpi ne, %10, %c0_i32_8 : i32
    scf.if %11 {
      %c0_9 = arith.constant 0 : index
      %c0_10 = arith.constant 0 : index
      %12 = vector.load %arg15[%c0_9, %c0_10] : memref<2x1024xf32, #tpu.memory_space<vmem>>, vector<2x1024xf32>
      %cst_11 = arith.constant 0.000000e+00 : f32
      %13 = vector.broadcast %cst_11 : f32 to vector<2x1024xf32>
      %14 = arith.maximumf %12, %13 : vector<2x1024xf32>
      %15 = vector.extract_strided_slice %14 {offsets = [0, 0], sizes = [2, 512], strides = [1, 1]} : vector<2x1024xf32> to vector<2x512xf32>
      %16 = vector.extract_strided_slice %14 {offsets = [0, 512], sizes = [2, 512], strides = [1, 1]} : vector<2x1024xf32> to vector<2x512xf32>
      %c0_12 = arith.constant 0 : index
      %c0_13 = arith.constant 0 : index
      %17 = vector.load %arg6[%c0_12, %c0_13] : memref<512x256xbf16, #tpu.memory_space<vmem>>, vector<512x256xbf16>
      %cst_14 = arith.constant dense<0.000000e+00> : vector<2x256xf32>
      %18 = tpu.matmul %15, %17, %cst_14 {dimension_numbers = #tpu.dot_dimension_numbers<[1], [0], [0], [1], [0, 0, 1, 1], [], []>} : vector<2x512xf32>, vector<512x256xbf16>, vector<2x256xf32> -> vector<2x256xf32>
      %c0_15 = arith.constant 0 : index
      %c0_16 = arith.constant 0 : index
      %19 = vector.load %arg7[%c0_15, %c0_16] : memref<1x256xf32, #tpu.memory_space<vmem>>, vector<1x256xf32>
      %20 = vector.broadcast %19 : vector<1x256xf32> to vector<2x256xf32>
      %21 = arith.addf %18, %20 : vector<2x256xf32>
      %cst_17 = arith.constant 0.000000e+00 : f32
      %22 = vector.broadcast %cst_17 : f32 to vector<2x256xf32>
      %23 = arith.maximumf %21, %22 : vector<2x256xf32>
      %c0_18 = arith.constant 0 : index
      %c0_19 = arith.constant 0 : index
      %24 = vector.load %arg8[%c0_18, %c0_19] : memref<256x1xbf16, #tpu.memory_space<vmem>>, vector<256x1xbf16>
      %cst_20 = arith.constant dense<0.000000e+00> : vector<2x1xf32>
      %25 = tpu.matmul %23, %24, %cst_20 {dimension_numbers = #tpu.dot_dimension_numbers<[1], [0], [0], [1], [0, 0, 1, 1], [], []>} : vector<2x256xf32>, vector<256x1xbf16>, vector<2x1xf32> -> vector<2x1xf32>
      %c0_21 = arith.constant 0 : index
      %c0_22 = arith.constant 0 : index
      %26 = vector.load %arg9[%c0_21, %c0_22] : memref<1x1xf32, #tpu.memory_space<vmem>>, vector<1x1xf32>
      %27 = vector.broadcast %26 : vector<1x1xf32> to vector<2x1xf32>
      %28 = arith.addf %25, %27 : vector<2x1xf32>
      %c0_23 = arith.constant 0 : index
      %c0_24 = arith.constant 0 : index
      %29 = vector.load %arg10[%c0_23, %c0_24] : memref<512x256xbf16, #tpu.memory_space<vmem>>, vector<512x256xbf16>
      %cst_25 = arith.constant dense<0.000000e+00> : vector<2x256xf32>
      %30 = tpu.matmul %16, %29, %cst_25 {dimension_numbers = #tpu.dot_dimension_numbers<[1], [0], [0], [1], [0, 0, 1, 1], [], []>} : vector<2x512xf32>, vector<512x256xbf16>, vector<2x256xf32> -> vector<2x256xf32>
      %c0_26 = arith.constant 0 : index
      %c0_27 = arith.constant 0 : index
      %31 = vector.load %arg11[%c0_26, %c0_27] : memref<1x256xf32, #tpu.memory_space<vmem>>, vector<1x256xf32>
      %32 = vector.broadcast %31 : vector<1x256xf32> to vector<2x256xf32>
      %33 = arith.addf %30, %32 : vector<2x256xf32>
      %cst_28 = arith.constant 0.000000e+00 : f32
      %34 = vector.broadcast %cst_28 : f32 to vector<2x256xf32>
      %35 = arith.maximumf %33, %34 : vector<2x256xf32>
      %c0_29 = arith.constant 0 : index
      %c0_30 = arith.constant 0 : index
      %36 = vector.load %arg12[%c0_29, %c0_30] : memref<256x5xbf16, #tpu.memory_space<vmem>>, vector<256x5xbf16>
      %cst_31 = arith.constant dense<0.000000e+00> : vector<2x5xf32>
      %37 = tpu.matmul %35, %36, %cst_31 {dimension_numbers = #tpu.dot_dimension_numbers<[1], [0], [0], [1], [0, 0, 1, 1], [], []>} : vector<2x256xf32>, vector<256x5xbf16>, vector<2x5xf32> -> vector<2x5xf32>
      %c0_32 = arith.constant 0 : index
      %c0_33 = arith.constant 0 : index
      %38 = vector.load %arg13[%c0_32, %c0_33] : memref<1x5xf32, #tpu.memory_space<vmem>>, vector<1x5xf32>
      %39 = vector.broadcast %38 : vector<1x5xf32> to vector<2x5xf32>
      %40 = arith.addf %37, %39 : vector<2x5xf32>
      %41 = vector.broadcast %28 : vector<2x1xf32> to vector<2x5xf32>
      %42 = arith.addf %41, %40 : vector<2x5xf32>
      %cst_34 = arith.constant dense<0.000000e+00> : vector<2xf32>
      %43 = vector.multi_reduction <add>, %40, %cst_34 [1] : vector<2x5xf32> to vector<2xf32>
      %44 = vector.shape_cast %43 : vector<2xf32> to vector<2x1xf32>
      %cst_35 = arith.constant 5.000000e+00 : f32
      %45 = vector.broadcast %cst_35 : f32 to vector<2x1xf32>
      %46 = arith.divf %44, %45 : vector<2x1xf32>
      %47 = vector.broadcast %46 : vector<2x1xf32> to vector<2x5xf32>
      %48 = arith.subf %42, %47 : vector<2x5xf32>
      %c0_36 = arith.constant 0 : index
      %c0_37 = arith.constant 0 : index
      %49 = vector.load %arg14[%c0_36, %c0_37] : memref<2x5xf32, #tpu.memory_space<vmem>>, vector<2x5xf32>
      tpu.vector_store %arg14[%c0_36, %c0_37], %48 {strides = array<i32>} : memref<2x5xf32, #tpu.memory_space<vmem>>, vector<2x5xf32>,
    } else {
    }
    return
  }
  func.func @transform_0(%arg0: i32) -> (i32, i32) {
    %c0_i32 = arith.constant 0 : i32
    %c0_i32_0 = arith.constant 0 : i32
    return %c0_i32, %arg0 : i32, i32
  }
  func.func @transform_1(%arg0: i32) -> (i32, i32) {
    %c0_i32 = arith.constant 0 : i32
    %c0_i32_0 = arith.constant 0 : i32
    %c0_i32_1 = arith.constant 0 : i32
    return %c0_i32, %c0_i32_0 : i32, i32
  }
  func.func @transform_2(%arg0: i32) -> (i32, i32) {
    %c0_i32 = arith.constant 0 : i32
    %c0_i32_0 = arith.constant 0 : i32
    return %arg0, %c0_i32 : i32, i32
  }
  func.func @transform_3(%arg0: i32) -> (i32, i32) {
    %c0_i32 = arith.constant 0 : i32
    %c0_i32_0 = arith.constant 0 : i32
    %c0_i32_1 = arith.constant 0 : i32
    return %c0_i32, %c0_i32_0 : i32, i32
  }
  func.func @transform_4(%arg0: i32) -> (i32, i32) {
    %c0_i32 = arith.constant 0 : i32
    %c0_i32_0 = arith.constant 0 : i32
    %c0_i32_1 = arith.constant 0 : i32
    return %c0_i32, %c0_i32_0 : i32, i32
  }
  func.func @transform_5(%arg0: i32) -> (i32, i32) {
    %c0_i32 = arith.constant 0 : i32
    %c0_i32_0 = arith.constant 0 : i32
    %c0_i32_1 = arith.constant 0 : i32
    return %c0_i32, %c0_i32_0 : i32, i32
  }
  func.func @transform_6(%arg0: i32) -> (i32, i32) {
    %c0_i32 = arith.constant 0 : i32
    %c0_i32_0 = arith.constant 0 : i32
    %c0_i32_1 = arith.constant 0 : i32
    return %c0_i32, %c0_i32_0 : i32, i32
  }
  func.func @transform_7(%arg0: i32) -> (i32, i32) {
    %c0_i32 = arith.constant 0 : i32
    %c0_i32_0 = arith.constant 0 : i32
    %c0_i32_1 = arith.constant 0 : i32
    return %c0_i32, %c0_i32_0 : i32, i32
  }
  func.func @transform_8(%arg0: i32) -> (i32, i32) {
    %c0_i32 = arith.constant 0 : i32
    %c0_i32_0 = arith.constant 0 : i32
    %c0_i32_1 = arith.constant 0 : i32
    return %c0_i32, %c0_i32_0 : i32, i32
  }
  func.func @transform_9(%arg0: i32) -> (i32, i32) {
    %c0_i32 = arith.constant 0 : i32
    %c0_i32_0 = arith.constant 0 : i32
    %c0_i32_1 = arith.constant 0 : i32
    return %c0_i32, %c0_i32_0 : i32, i32
  }
  func.func @transform_10(%arg0: i32) -> (i32, i32) {
    %c0_i32 = arith.constant 0 : i32
    %c0_i32_0 = arith.constant 0 : i32
    %c0_i32_1 = arith.constant 0 : i32
    return %c0_i32, %c0_i32_0 : i32, i32
  }
  func.func @transform_11(%arg0: i32) -> (i32, i32) {
    %c0_i32 = arith.constant 0 : i32
    %c0_i32_0 = arith.constant 0 : i32
    %c0_i32_1 = arith.constant 0 : i32
    return %c0_i32, %c0_i32_0 : i32, i32
  }
  func.func @transform_12(%arg0: i32) -> (i32, i32) {
    %c0_i32 = arith.constant 0 : i32
    %c0_i32_0 = arith.constant 0 : i32
    %c0_i32_1 = arith.constant 0 : i32
    return %c0_i32, %c0_i32_0 : i32, i32
  }
  func.func @transform_13(%arg0: i32) -> (i32, i32) {
    %c0_i32 = arith.constant 0 : i32
    %c0_i32_0 = arith.constant 0 : i32
    %c0_i32_1 = arith.constant 0 : i32
    return %c0_i32, %c0_i32_0 : i32, i32
  }
}

</mosaic_0001>

<llo_original>
// kernel: dueling_net_forward.2
$region0: #{dueling_net_forward.2}
  #allocation0 [shape = 'u32[]', space=smem, size = 0x4, offset = 0x4, fixed_abs, tag = 'smem constant byte address 0x4 - core index']
  #allocation1 [shape = 'u32[144,128]{1,0:T(1,128)}', space=vmem, size = 0x12000, scoped, tag = 'internal scratch']
  %s0 = inlined_call_operand.vmem [shape: f32[512,36], index: 0, kind: input, shape index: {}]
  %s1 = inlined_call_operand.vmem [shape: f32[36,8], index: 1, kind: input, shape index: {}]
  %s2 = inlined_call_operand.hbm [shape: f32[1,8], index: 2, kind: input, shape index: {}]
  %s3 = inlined_call_operand.vmem [shape: f32[512,8], index: 3, kind: output, shape index: {}]
  %s4 = sld [smem:[#allocation0]]
  $region49: #{dueling_net_forward.2} parent=0
    _
  %s6 = ssub.s32 1, %s4
  %s7 = scalar_select 0, %s6, %s4
  $region1: #{dueling_net_forward.2} parent=0
    #allocation2 [shape = 'u8[512]{0}', space=vmem, size = 0x400, scoped, tag = 'input window, operand 2, single buffered']
    #allocation3 [shape = 's32[2]{0}', space=sflag, size = 0x8, scoped, tag = 'scoped memory for dueling_net_forward.2']
    %8 = vsyncpa [#allocation3], 0
    loop: start=0, step=1, limit=4
    $region2: #{dueling_net_forward.2} parent=1 // loop_pre_header
      _
    $region3: #{dueling_net_forward.2} parent=1 // loop_header
      %s10 = sphi 0, %s14
      %p11 = scmp.ge.s32.totalorder %s10, 4
      %s20 = sphi 0, %s22
      %s23 = sphi 0, %s20
      %s24 = sphi 0, %s23
      %s40 = sphi 0, %s24
      %s44 = sphi 0, %s44
      %s46 = sphi 0, %s44
      %s47 = sphi 0, %s46
      %s61 = sphi 0, %s47
      %s65 = sphi 0, %s65
      %s67 = sphi 0, %s65
      %s68 = sphi 0, %s67
      %s82 = sphi 0, %s68
      %s88 = sphi 0, %s90
      %s91 = sphi 0, %s88
      %s92 = sphi 0, %s91
      %s108 = sphi 0, %s92
    $region4: #{dueling_net_forward.2} parent=1 // loop_header_branch
      %13 = sbr.rel (%p11) target = $region8
    $region5: #{dueling_net_forward.2} parent=1 // loop_body
      %s15 = ssub.s32 %s10, 1
      %s16 = ssub.s32 %s10, 2
      %s17 = sadd.s32 %s10, 1
      %s18 = ssub.s32 %s10, %s17
      %p19 = scmp.eq.s32.totalorder %s18, 0
      %s21 = sadd.s32 %s20, 1
      %s22 = scalar_select %p19, %s20, %s21
      %p25 = pneg %p19
      %p26 = scmp.eq.s32.totalorder %s10, 1
      %p27 = por %p25, %p26
      %p28 = scmp.ne.s32.totalorder %s20, %s23
      %p29 = scmp.eq.s32.totalorder %s10, 0
      %p30 = por %p28, %p29
      %p31 = scmp.ne.s32.totalorder %s20, %s23
      %p32 = scmp.eq.s32.totalorder %s15, 1
      %p33 = por %p31, %p32
      %p34 = scmp.ne.s32.totalorder %s23, %s24
      %p35 = scmp.eq.s32.totalorder %s15, 0
      %p36 = por %p34, %p35
      %p37 = scmp.ne.s32.totalorder %s23, %s24
      %p38 = scmp.eq.s32.totalorder %s16, 1
      %p39 = por %p37, %p38
      %p41 = scmp.ne.s32.totalorder %s24, %s40
      %p42 = scmp.eq.s32.totalorder %s16, 0
      %p43 = por %p41, %p42
      %s45 = sadd.s32 %s44, 1
      %p48 = scmp.eq.s32.totalorder %s10, 1
      %p49 = scmp.ne.s32.totalorder %s44, %s46
      %p50 = scmp.eq.s32.totalorder %s10, 0
      %p51 = por %p49, %p50
      %p52 = scmp.ne.s32.totalorder %s44, %s46
      %p53 = scmp.eq.s32.totalorder %s15, 1
      %p54 = por %p52, %p53
      %p55 = scmp.ne.s32.totalorder %s46, %s47
      %p56 = scmp.eq.s32.totalorder %s15, 0
      %p57 = por %p55, %p56
      %p58 = scmp.ne.s32.totalorder %s46, %s47
      %p59 = scmp.eq.s32.totalorder %s16, 1
      %p60 = por %p58, %p59
      %p62 = scmp.ne.s32.totalorder %s47, %s61
      %p63 = scmp.eq.s32.totalorder %s16, 0
      %p64 = por %p62, %p63
      %s66 = sadd.s32 %s65, 1
      %p69 = scmp.eq.s32.totalorder %s10, 1
      %p70 = scmp.ne.s32.totalorder %s65, %s67
      %p71 = scmp.eq.s32.totalorder %s10, 0
      %p72 = por %p70, %p71
      %p73 = scmp.ne.s32.totalorder %s65, %s67
      %p74 = scmp.eq.s32.totalorder %s15, 1
      %p75 = por %p73, %p74
      %p76 = scmp.ne.s32.totalorder %s67, %s68
      %p77 = scmp.eq.s32.totalorder %s15, 0
      %p78 = por %p76, %p77
      %p79 = scmp.ne.s32.totalorder %s67, %s68
      %p80 = scmp.eq.s32.totalorder %s16, 1
      %p81 = por %p79, %p80
      %p83 = scmp.ne.s32.totalorder %s68, %s82
      %p84 = scmp.eq.s32.totalorder %s16, 0
      %p85 = por %p83, %p84
      %s86 = ssub.s32 %s10, %s17
      %p87 = scmp.eq.s32.totalorder %s86, 0
      %s89 = sadd.s32 %s88, 1
      %s90 = scalar_select %p87, %s88, %s89
      %p93 = pneg %p87
      %p94 = scmp.eq.s32.totalorder %s10, 1
      %p95 = por %p93, %p94
      %p96 = scmp.ne.s32.totalorder %s88, %s91
      %p97 = scmp.eq.s32.totalorder %s10, 0
      %p98 = por %p96, %p97
      %p99 = scmp.ne.s32.totalorder %s88, %s91
      %p100 = scmp.eq.s32.totalorder %s15, 1
      %p101 = por %p99, %p100
      %p102 = scmp.ne.s32.totalorder %s91, %s92
      %p103 = scmp.eq.s32.totalorder %s15, 0
      %p104 = por %p102, %p103
      %p105 = scmp.ne.s32.totalorder %s91, %s92
      %p106 = scmp.eq.s32.totalorder %s16, 1
      %p107 = por %p105, %p106
      %p109 = scmp.ne.s32.totalorder %s92, %s108
      %p110 = scmp.eq.s32.totalorder %s16, 0
      %p111 = por %p109, %p110
      %p112 = scmp.le.s32.totalorder 1, %s10
      %p113 = scmp.lt.s32.totalorder %s10, 3
      %p114 = pnand %p112, %p113
      %p115 = pneg %p114
      // Predicated region
      $region9: #{dueling_net_forward.2} parent=5 // pred_check
        _
      $region10: #{dueling_net_forward.2} parent=5 // pred_check_branch
        %117 = sbr.rel (%p114) target = $region12
      $region11: #{dueling_net_forward.2} parent=5 // pred_region
        %s118 = ssub.s32 %s10, 1
        // Predicated region
        $region13: #{dueling_net_forward.2} parent=11 // pred_check
          %p119 = pneg %p57
        $region14: #{dueling_net_forward.2} parent=11 // pred_check_branch
          %121 = sbr.rel (%p119) target = $region16
        $region15: #{dueling_net_forward.2} parent=11 // pred_region
          _
        $region16: #{dueling_net_forward.2} parent=11 // pred_fallthru
          _
        // Predicated region
        $region17: #{dueling_net_forward.2} parent=11 // pred_check
          %p122 = pneg %p78
        $region18: #{dueling_net_forward.2} parent=11 // pred_check_branch
          %124 = sbr.rel (%p122) target = $region20
        $region19: #{dueling_net_forward.2} parent=11 // pred_region
          %s126 = ssub.s32 16, 16
          %127 = vsyncadd [#allocation3], %s126
          %s129 = sshll.u32 [#allocation2], 4
          %s130 = int_to_ptr.vmem [resolvable:$true] %s129
          %132 = dma.hbm_to_vmem [thread:$0]  %s2, 16, %s130, [#allocation3]
        $region20: #{dueling_net_forward.2} parent=11 // pred_fallthru
          _
      $region12: #{dueling_net_forward.2} parent=5 // pred_fallthru
        _
      %p133 = scmp.lt.s32.totalorder %s10, 2
      // Predicated region
      $region21: #{dueling_net_forward.2} parent=5 // pred_check
        %p134 = pneg %p133
      $region22: #{dueling_net_forward.2} parent=5 // pred_check_branch
        %136 = sbr.rel (%p134) target = $region24
      $region23: #{dueling_net_forward.2} parent=5 // pred_region
        // Predicated region
        $region25: #{dueling_net_forward.2} parent=23 // pred_check
          %p137 = pneg %p30
        $region26: #{dueling_net_forward.2} parent=23 // pred_check_branch
          %139 = sbr.rel (%p137) target = $region28
        $region27: #{dueling_net_forward.2} parent=23 // pred_region
          %s140 = smul.u32 32, %s10
          %p141 = scmp.lt.s32.totalorder %s140, 63
          %s142 = scalar_select %p141, %s140, 63
          %s143 = smul.addr %s142, 8
          %s144 = scalar_lea.vmem %s0, %s143
          %s145 = smul.u32 32, %s10
        $region28: #{dueling_net_forward.2} parent=23 // pred_fallthru
          _
      $region24: #{dueling_net_forward.2} parent=5 // pred_fallthru
        _
      %p146 = scmp.le.s32.totalorder 1, %s10
      %p147 = scmp.lt.s32.totalorder %s10, 3
      %p148 = pnand %p146, %p147
      %p149 = pneg %p148
      // Predicated region
      $region29: #{dueling_net_forward.2} parent=5 // pred_check
        _
      $region30: #{dueling_net_forward.2} parent=5 // pred_check_branch
        %151 = sbr.rel (%p148) target = $region32
      $region31: #{dueling_net_forward.2} parent=5 // pred_region
        %s152 = ssub.s32 %s10, 1
        // Predicated region
        $region33: #{dueling_net_forward.2} parent=31 // pred_check
          %p153 = pneg %p78
        $region34: #{dueling_net_forward.2} parent=31 // pred_check_branch
          %155 = sbr.rel (%p153) target = $region36
        $region35: #{dueling_net_forward.2} parent=31 // pred_region
          %156 = dma.done [#allocation3], 16
        $region36: #{dueling_net_forward.2} parent=31 // pred_fallthru
          _
        %s157 = smul.u32 32, %s15
        %p158 = scmp.lt.s32.totalorder %s157, 63
        %s159 = scalar_select %p158, %s157, 63
        %s160 = smul.addr %s159, 8
        %s161 = scalar_lea.vmem %s0, %s160
        %p162 = pneg %p36
        %p163 = pneg %p33
        %p164 = pneg %p57
        %p165 = pneg %p54
        %p166 = pneg %p78
        %p167 = pneg %p75
        %p168 = pneg %p104
        %p169 = pneg %p101
        %s170 = smul.u32 32, %s15
        %p171 = scmp.lt.s32.totalorder %s170, 63
        %s172 = scalar_select %p171, %s170, 63
        %s173 = smul.addr %s172, 8
        %s174 = scalar_lea.vmem %s3, %s173
        %s175 = smul.u32 32, %s15
        %p176 = scmp.lt.s32.totalorder %s175, 63
        %s177 = scalar_select %p176, %s175, 63
        %s178 = smul.addr %s177, 8
        %s179 = scalar_lea.vmem %s0, %s178
        %s180 = smul.u32 32, %s15
        %s181 = smul.u32 32, %s15
        %p182 = scmp.lt.s32.totalorder %s181, 63
        %s183 = scalar_select %p182, %s181, 63
        %s184 = smul.addr %s183, 8
        %s185 = scalar_lea.vmem %s3, %s184
        %s186 = smul.u32 32, %s15
        %v187 = vld [vmem:[%s179] sm:$0xff]
        %v188 = vld [vmem:[%s179 + $0x8] sm:$0xff]
        %v189 = vld [vmem:[%s179 + $0x10] sm:$0xff]
        %v190 = vld [vmem:[%s179 + $0x18] sm:$0xff]
        %v191 = vld [vmem:[%s179 + $0x20] sm:$0xff]
        %v192 = vld [vmem:[%s179 + $0x28] sm:$0xff]
        %v193 = vld [vmem:[%s179 + $0x30] sm:$0xff]
        %v194 = vld [vmem:[%s179 + $0x38] sm:$0xff]
        %v195 = vld [vmem:[%s179 + $0x40] sm:$0xff]
        %v196 = vld [vmem:[%s179 + $0x48] sm:$0xff]
        %v197 = vld [vmem:[%s179 + $0x50] sm:$0xff]
        %v198 = vld [vmem:[%s179 + $0x58] sm:$0xff]
        %v199 = vld [vmem:[%s179 + $0x60] sm:$0xff]
        %v200 = vld [vmem:[%s179 + $0x68] sm:$0xff]
        %v201 = vld [vmem:[%s179 + $0x70] sm:$0xff]
        %v202 = vld [vmem:[%s179 + $0x78] sm:$0xff]
        %v203 = vld [vmem:[%s179 + $0x80] sm:$0xff]
        %v204 = vld [vmem:[%s179 + $0x88] sm:$0xff]
        %v205 = vld [vmem:[%s179 + $0x90] sm:$0xff]
        %v206 = vld [vmem:[%s179 + $0x98] sm:$0xff]
        %v207 = vld [vmem:[%s179 + $0xa0] sm:$0xff]
        %v208 = vld [vmem:[%s179 + $0xa8] sm:$0xff]
        %v209 = vld [vmem:[%s179 + $0xb0] sm:$0xff]
        %v210 = vld [vmem:[%s179 + $0xb8] sm:$0xff]
        %v211 = vld [vmem:[%s179 + $0xc0] sm:$0xff]
        %v212 = vld [vmem:[%s179 + $0xc8] sm:$0xff]
        %v213 = vld [vmem:[%s179 + $0xd0] sm:$0xff]
        %v214 = vld [vmem:[%s179 + $0xd8] sm:$0xff]
        %v215 = vld [vmem:[%s179 + $0xe0] sm:$0xff]
        %v216 = vld [vmem:[%s179 + $0xe8] sm:$0xff]
        %v217 = vld [vmem:[%s179 + $0xf0] sm:$0xff]
        %v218 = vld [vmem:[%s179 + $0xf8] sm:$0xff]
        %v219 = vld [vmem:[%s1] sm:$0xff]
        %v220 = vld [vmem:[%s1 + $0x8] sm:$0xff]
        %v221 = vld [vmem:[%s1 + $0x10] sm:$0xff]
        %v222 = vld [vmem:[%s1 + $0x18] sm:$0xff]
        %v223 = vld [vmem:[%s1 + $0x20] sm:$0xf]
        %v224 = vld [vmem:[#allocation2] sm:$0x1]
        %v226 = vlaneseq
        %v227 = vshrl.u32 %v226, 7
        %v228 = vsub.s32 0, %v227
        %v229 = vrot.slane %v224, %v228
        %vm231 = vcmask 293888
        %v233 = vsel %vm231, %v187, 0
        %v236 = vsel %vm231, %v188, 0
        %v239 = vsel %vm231, %v189, 0
        %v242 = vsel %vm231, %v190, 0
        %v245 = vsel %vm231, %v191, 0
        %v248 = vsel %vm231, %v192, 0
        %v251 = vsel %vm231, %v193, 0
        %v254 = vsel %vm231, %v194, 0
        %v257 = vsel %vm231, %v195, 0
        %v260 = vsel %vm231, %v196, 0
        %v263 = vsel %vm231, %v197, 0
        %v266 = vsel %vm231, %v198, 0
        %v269 = vsel %vm231, %v199, 0
        %v272 = vsel %vm231, %v200, 0
        %v275 = vsel %vm231, %v201, 0
        %v278 = vsel %vm231, %v202, 0
        %v281 = vsel %vm231, %v203, 0
        %v284 = vsel %vm231, %v204, 0
        %v287 = vsel %vm231, %v205, 0
        %v290 = vsel %vm231, %v206, 0
        %v293 = vsel %vm231, %v207, 0
        %v296 = vsel %vm231, %v208, 0
        %v299 = vsel %vm231, %v209, 0
        %v302 = vsel %vm231, %v210, 0
        %v305 = vsel %vm231, %v211, 0
        %v308 = vsel %vm231, %v212, 0
        %v311 = vsel %vm231, %v213, 0
        %v314 = vsel %vm231, %v214, 0
        %v317 = vsel %vm231, %v215, 0
        %v320 = vsel %vm231, %v216, 0
        %v323 = vsel %vm231, %v217, 0
        %v326 = vsel %vm231, %v218, 0
        %vm328 = vcmask 1043456
        %v330 = vsel %vm328, %v223, 0
        %332 = vmatprep.subr.mxu0 0.0
        %333 = vmatpush1.msra.mxu0 %v219
        %334 = vmatprep.subr.mxu0 0.0
        %335 = vmatpush1.msra.mxu0 %v220
        %336 = vmatprep.subr.mxu0 0.0
        %337 = vmatpush1.msra.mxu0 %v221
        %338 = vmatprep.subr.mxu0 0.0
        %339 = vmatpush1.msra.mxu0 %v222
        %340 = vmatprep.subr.mxu0 0.0
        %341 = vmatpush1.msra.mxu0 %v330
        %342 = vmatprep.subr.mxu0 0.0
        %343 = vmatpush1.msra.mxu0 0.0
        %344 = vmatprep.subr.mxu0 0.0
        %345 = vmatpush1.msra.mxu0 0.0
        %346 = vmatprep.subr.mxu0 0.0
        %347 = vmatpush1.msra.mxu0 0.0
        %348 = vmatprep.subr.mxu0 0.0
        %349 = vmatpush1.msra.mxu0 0.0
        %350 = vmatprep.subr.mxu0 0.0
        %351 = vmatpush1.msra.mxu0 0.0
        %352 = vmatprep.subr.mxu0 0.0
        %353 = vmatpush1.msra.mxu0 0.0
        %354 = vmatprep.subr.mxu0 0.0
        %355 = vmatpush1.msra.mxu0 0.0
        %356 = vmatprep.subr.mxu0 0.0
        %357 = vmatpush1.msra.mxu0 0.0
        %358 = vmatprep.subr.mxu0 0.0
        %359 = vmatpush1.msra.mxu0 0.0
        %360 = vmatprep.subr.mxu0 0.0
        %361 = vmatpush1.msra.mxu0 0.0
        %362 = vmatprep.subr.mxu0 0.0
        %363 = vmatpush1.msra.mxu0 0.0
        %364 = vmatprep.subr.mxu0 0.0
        %365 = vmatpush1.msra.mxu0 0.0
        %366 = vmatprep.subr.mxu0 0.0
        %367 = vmatpush1.msra.mxu0 0.0
        %368 = vmatprep.subr.mxu0 0.0
        %369 = vmatpush1.msra.mxu0 0.0
        %370 = vmatprep.subr.mxu0 0.0
        %371 = vmatpush1.msra.mxu0 0.0
        %372 = vmatprep.subr.mxu0 0.0
        %373 = vmatpush1.msra.mxu0 0.0
        %374 = vmatprep.subr.mxu0 0.0
        %375 = vmatpush1.msra.mxu0 0.0
        %376 = vmatprep.subr.mxu0 0.0
        %377 = vmatpush1.msra.mxu0 0.0
        %378 = vmatprep.subr.mxu0 0.0
        %379 = vmatpush1.msra.mxu0 0.0
        %380 = vmatprep.subr.mxu0 0.0
        %381 = vmatpush1.msra.mxu0 0.0
        %382 = vmatprep.subr.mxu0 0.0
        %383 = vmatpush1.msra.mxu0 0.0
        %384 = vmatprep.subr.mxu0 0.0
        %385 = vmatpush1.msra.mxu0 0.0
        %386 = vmatprep.subr.mxu0 0.0
        %387 = vmatpush1.msra.mxu0 0.0
        %388 = vmatprep.subr.mxu0 0.0
        %389 = vmatpush1.msra.mxu0 0.0
        %390 = vmatprep.subr.mxu0 0.0
        %391 = vmatpush1.msra.mxu0 0.0
        %392 = vmatprep.subr.mxu0 0.0
        %393 = vmatpush1.msra.mxu0 0.0
        %394 = vmatprep.subr.mxu0 0.0
        %395 = vmatpush1.msra.mxu0 0.0
        %396 = vmatprep.mubr.f32.mxu0 0.0
        %397 = vmatmul.mubr.f32.gmra.mrb[0].mxu0 %v233
        %v398 = vpop.f32.mrb[0].mxu0
        %v399 = vadd.f32 %v229, %v398
        %v400 = vpop.f32.mrb[0].mxu0
        %401 = vmatprep.mubr.f32.mxu0 0.0
        %402 = vmatmul.mubr.f32.gmra.mrb[0].mxu0 %v236
        %v403 = vpop.f32.mrb[0].mxu0
        %v404 = vadd.f32 %v229, %v403
        %v405 = vpop.f32.mrb[0].mxu0
        %406 = vmatprep.mubr.f32.mxu0 0.0
        %407 = vmatmul.mubr.f32.gmra.mrb[0].mxu0 %v239
        %v408 = vpop.f32.mrb[0].mxu0
        %v409 = vadd.f32 %v229, %v408
        %v410 = vpop.f32.mrb[0].mxu0
        %411 = vmatprep.mubr.f32.mxu0 0.0
        %412 = vmatmul.mubr.f32.gmra.mrb[0].mxu0 %v242
        %v413 = vpop.f32.mrb[0].mxu0
        %v414 = vadd.f32 %v229, %v413
        %v415 = vpop.f32.mrb[0].mxu0
        %416 = vmatprep.mubr.f32.mxu0 0.0
        %417 = vmatmul.mubr.f32.gmra.mrb[0].mxu0 %v245
        %v418 = vpop.f32.mrb[0].mxu0
        %v419 = vadd.f32 %v229, %v418
        %v420 = vpop.f32.mrb[0].mxu0
        %421 = vmatprep.mubr.f32.mxu0 0.0
        %422 = vmatmul.mubr.f32.gmra.mrb[0].mxu0 %v248
        %v423 = vpop.f32.mrb[0].mxu0
        %v424 = vadd.f32 %v229, %v423
        %v425 = vpop.f32.mrb[0].mxu0
        %426 = vmatprep.mubr.f32.mxu0 0.0
        %427 = vmatmul.mubr.f32.gmra.mrb[0].mxu0 %v251
        %v428 = vpop.f32.mrb[0].mxu0
        %v429 = vadd.f32 %v229, %v428
        %v430 = vpop.f32.mrb[0].mxu0
        %431 = vmatprep.mubr.f32.mxu0 0.0
        %432 = vmatmul.mubr.f32.gmra.mrb[0].mxu0 %v254
        %v433 = vpop.f32.mrb[0].mxu0
        %v434 = vadd.f32 %v229, %v433
        %v435 = vpop.f32.mrb[0].mxu0
        %436 = vmatprep.mubr.f32.mxu0 0.0
        %437 = vmatmul.mubr.f32.gmra.mrb[0].mxu0 %v257
        %v438 = vpop.f32.mrb[0].mxu0
        %v439 = vadd.f32 %v229, %v438
        %v440 = vpop.f32.mrb[0].mxu0
        %441 = vmatprep.mubr.f32.mxu0 0.0
        %442 = vmatmul.mubr.f32.gmra.mrb[0].mxu0 %v260
        %v443 = vpop.f32.mrb[0].mxu0
        %v444 = vadd.f32 %v229, %v443
        %v445 = vpop.f32.mrb[0].mxu0
        %446 = vmatprep.mubr.f32.mxu0 0.0
        %447 = vmatmul.mubr.f32.gmra.mrb[0].mxu0 %v263
        %v448 = vpop.f32.mrb[0].mxu0
        %v449 = vadd.f32 %v229, %v448
        %v450 = vpop.f32.mrb[0].mxu0
        %451 = vmatprep.mubr.f32.mxu0 0.0
        %452 = vmatmul.mubr.f32.gmra.mrb[0].mxu0 %v266
        %v453 = vpop.f32.mrb[0].mxu0
        %v454 = vadd.f32 %v229, %v453
        %v455 = vpop.f32.mrb[0].mxu0
        %456 = vmatprep.mubr.f32.mxu0 0.0
        %457 = vmatmul.mubr.f32.gmra.mrb[0].mxu0 %v269
        %v458 = vpop.f32.mrb[0].mxu0
        %v459 = vadd.f32 %v229, %v458
        %v460 = vpop.f32.mrb[0].mxu0
        %461 = vmatprep.mubr.f32.mxu0 0.0
        %462 = vmatmul.mubr.f32.gmra.mrb[0].mxu0 %v272
        %v463 = vpop.f32.mrb[0].mxu0
        %v464 = vadd.f32 %v229, %v463
        %v465 = vpop.f32.mrb[0].mxu0
        %466 = vmatprep.mubr.f32.mxu0 0.0
        %467 = vmatmul.mubr.f32.gmra.mrb[0].mxu0 %v275
        %v468 = vpop.f32.mrb[0].mxu0
        %v469 = vadd.f32 %v229, %v468
        %v470 = vpop.f32.mrb[0].mxu0
        %471 = vmatprep.mubr.f32.mxu0 0.0
        %472 = vmatmul.mubr.f32.gmra.mrb[0].mxu0 %v278
        %v473 = vpop.f32.mrb[0].mxu0
        %v474 = vadd.f32 %v229, %v473
        %v475 = vpop.f32.mrb[0].mxu0
        %476 = vmatprep.mubr.f32.mxu0 0.0
        %477 = vmatmul.mubr.f32.gmra.mrb[0].mxu0 %v281
        %v478 = vpop.f32.mrb[0].mxu0
        %v479 = vadd.f32 %v229, %v478
        %v480 = vpop.f32.mrb[0].mxu0
        %481 = vmatprep.mubr.f32.mxu0 0.0
        %482 = vmatmul.mubr.f32.gmra.mrb[0].mxu0 %v284
        %v483 = vpop.f32.mrb[0].mxu0
        %v484 = vadd.f32 %v229, %v483
        %v485 = vpop.f32.mrb[0].mxu0
        %486 = vmatprep.mubr.f32.mxu0 0.0
        %487 = vmatmul.mubr.f32.gmra.mrb[0].mxu0 %v287
        %v488 = vpop.f32.mrb[0].mxu0
        %v489 = vadd.f32 %v229, %v488
        %v490 = vpop.f32.mrb[0].mxu0
        %491 = vmatprep.mubr.f32.mxu0 0.0
        %492 = vmatmul.mubr.f32.gmra.mrb[0].mxu0 %v290
        %v493 = vpop.f32.mrb[0].mxu0
        %v494 = vadd.f32 %v229, %v493
        %v495 = vpop.f32.mrb[0].mxu0
        %496 = vmatprep.mubr.f32.mxu0 0.0
        %497 = vmatmul.mubr.f32.gmra.mrb[0].mxu0 %v293
        %v498 = vpop.f32.mrb[0].mxu0
        %v499 = vadd.f32 %v229, %v498
        %v500 = vpop.f32.mrb[0].mxu0
        %501 = vmatprep.mubr.f32.mxu0 0.0
        %502 = vmatmul.mubr.f32.gmra.mrb[0].mxu0 %v296
        %v503 = vpop.f32.mrb[0].mxu0
        %v504 = vadd.f32 %v229, %v503
        %v505 = vpop.f32.mrb[0].mxu0
        %506 = vmatprep.mubr.f32.mxu0 0.0
        %507 = vmatmul.mubr.f32.gmra.mrb[0].mxu0 %v299
        %v508 = vpop.f32.mrb[0].mxu0
        %v509 = vadd.f32 %v229, %v508
        %v510 = vpop.f32.mrb[0].mxu0
        %511 = vmatprep.mubr.f32.mxu0 0.0
        %512 = vmatmul.mubr.f32.gmra.mrb[0].mxu0 %v302
        %v513 = vpop.f32.mrb[0].mxu0
        %v514 = vadd.f32 %v229, %v513
        %v515 = vpop.f32.mrb[0].mxu0
        %516 = vmatprep.mubr.f32.mxu0 0.0
        %517 = vmatmul.mubr.f32.gmra.mrb[0].mxu0 %v305
        %v518 = vpop.f32.mrb[0].mxu0
        %v519 = vadd.f32 %v229, %v518
        %v520 = vpop.f32.mrb[0].mxu0
        %521 = vmatprep.mubr.f32.mxu0 0.0
        %522 = vmatmul.mubr.f32.gmra.mrb[0].mxu0 %v308
        %v523 = vpop.f32.mrb[0].mxu0
        %v524 = vadd.f32 %v229, %v523
        %v525 = vpop.f32.mrb[0].mxu0
        %526 = vmatprep.mubr.f32.mxu0 0.0
        %527 = vmatmul.mubr.f32.gmra.mrb[0].mxu0 %v311
        %v528 = vpop.f32.mrb[0].mxu0
        %v529 = vadd.f32 %v229, %v528
        %v530 = vpop.f32.mrb[0].mxu0
        %531 = vmatprep.mubr.f32.mxu0 0.0
        %532 = vmatmul.mubr.f32.gmra.mrb[0].mxu0 %v314
        %v533 = vpop.f32.mrb[0].mxu0
        %v534 = vadd.f32 %v229, %v533
        %v535 = vpop.f32.mrb[0].mxu0
        %536 = vmatprep.mubr.f32.mxu0 0.0
        %537 = vmatmul.mubr.f32.gmra.mrb[0].mxu0 %v317
        %v538 = vpop.f32.mrb[0].mxu0
        %v539 = vadd.f32 %v229, %v538
        %v540 = vpop.f32.mrb[0].mxu0
        %541 = vmatprep.mubr.f32.mxu0 0.0
        %542 = vmatmul.mubr.f32.gmra.mrb[0].mxu0 %v320
        %v543 = vpop.f32.mrb[0].mxu0
        %v544 = vadd.f32 %v229, %v543
        %v545 = vpop.f32.mrb[0].mxu0
        %546 = vmatprep.mubr.f32.mxu0 0.0
        %547 = vmatmul.mubr.f32.gmra.mrb[0].mxu0 %v323
        %v548 = vpop.f32.mrb[0].mxu0
        %v549 = vadd.f32 %v229, %v548
        %v550 = vpop.f32.mrb[0].mxu0
        %551 = vmatprep.mubr.f32.mxu0 0.0
        %552 = vmatmul.mubr.f32.gmra.mrb[0].mxu0 %v326
        %v553 = vpop.f32.mrb[0].mxu0
        %v554 = vadd.f32 %v229, %v553
        %v555 = vpop.f32.mrb[0].mxu0
        %556 = vdwg.mxu0
        %v557 = vmax.f32 %v399, 0.0
        %v558 = vmax.f32 %v404, 0.0
        %v559 = vmax.f32 %v409, 0.0
        %v560 = vmax.f32 %v414, 0.0
        %v561 = vmax.f32 %v419, 0.0
        %v562 = vmax.f32 %v424, 0.0
        %v563 = vmax.f32 %v429, 0.0
        %v564 = vmax.f32 %v434, 0.0
        %v565 = vmax.f32 %v439, 0.0
        %v566 = vmax.f32 %v444, 0.0
        %v567 = vmax.f32 %v449, 0.0
        %v568 = vmax.f32 %v454, 0.0
        %v569 = vmax.f32 %v459, 0.0
        %v570 = vmax.f32 %v464, 0.0
        %v571 = vmax.f32 %v469, 0.0
        %v572 = vmax.f32 %v474, 0.0
        %v573 = vmax.f32 %v479, 0.0
        %v574 = vmax.f32 %v484, 0.0
        %v575 = vmax.f32 %v489, 0.0
        %v576 = vmax.f32 %v494, 0.0
        %v577 = vmax.f32 %v499, 0.0
        %v578 = vmax.f32 %v504, 0.0
        %v579 = vmax.f32 %v509, 0.0
        %v580 = vmax.f32 %v514, 0.0
        %v581 = vmax.f32 %v519, 0.0
        %v582 = vmax.f32 %v524, 0.0
        %v583 = vmax.f32 %v529, 0.0
        %v584 = vmax.f32 %v534, 0.0
        %v585 = vmax.f32 %v539, 0.0
        %v586 = vmax.f32 %v544, 0.0
        %v587 = vmax.f32 %v549, 0.0
        %v588 = vmax.f32 %v554, 0.0
        %vm589 = vcmask 64512
        %590 = vst.msk [vmem:[%s185] sm:$0xff] %vm589, %v557
        %591 = vst.msk [vmem:[%s185 + $0x8] sm:$0xff] %vm589, %v558
        %592 = vst.msk [vmem:[%s185 + $0x10] sm:$0xff] %vm589, %v559
        %593 = vst.msk [vmem:[%s185 + $0x18] sm:$0xff] %vm589, %v560
        %594 = vst.msk [vmem:[%s185 + $0x20] sm:$0xff] %vm589, %v561
        %595 = vst.msk [vmem:[%s185 + $0x28] sm:$0xff] %vm589, %v562
        %596 = vst.msk [vmem:[%s185 + $0x30] sm:$0xff] %vm589, %v563
        %597 = vst.msk [vmem:[%s185 + $0x38] sm:$0xff] %vm589, %v564
        %598 = vst.msk [vmem:[%s185 + $0x40] sm:$0xff] %vm589, %v565
        %599 = vst.msk [vmem:[%s185 + $0x48] sm:$0xff] %vm589, %v566
        %600 = vst.msk [vmem:[%s185 + $0x50] sm:$0xff] %vm589, %v567
        %601 = vst.msk [vmem:[%s185 + $0x58] sm:$0xff] %vm589, %v568
        %602 = vst.msk [vmem:[%s185 + $0x60] sm:$0xff] %vm589, %v569
        %603 = vst.msk [vmem:[%s185 + $0x68] sm:$0xff] %vm589, %v570
        %604 = vst.msk [vmem:[%s185 + $0x70] sm:$0xff] %vm589, %v571
        %605 = vst.msk [vmem:[%s185 + $0x78] sm:$0xff] %vm589, %v572
        %606 = vst.msk [vmem:[%s185 + $0x80] sm:$0xff] %vm589, %v573
        %607 = vst.msk [vmem:[%s185 + $0x88] sm:$0xff] %vm589, %v574
        %608 = vst.msk [vmem:[%s185 + $0x90] sm:$0xff] %vm589, %v575
        %609 = vst.msk [vmem:[%s185 + $0x98] sm:$0xff] %vm589, %v576
        %610 = vst.msk [vmem:[%s185 + $0xa0] sm:$0xff] %vm589, %v577
        %611 = vst.msk [vmem:[%s185 + $0xa8] sm:$0xff] %vm589, %v578
        %612 = vst.msk [vmem:[%s185 + $0xb0] sm:$0xff] %vm589, %v579
        %613 = vst.msk [vmem:[%s185 + $0xb8] sm:$0xff] %vm589, %v580
        %614 = vst.msk [vmem:[%s185 + $0xc0] sm:$0xff] %vm589, %v581
        %615 = vst.msk [vmem:[%s185 + $0xc8] sm:$0xff] %vm589, %v582
        %616 = vst.msk [vmem:[%s185 + $0xd0] sm:$0xff] %vm589, %v583
        %617 = vst.msk [vmem:[%s185 + $0xd8] sm:$0xff] %vm589, %v584
        %618 = vst.msk [vmem:[%s185 + $0xe0] sm:$0xff] %vm589, %v585
        %619 = vst.msk [vmem:[%s185 + $0xe8] sm:$0xff] %vm589, %v586
        %620 = vst.msk [vmem:[%s185 + $0xf0] sm:$0xff] %vm589, %v587
        %621 = vst.msk [vmem:[%s185 + $0xf8] sm:$0xff] %vm589, %v588
        %s622 = smul.u32 32, %s15
        %p623 = scmp.lt.s32.totalorder %s622, 63
        %s624 = scalar_select %p623, %s622, 63
        %s625 = smul.addr %s624, 8
        %s626 = scalar_lea.vmem %s3, %s625
        // Predicated region
        $region37: #{dueling_net_forward.2} parent=31 // pred_check
          %p627 = pneg %p101
        $region38: #{dueling_net_forward.2} parent=31 // pred_check_branch
          %629 = sbr.rel (%p627) target = $region40
        $region39: #{dueling_net_forward.2} parent=31 // pred_region
          %s630 = smul.u32 32, %s15
        $region40: #{dueling_net_forward.2} parent=31 // pred_fallthru
          _
      $region32: #{dueling_net_forward.2} parent=5 // pred_fallthru
        _
      %p631 = scmp.le.s32.totalorder 2, %s10
      // Predicated region
      $region41: #{dueling_net_forward.2} parent=5 // pred_check
        %p632 = pneg %p631
      $region42: #{dueling_net_forward.2} parent=5 // pred_check_branch
        %634 = sbr.rel (%p632) target = $region44
      $region43: #{dueling_net_forward.2} parent=5 // pred_region
        %s635 = ssub.s32 %s10, 2
        // Predicated region
        $region45: #{dueling_net_forward.2} parent=43 // pred_check
          %p636 = pneg %p107
        $region46: #{dueling_net_forward.2} parent=43 // pred_check_branch
          %638 = sbr.rel (%p636) target = $region48
        $region47: #{dueling_net_forward.2} parent=43 // pred_region
          %s639 = smul.u32 32, %s16
          %p640 = scmp.lt.s32.totalorder %s639, 63
          %s641 = scalar_select %p640, %s639, 63
          %s642 = smul.addr %s641, 8
          %s643 = scalar_lea.vmem %s3, %s642
        $region48: #{dueling_net_forward.2} parent=43 // pred_fallthru
          _
      $region44: #{dueling_net_forward.2} parent=5 // pred_fallthru
        _
    $region6: #{dueling_net_forward.2} parent=1 // loop_footer
      %s14 = sadd.s32 1, %s10
    $region7: #{dueling_net_forward.2} parent=1 // loop_footer_branch
      %9 = sbr.rel target = $region3
    $region8: #{dueling_net_forward.2} parent=1 // loop_exit
      _
    %644 = vsyncpa [#allocation3], 1
    %s645 = scalar_lea.sflag [#allocation3], 1
    %646 = vsyncpa %s645, 1

// kernel: dueling_net_forward.3
$region0: #{dueling_net_forward.3}
  #allocation0 [shape = 'u32[]', space=smem, size = 0x4, offset = 0x4, fixed_abs, tag = 'smem constant byte address 0x4 - core index']
  #allocation1 [shape = 'u32[144,128]{1,0:T(1,128)}', space=vmem, size = 0x12000, scoped, tag = 'internal scratch']
  #allocation2 [shape = 'f32[2,1024]{1,0:T(2,128)}', space=vmem, size = 0x2000, scoped, tag = 'scratch operand']
  #allocation3 [shape = 'f32[1,1]{1,0:T(1,128)S(1)}', space=vmem, size = 0x200, scoped, tag = 'scoped memory for dueling_net_forward.3']
  %s0 = inlined_call_operand.vmem [shape: f32[2,2048], index: 0, kind: input, shape index: {}]
  %s1 = inlined_call_operand.vmem [shape: f32[2,3], index: 1, kind: input, shape index: {}]
  %s2 = inlined_call_operand.vmem [shape: bf16[2048,1024], index: 2, kind: input, shape index: {}]
  %s3 = inlined_call_operand.vmem [shape: bf16[3,1024], index: 3, kind: input, shape index: {}]
  %s4 = inlined_call_operand.vmem [shape: f32[1,1024], index: 4, kind: input, shape index: {}]
  %s5 = inlined_call_operand.hbm [shape: bf16[512,256], index: 5, kind: input, shape index: {}]
  %s6 = inlined_call_operand.vmem [shape: f32[1,256], index: 6, kind: input, shape index: {}]
  %s7 = inlined_call_operand.vmem [shape: bf16[256,1], index: 7, kind: input, shape index: {}]
  %s8 = inlined_call_operand.<no memory space> [shape: f32[1,1], index: 8, kind: input, shape index: {}]
  %s9 = inlined_call_operand.hbm [shape: bf16[512,256], index: 9, kind: input, shape index: {}]
  %s10 = inlined_call_operand.vmem [shape: f32[1,256], index: 10, kind: input, shape index: {}]
  %s11 = inlined_call_operand.vmem [shape: bf16[256,5], index: 11, kind: input, shape index: {}]
  %s12 = inlined_call_operand.vmem [shape: f32[1,5], index: 12, kind: input, shape index: {}]
  %s13 = inlined_call_operand.hbm [shape: f32[2,5], index: 13, kind: output, shape index: {}]
  %s14 = sld [smem:[#allocation0]]
  $region101: #{dueling_net_forward.3} parent=0
    _
  %s16 = ssub.s32 1, %s14
  %s17 = scalar_select 0, %s16, %s14
  %v18 = vstv %s8
  %19 = vst [vmem:[#allocation3] sm:$0x1] %v18
  $region1: #{dueling_net_forward.3} parent=0
    #allocation4 [shape = 'u8[262144]{0}', space=vmem, size = 0x40000, scoped, tag = 'input window, operand 5, single buffered']
    #allocation5 [shape = 's32[2]{0}', space=sflag, size = 0x8, scoped, tag = 'scoped memory for dueling_net_forward.3']
    #allocation6 [shape = 's32[2]{0}', space=sflag, size = 0x8, scoped, tag = 'scoped memory for dueling_net_forward.3']
    #allocation7 [shape = 'u8[262144]{0}', space=vmem, size = 0x40000, scoped, tag = 'input window, operand 9, single buffered']
    #allocation8 [shape = 's32[1]{0}', space=sflag, size = 0x4, scoped, tag = 'scoped memory for dueling_net_forward.3']
    #allocation9 [shape = 'u8[1024]{0}', space=vmem, size = 0x400, scoped, tag = 'output window, operand 0, single buffered']
    %20 = vsyncpa [#allocation5], 0
    %21 = vsyncpa [#allocation8], 0
    %22 = vsyncpa [#allocation6], 0
    loop: start=0, step=1, limit=6
    $region2: #{dueling_net_forward.3} parent=1 // loop_pre_header
      _
    $region3: #{dueling_net_forward.3} parent=1 // loop_header
      %s24 = sphi 0, %s28
      %p25 = scmp.ge.s32.totalorder %s24, 6
      %s34 = sphi 0, %s36
      %s37 = sphi 0, %s34
      %s38 = sphi 0, %s37
      %s54 = sphi 0, %s38
      %s58 = sphi 0, %s58
      %s60 = sphi 0, %s58
      %s61 = sphi 0, %s60
      %s75 = sphi 0, %s61
      %s81 = sphi 0, %s83
      %s84 = sphi 0, %s81
      %s85 = sphi 0, %s84
      %s101 = sphi 0, %s85
      %s105 = sphi 0, %s105
      %s107 = sphi 0, %s105
      %s108 = sphi 0, %s107
      %s122 = sphi 0, %s108
      %s126 = sphi 0, %s126
      %s128 = sphi 0, %s126
      %s129 = sphi 0, %s128
      %s143 = sphi 0, %s129
      %s147 = sphi 0, %s147
      %s149 = sphi 0, %s147
      %s150 = sphi 0, %s149
      %s164 = sphi 0, %s150
      %s168 = sphi 0, %s168
      %s170 = sphi 0, %s168
      %s171 = sphi 0, %s170
      %s185 = sphi 0, %s171
      %s189 = sphi 0, %s189
      %s191 = sphi 0, %s189
      %s192 = sphi 0, %s191
      %s206 = sphi 0, %s192
      %s210 = sphi 0, %s210
      %s212 = sphi 0, %s210
      %s213 = sphi 0, %s212
      %s227 = sphi 0, %s213
      %s231 = sphi 0, %s231
      %s233 = sphi 0, %s231
      %s234 = sphi 0, %s233
      %s248 = sphi 0, %s234
      %s252 = sphi 0, %s252
      %s254 = sphi 0, %s252
      %s255 = sphi 0, %s254
      %s269 = sphi 0, %s255
      %s273 = sphi 0, %s273
      %s275 = sphi 0, %s273
      %s276 = sphi 0, %s275
      %s290 = sphi 0, %s276
      %s294 = sphi 0, %s294
      %s296 = sphi 0, %s294
      %s297 = sphi 0, %s296
      %s311 = sphi 0, %s297
      %s315 = sphi 0, %s315
      %s317 = sphi 0, %s315
      %s318 = sphi 0, %s317
      %s332 = sphi 0, %s318
    $region4: #{dueling_net_forward.3} parent=1 // loop_header_branch
      %27 = sbr.rel (%p25) target = $region8
    $region5: #{dueling_net_forward.3} parent=1 // loop_body
      %s29 = ssub.s32 %s24, 1
      %s30 = ssub.s32 %s24, 2
      %s31 = sadd.s32 %s24, 1
      %s32 = ssub.s32 %s24, %s31
      %p33 = scmp.eq.s32.totalorder %s32, 0
      %s35 = sadd.s32 %s34, 1
      %s36 = scalar_select %p33, %s34, %s35
      %p39 = pneg %p33
      %p40 = scmp.eq.s32.totalorder %s24, 3
      %p41 = por %p39, %p40
      %p42 = scmp.ne.s32.totalorder %s34, %s37
      %p43 = scmp.eq.s32.totalorder %s24, 0
      %p44 = por %p42, %p43
      %p45 = scmp.ne.s32.totalorder %s34, %s37
      %p46 = scmp.eq.s32.totalorder %s29, 3
      %p47 = por %p45, %p46
      %p48 = scmp.ne.s32.totalorder %s37, %s38
      %p49 = scmp.eq.s32.totalorder %s29, 0
      %p50 = por %p48, %p49
      %p51 = scmp.ne.s32.totalorder %s37, %s38
      %p52 = scmp.eq.s32.totalorder %s30, 3
      %p53 = por %p51, %p52
      %p55 = scmp.ne.s32.totalorder %s38, %s54
      %p56 = scmp.eq.s32.totalorder %s30, 0
      %p57 = por %p55, %p56
      %s59 = sadd.s32 %s58, 1
      %p62 = scmp.eq.s32.totalorder %s24, 3
      %p63 = scmp.ne.s32.totalorder %s58, %s60
      %p64 = scmp.eq.s32.totalorder %s24, 0
      %p65 = por %p63, %p64
      %p66 = scmp.ne.s32.totalorder %s58, %s60
      %p67 = scmp.eq.s32.totalorder %s29, 3
      %p68 = por %p66, %p67
      %p69 = scmp.ne.s32.totalorder %s60, %s61
      %p70 = scmp.eq.s32.totalorder %s29, 0
      %p71 = por %p69, %p70
      %p72 = scmp.ne.s32.totalorder %s60, %s61
      %p73 = scmp.eq.s32.totalorder %s30, 3
      %p74 = por %p72, %p73
      %p76 = scmp.ne.s32.totalorder %s61, %s75
      %p77 = scmp.eq.s32.totalorder %s30, 0
      %p78 = por %p76, %p77
      %s79 = ssub.s32 %s24, %s31
      %p80 = scmp.eq.s32.totalorder %s79, 0
      %s82 = sadd.s32 %s81, 1
      %s83 = scalar_select %p80, %s81, %s82
      %p86 = pneg %p80
      %p87 = scmp.eq.s32.totalorder %s24, 3
      %p88 = por %p86, %p87
      %p89 = scmp.ne.s32.totalorder %s81, %s84
      %p90 = scmp.eq.s32.totalorder %s24, 0
      %p91 = por %p89, %p90
      %p92 = scmp.ne.s32.totalorder %s81, %s84
      %p93 = scmp.eq.s32.totalorder %s29, 3
      %p94 = por %p92, %p93
      %p95 = scmp.ne.s32.totalorder %s84, %s85
      %p96 = scmp.eq.s32.totalorder %s29, 0
      %p97 = por %p95, %p96
      %p98 = scmp.ne.s32.totalorder %s84, %s85
      %p99 = scmp.eq.s32.totalorder %s30, 3
      %p100 = por %p98, %p99
      %p102 = scmp.ne.s32.totalorder %s85, %s101
      %p103 = scmp.eq.s32.totalorder %s30, 0
      %p104 = por %p102, %p103
      %s106 = sadd.s32 %s105, 1
      %p109 = scmp.eq.s32.totalorder %s24, 3
      %p110 = scmp.ne.s32.totalorder %s105, %s107
      %p111 = scmp.eq.s32.totalorder %s24, 0
      %p112 = por %p110, %p111
      %p113 = scmp.ne.s32.totalorder %s105, %s107
      %p114 = scmp.eq.s32.totalorder %s29, 3
      %p115 = por %p113, %p114
      %p116 = scmp.ne.s32.totalorder %s107, %s108
      %p117 = scmp.eq.s32.totalorder %s29, 0
      %p118 = por %p116, %p117
      %p119 = scmp.ne.s32.totalorder %s107, %s108
      %p120 = scmp.eq.s32.totalorder %s30, 3
      %p121 = por %p119, %p120
      %p123 = scmp.ne.s32.totalorder %s108, %s122
      %p124 = scmp.eq.s32.totalorder %s30, 0
      %p125 = por %p123, %p124
      %s127 = sadd.s32 %s126, 1
      %p130 = scmp.eq.s32.totalorder %s24, 3
      %p131 = scmp.ne.s32.totalorder %s126, %s128
      %p132 = scmp.eq.s32.totalorder %s24, 0
      %p133 = por %p131, %p132
      %p134 = scmp.ne.s32.totalorder %s126, %s128
      %p135 = scmp.eq.s32.totalorder %s29, 3
      %p136 = por %p134, %p135
      %p137 = scmp.ne.s32.totalorder %s128, %s129
      %p138 = scmp.eq.s32.totalorder %s29, 0
      %p139 = por %p137, %p138
      %p140 = scmp.ne.s32.totalorder %s128, %s129
      %p141 = scmp.eq.s32.totalorder %s30, 3
      %p142 = por %p140, %p141
      %p144 = scmp.ne.s32.totalorder %s129, %s143
      %p145 = scmp.eq.s32.totalorder %s30, 0
      %p146 = por %p144, %p145
      %s148 = sadd.s32 %s147, 1
      %p151 = scmp.eq.s32.totalorder %s24, 3
      %p152 = scmp.ne.s32.totalorder %s147, %s149
      %p153 = scmp.eq.s32.totalorder %s24, 0
      %p154 = por %p152, %p153
      %p155 = scmp.ne.s32.totalorder %s147, %s149
      %p156 = scmp.eq.s32.totalorder %s29, 3
      %p157 = por %p155, %p156
      %p158 = scmp.ne.s32.totalorder %s149, %s150
      %p159 = scmp.eq.s32.totalorder %s29, 0
      %p160 = por %p158, %p159
      %p161 = scmp.ne.s32.totalorder %s149, %s150
      %p162 = scmp.eq.s32.totalorder %s30, 3
      %p163 = por %p161, %p162
      %p165 = scmp.ne.s32.totalorder %s150, %s164
      %p166 = scmp.eq.s32.totalorder %s30, 0
      %p167 = por %p165, %p166
      %s169 = sadd.s32 %s168, 1
      %p172 = scmp.eq.s32.totalorder %s24, 3
      %p173 = scmp.ne.s32.totalorder %s168, %s170
      %p174 = scmp.eq.s32.totalorder %s24, 0
      %p175 = por %p173, %p174
      %p176 = scmp.ne.s32.totalorder %s168, %s170
      %p177 = scmp.eq.s32.totalorder %s29, 3
      %p178 = por %p176, %p177
      %p179 = scmp.ne.s32.totalorder %s170, %s171
      %p180 = scmp.eq.s32.totalorder %s29, 0
      %p181 = por %p179, %p180
      %p182 = scmp.ne.s32.totalorder %s170, %s171
      %p183 = scmp.eq.s32.totalorder %s30, 3
      %p184 = por %p182, %p183
      %p186 = scmp.ne.s32.totalorder %s171, %s185
      %p187 = scmp.eq.s32.totalorder %s30, 0
      %p188 = por %p186, %p187
      %s190 = sadd.s32 %s189, 1
      %p193 = scmp.eq.s32.totalorder %s24, 3
      %p194 = scmp.ne.s32.totalorder %s189, %s191
      %p195 = scmp.eq.s32.totalorder %s24, 0
      %p196 = por %p194, %p195
      %p197 = scmp.ne.s32.totalorder %s189, %s191
      %p198 = scmp.eq.s32.totalorder %s29, 3
      %p199 = por %p197, %p198
      %p200 = scmp.ne.s32.totalorder %s191, %s192
      %p201 = scmp.eq.s32.totalorder %s29, 0
      %p202 = por %p200, %p201
      %p203 = scmp.ne.s32.totalorder %s191, %s192
      %p204 = scmp.eq.s32.totalorder %s30, 3
      %p205 = por %p203, %p204
      %p207 = scmp.ne.s32.totalorder %s192, %s206
      %p208 = scmp.eq.s32.totalorder %s30, 0
      %p209 = por %p207, %p208
      %s211 = sadd.s32 %s210, 1
      %p214 = scmp.eq.s32.totalorder %s24, 3
      %p215 = scmp.ne.s32.totalorder %s210, %s212
      %p216 = scmp.eq.s32.totalorder %s24, 0
      %p217 = por %p215, %p216
      %p218 = scmp.ne.s32.totalorder %s210, %s212
      %p219 = scmp.eq.s32.totalorder %s29, 3
      %p220 = por %p218, %p219
      %p221 = scmp.ne.s32.totalorder %s212, %s213
      %p222 = scmp.eq.s32.totalorder %s29, 0
      %p223 = por %p221, %p222
      %p224 = scmp.ne.s32.totalorder %s212, %s213
      %p225 = scmp.eq.s32.totalorder %s30, 3
      %p226 = por %p224, %p225
      %p228 = scmp.ne.s32.totalorder %s213, %s227
      %p229 = scmp.eq.s32.totalorder %s30, 0
      %p230 = por %p228, %p229
      %s232 = sadd.s32 %s231, 1
      %p235 = scmp.eq.s32.totalorder %s24, 3
      %p236 = scmp.ne.s32.totalorder %s231, %s233
      %p237 = scmp.eq.s32.totalorder %s24, 0
      %p238 = por %p236, %p237
      %p239 = scmp.ne.s32.totalorder %s231, %s233
      %p240 = scmp.eq.s32.totalorder %s29, 3
      %p241 = por %p239, %p240
      %p242 = scmp.ne.s32.totalorder %s233, %s234
      %p243 = scmp.eq.s32.totalorder %s29, 0
      %p244 = por %p242, %p243
      %p245 = scmp.ne.s32.totalorder %s233, %s234
      %p246 = scmp.eq.s32.totalorder %s30, 3
      %p247 = por %p245, %p246
      %p249 = scmp.ne.s32.totalorder %s234, %s248
      %p250 = scmp.eq.s32.totalorder %s30, 0
      %p251 = por %p249, %p250
      %s253 = sadd.s32 %s252, 1
      %p256 = scmp.eq.s32.totalorder %s24, 3
      %p257 = scmp.ne.s32.totalorder %s252, %s254
      %p258 = scmp.eq.s32.totalorder %s24, 0
      %p259 = por %p257, %p258
      %p260 = scmp.ne.s32.totalorder %s252, %s254
      %p261 = scmp.eq.s32.totalorder %s29, 3
      %p262 = por %p260, %p261
      %p263 = scmp.ne.s32.totalorder %s254, %s255
      %p264 = scmp.eq.s32.totalorder %s29, 0
      %p265 = por %p263, %p264
      %p266 = scmp.ne.s32.totalorder %s254, %s255
      %p267 = scmp.eq.s32.totalorder %s30, 3
      %p268 = por %p266, %p267
      %p270 = scmp.ne.s32.totalorder %s255, %s269
      %p271 = scmp.eq.s32.totalorder %s30, 0
      %p272 = por %p270, %p271
      %s274 = sadd.s32 %s273, 1
      %p277 = scmp.eq.s32.totalorder %s24, 3
      %p278 = scmp.ne.s32.totalorder %s273, %s275
      %p279 = scmp.eq.s32.totalorder %s24, 0
      %p280 = por %p278, %p279
      %p281 = scmp.ne.s32.totalorder %s273, %s275
      %p282 = scmp.eq.s32.totalorder %s29, 3
      %p283 = por %p281, %p282
      %p284 = scmp.ne.s32.totalorder %s275, %s276
      %p285 = scmp.eq.s32.totalorder %s29, 0
      %p286 = por %p284, %p285
      %p287 = scmp.ne.s32.totalorder %s275, %s276
      %p288 = scmp.eq.s32.totalorder %s30, 3
      %p289 = por %p287, %p288
      %p291 = scmp.ne.s32.totalorder %s276, %s290
      %p292 = scmp.eq.s32.totalorder %s30, 0
      %p293 = por %p291, %p292
      %s295 = sadd.s32 %s294, 1
      %p298 = scmp.eq.s32.totalorder %s24, 3
      %p299 = scmp.ne.s32.totalorder %s294, %s296
      %p300 = scmp.eq.s32.totalorder %s24, 0
      %p301 = por %p299, %p300
      %p302 = scmp.ne.s32.totalorder %s294, %s296
      %p303 = scmp.eq.s32.totalorder %s29, 3
      %p304 = por %p302, %p303
      %p305 = scmp.ne.s32.totalorder %s296, %s297
      %p306 = scmp.eq.s32.totalorder %s29, 0
      %p307 = por %p305, %p306
      %p308 = scmp.ne.s32.totalorder %s296, %s297
      %p309 = scmp.eq.s32.totalorder %s30, 3
      %p310 = por %p308, %p309
      %p312 = scmp.ne.s32.totalorder %s297, %s311
      %p313 = scmp.eq.s32.totalorder %s30, 0
      %p314 = por %p312, %p313
      %s316 = sadd.s32 %s315, 1
      %p319 = scmp.eq.s32.totalorder %s24, 3
      %p320 = scmp.ne.s32.totalorder %s315, %s317
      %p321 = scmp.eq.s32.totalorder %s24, 0
      %p322 = por %p320, %p321
      %p323 = scmp.ne.s32.totalorder %s315, %s317
      %p324 = scmp.eq.s32.totalorder %s29, 3
      %p325 = por %p323, %p324
      %p326 = scmp.ne.s32.totalorder %s317, %s318
      %p327 = scmp.eq.s32.totalorder %s29, 0
      %p328 = por %p326, %p327
      %p329 = scmp.ne.s32.totalorder %s317, %s318
      %p330 = scmp.eq.s32.totalorder %s30, 3
      %p331 = por %p329, %p330
      %p333 = scmp.ne.s32.totalorder %s318, %s332
      %p334 = scmp.eq.s32.totalorder %s30, 0
      %p335 = por %p333, %p334
      %p336 = scmp.le.s32.totalorder 1, %s24
      %p337 = scmp.lt.s32.totalorder %s24, 5
      %p338 = pnand %p336, %p337
      %p339 = pneg %p338
      // Predicated region
      $region9: #{dueling_net_forward.3} parent=5 // pred_check
        _
      $region10: #{dueling_net_forward.3} parent=5 // pred_check_branch
        %341 = sbr.rel (%p338) target = $region12
      $region11: #{dueling_net_forward.3} parent=5 // pred_region
        %s342 = ssub.s32 %s24, 1
        // Predicated region
        $region13: #{dueling_net_forward.3} parent=11 // pred_check
          %p343 = pneg %p71
        $region14: #{dueling_net_forward.3} parent=11 // pred_check_branch
          %345 = sbr.rel (%p343) target = $region16
        $region15: #{dueling_net_forward.3} parent=11 // pred_region
          _
        $region16: #{dueling_net_forward.3} parent=11 // pred_fallthru
          _
        // Predicated region
        $region17: #{dueling_net_forward.3} parent=11 // pred_check
          %p346 = pneg %p118
        $region18: #{dueling_net_forward.3} parent=11 // pred_check_branch
          %348 = sbr.rel (%p346) target = $region20
        $region19: #{dueling_net_forward.3} parent=11 // pred_region
          _
        $region20: #{dueling_net_forward.3} parent=11 // pred_fallthru
          _
        // Predicated region
        $region21: #{dueling_net_forward.3} parent=11 // pred_check
          %p349 = pneg %p139
        $region22: #{dueling_net_forward.3} parent=11 // pred_check_branch
          %351 = sbr.rel (%p349) target = $region24
        $region23: #{dueling_net_forward.3} parent=11 // pred_region
          _
        $region24: #{dueling_net_forward.3} parent=11 // pred_fallthru
          _
        // Predicated region
        $region25: #{dueling_net_forward.3} parent=11 // pred_check
          %p352 = pneg %p160
        $region26: #{dueling_net_forward.3} parent=11 // pred_check_branch
          %354 = sbr.rel (%p352) target = $region28
        $region27: #{dueling_net_forward.3} parent=11 // pred_region
          %s356 = ssub.s32 8192, 8192
          %357 = vsyncadd [#allocation5], %s356
          %s358 = sshll.u32 [#allocation4], 4
          %s359 = int_to_ptr.vmem [resolvable:$true] %s358
          %364 = dma.hbm_to_vmem [thread:$0]  %s5, 8192, %s359, [#allocation5], 128, 128, 8
        $region28: #{dueling_net_forward.3} parent=11 // pred_fallthru
          _
        // Predicated region
        $region29: #{dueling_net_forward.3} parent=11 // pred_check
          %p365 = pneg %p181
        $region30: #{dueling_net_forward.3} parent=11 // pred_check_branch
          %367 = sbr.rel (%p365) target = $region32
        $region31: #{dueling_net_forward.3} parent=11 // pred_region
          _
        $region32: #{dueling_net_forward.3} parent=11 // pred_fallthru
          _
        // Predicated region
        $region33: #{dueling_net_forward.3} parent=11 // pred_check
          %p368 = pneg %p202
        $region34: #{dueling_net_forward.3} parent=11 // pred_check_branch
          %370 = sbr.rel (%p368) target = $region36
        $region35: #{dueling_net_forward.3} parent=11 // pred_region
          _
        $region36: #{dueling_net_forward.3} parent=11 // pred_fallthru
          _
        // Predicated region
        $region37: #{dueling_net_forward.3} parent=11 // pred_check
          %p371 = pneg %p223
        $region38: #{dueling_net_forward.3} parent=11 // pred_check_branch
          %373 = sbr.rel (%p371) target = $region40
        $region39: #{dueling_net_forward.3} parent=11 // pred_region
          _
        $region40: #{dueling_net_forward.3} parent=11 // pred_fallthru
          _
        // Predicated region
        $region41: #{dueling_net_forward.3} parent=11 // pred_check
          %p374 = pneg %p244
        $region42: #{dueling_net_forward.3} parent=11 // pred_check_branch
          %376 = sbr.rel (%p374) target = $region44
        $region43: #{dueling_net_forward.3} parent=11 // pred_region
          %s378 = ssub.s32 8192, 8192
          %379 = vsyncadd [#allocation8], %s378
          %s380 = sshll.u32 [#allocation7], 4
          %s381 = int_to_ptr.vmem [resolvable:$true] %s380
          %386 = dma.hbm_to_vmem [thread:$0]  %s9, 8192, %s381, [#allocation8], 128, 128, 8
        $region44: #{dueling_net_forward.3} parent=11 // pred_fallthru
          _
        // Predicated region
        $region45: #{dueling_net_forward.3} parent=11 // pred_check
          %p387 = pneg %p265
        $region46: #{dueling_net_forward.3} parent=11 // pred_check_branch
          %389 = sbr.rel (%p387) target = $region48
        $region47: #{dueling_net_forward.3} parent=11 // pred_region
          _
        $region48: #{dueling_net_forward.3} parent=11 // pred_fallthru
          _
        // Predicated region
        $region49: #{dueling_net_forward.3} parent=11 // pred_check
          %p390 = pneg %p286
        $region50: #{dueling_net_forward.3} parent=11 // pred_check_branch
          %392 = sbr.rel (%p390) target = $region52
        $region51: #{dueling_net_forward.3} parent=11 // pred_region
          _
        $region52: #{dueling_net_forward.3} parent=11 // pred_fallthru
          _
        // Predicated region
        $region53: #{dueling_net_forward.3} parent=11 // pred_check
          %p393 = pneg %p307
        $region54: #{dueling_net_forward.3} parent=11 // pred_check_branch
          %395 = sbr.rel (%p393) target = $region56
        $region55: #{dueling_net_forward.3} parent=11 // pred_region
          _
        $region56: #{dueling_net_forward.3} parent=11 // pred_fallthru
          _
      $region12: #{dueling_net_forward.3} parent=5 // pred_fallthru
        _
      %p396 = scmp.lt.s32.totalorder %s24, 4
      // Predicated region
      $region57: #{dueling_net_forward.3} parent=5 // pred_check
        %p397 = pneg %p396
      $region58: #{dueling_net_forward.3} parent=5 // pred_check_branch
        %399 = sbr.rel (%p397) target = $region60
      $region59: #{dueling_net_forward.3} parent=5 // pred_region
        // Predicated region
        $region61: #{dueling_net_forward.3} parent=59 // pred_check
          %p400 = pneg %p44
        $region62: #{dueling_net_forward.3} parent=59 // pred_check_branch
          %402 = sbr.rel (%p400) target = $region64
        $region63: #{dueling_net_forward.3} parent=59 // pred_region
          %s403 = smul.u32 4, %s24
          %p404 = scmp.lt.s32.totalorder %s403, 15
          %s405 = scalar_select %p404, %s403, 15
          %s406 = smul.addr %s405, 2
          %s407 = scalar_lea.vmem %s0, %s406
          %s408 = smul.u32 4, %s24
        $region64: #{dueling_net_forward.3} parent=59 // pred_fallthru
          _
        // Predicated region
        $region65: #{dueling_net_forward.3} parent=59 // pred_check
          %p409 = pneg %p91
        $region66: #{dueling_net_forward.3} parent=59 // pred_check_branch
          %411 = sbr.rel (%p409) target = $region68
        $region67: #{dueling_net_forward.3} parent=59 // pred_region
          %s412 = smul.u32 64, %s24
          %p413 = scmp.lt.s32.totalorder %s412, 255
          %s414 = scalar_select %p413, %s412, 255
          %s415 = smul.addr %s414, 8
          %s416 = smul.addr %s415, 4
          %s417 = scalar_lea.vmem %s2, %s416
          %s418 = smul.u32 64, %s24
        $region68: #{dueling_net_forward.3} parent=59 // pred_fallthru
          _
      $region60: #{dueling_net_forward.3} parent=5 // pred_fallthru
        _
      %p419 = scmp.le.s32.totalorder 1, %s24
      %p420 = scmp.lt.s32.totalorder %s24, 5
      %p421 = pnand %p419, %p420
      %p422 = pneg %p421
      // Predicated region
      $region69: #{dueling_net_forward.3} parent=5 // pred_check
        _
      $region70: #{dueling_net_forward.3} parent=5 // pred_check_branch
        %424 = sbr.rel (%p421) target = $region72
      $region71: #{dueling_net_forward.3} parent=5 // pred_region
        %s425 = ssub.s32 %s24, 1
        // Predicated region
        $region73: #{dueling_net_forward.3} parent=71 // pred_check
          %p426 = pneg %p160
        $region74: #{dueling_net_forward.3} parent=71 // pred_check_branch
          %428 = sbr.rel (%p426) target = $region76
        $region75: #{dueling_net_forward.3} parent=71 // pred_region
          %429 = dma.done [#allocation5], 8192
        $region76: #{dueling_net_forward.3} parent=71 // pred_fallthru
          _
        // Predicated region
        $region77: #{dueling_net_forward.3} parent=71 // pred_check
          %p430 = pneg %p244
        $region78: #{dueling_net_forward.3} parent=71 // pred_check_branch
          %432 = sbr.rel (%p430) target = $region80
        $region79: #{dueling_net_forward.3} parent=71 // pred_region
          %433 = dma.done [#allocation8], 8192
        $region80: #{dueling_net_forward.3} parent=71 // pred_fallthru
          _
        %s434 = smul.u32 4, %s29
        %p435 = scmp.lt.s32.totalorder %s434, 15
        %s436 = scalar_select %p435, %s434, 15
        %s437 = smul.addr %s436, 2
        %s438 = scalar_lea.vmem %s0, %s437
        %p439 = pneg %p50
        %p440 = pneg %p47
        %p441 = pneg %p71
        %p442 = pneg %p68
        %s443 = smul.u32 64, %s29
        %p444 = scmp.lt.s32.totalorder %s443, 255
        %s445 = scalar_select %p444, %s443, 255
        %s446 = smul.addr %s445, 8
        %s447 = smul.addr %s446, 4
        %s448 = scalar_lea.vmem %s2, %s447
        %p449 = pneg %p97
        %p450 = pneg %p94
        %p451 = pneg %p118
        %p452 = pneg %p115
        %p453 = pneg %p139
        %p454 = pneg %p136
        %p455 = pneg %p160
        %p456 = pneg %p157
        %p457 = pneg %p181
        %p458 = pneg %p178
        %p459 = pneg %p202
        %p460 = pneg %p199
        %p461 = pneg %p223
        %p462 = pneg %p220
        %p463 = pneg %p244
        %p464 = pneg %p241
        %p465 = pneg %p265
        %p466 = pneg %p262
        %p467 = pneg %p286
        %p468 = pneg %p283
        %p469 = pneg %p307
        %p470 = pneg %p304
        %p471 = pneg %p328
        %p472 = pneg %p325
        %s473 = smul.u32 4, %s29
        %p474 = scmp.lt.s32.totalorder %s473, 15
        %s475 = scalar_select %p474, %s473, 15
        %s476 = smul.addr %s475, 2
        %s477 = scalar_lea.vmem %s0, %s476
        %s478 = smul.u32 4, %s29
        %s479 = smul.u32 64, %s29
        %p480 = scmp.lt.s32.totalorder %s479, 255
        %s481 = scalar_select %p480, %s479, 255
        %s482 = smul.addr %s481, 8
        %s483 = smul.addr %s482, 4
        %s484 = scalar_lea.vmem %s2, %s483
        %s485 = smul.u32 64, %s29
        %p487 = scmp.eq.s32.totalorder %s29, 0
        // Predicated region
        $region81: #{dueling_net_forward.3} parent=71 // pred_check
          %p488 = pneg %p487
        $region82: #{dueling_net_forward.3} parent=71 // pred_check_branch
          %490 = sbr.rel (%p488) target = $region84
        $region83: #{dueling_net_forward.3} parent=71 // pred_region
          %v491 = vld [vmem:[%s1] sm:$0x3]
          %v492 = vld [vmem:[%s3] sm:$0xff]
          %v493 = vld [vmem:[%s3 + $0x8] sm:$0xff]
          %v494 = vld [vmem:[%s4] sm:$0xff]
          %v496 = vlaneseq
          %v497 = vshrl.u32 %v496, 7
          %v498 = vsub.s32 0, %v497
          %v499 = vrot.slane %v494, %v498
          %v500 = vlaneseq
          %v501 = vshrl.u32 %v500, 7
          %v502 = vsub.s32 1, %v501
          %v503 = vrot.slane %v494, %v502
          %v504 = vlaneseq
          %v505 = vshrl.u32 %v504, 7
          %v506 = vsub.s32 2, %v505
          %v507 = vrot.slane %v494, %v506
          %v508 = vlaneseq
          %v509 = vshrl.u32 %v508, 7
          %v510 = vsub.s32 3, %v509
          %v511 = vrot.slane %v494, %v510
          %v512 = vlaneseq
          %v513 = vshrl.u32 %v512, 7
          %v514 = vsub.s32 4, %v513
          %v515 = vrot.slane %v494, %v514
          %v516 = vlaneseq
          %v517 = vshrl.u32 %v516, 7
          %v518 = vsub.s32 5, %v517
          %v519 = vrot.slane %v494, %v518
          %v520 = vlaneseq
          %v521 = vshrl.u32 %v520, 7
          %v522 = vsub.s32 6, %v521
          %v523 = vrot.slane %v494, %v522
          %v524 = vlaneseq
          %v525 = vshrl.u32 %v524, 7
          %v526 = vsub.s32 7, %v525
          %v527 = vrot.slane %v494, %v526
          %v538 = vcombine.high %v492, %v492
          %v540 = vunpack.c.l.s4 1983009808
          %v541 = vunpack.c.0.s8 %v540
          %v542 = vlaneseq
          %v543 = vshrl.u32 %v542, 7
          %v544 = vsub.s32 %v541, %v543
          %v545 = vrot.slane %v492, %v544
          %v547 = vunpack.c.l.s4 1983009808
          %v548 = vunpack.c.0.s8 %v547
          %v549 = vlaneseq
          %v550 = vshrl.u32 %v549, 7
          %v551 = vsub.s32 %v548, %v550
          %v552 = vrot.slane %v538, %v551
          %v553 = vcombine.high %v545, %v545
          %v554 = vcombine.high %v552, %v552
          %v555 = vcombine.high %v493, %v493
          %v557 = vunpack.c.l.s4 1983009808
          %v558 = vunpack.c.0.s8 %v557
          %v559 = vlaneseq
          %v560 = vshrl.u32 %v559, 7
          %v561 = vsub.s32 %v558, %v560
          %v562 = vrot.slane %v493, %v561
          %v564 = vunpack.c.l.s4 1983009808
          %v565 = vunpack.c.0.s8 %v564
          %v566 = vlaneseq
          %v567 = vshrl.u32 %v566, 7
          %v568 = vsub.s32 %v565, %v567
          %v569 = vrot.slane %v555, %v568
          %v570 = vcombine.high %v562, %v562
          %v571 = vcombine.high %v569, %v569
          %vm572 = vcmask 23552
          %v574 = vsel %vm572, %v491, 0
          %vm576 = vcmask 1040384
          %vm577 = vcmask 1041408
          %v578 = vsel %vm576, 4294967295, 65535
          %v579 = vsel %vm577, %v578, 0
          %v581 = vand.u32 %v545, %v579
          %v584 = vand.u32 %v553, %v579
          %v587 = vand.u32 %v552, %v579
          %v590 = vand.u32 %v554, %v579
          %v593 = vand.u32 %v562, %v579
          %v596 = vand.u32 %v570, %v579
          %v599 = vand.u32 %v569, %v579
          %v602 = vand.u32 %v571, %v579
          %604 = vmatprep.subr.bf16.mxu0 %v584
          %605 = vmatpush1.bf16.msra.mxu0 %v581
          %606 = vmatprep.subr.bf16.mxu0 0
          %607 = vmatpush1.bf16.msra.mxu0 0
          %608 = vmatprep.subr.bf16.mxu0 0
          %609 = vmatpush1.bf16.msra.mxu0 0
          %610 = vmatprep.subr.bf16.mxu0 0
          %611 = vmatpush1.bf16.msra.mxu0 0
          %612 = vmatprep.subr.bf16.mxu0 0
          %613 = vmatpush1.bf16.msra.mxu0 0
          %614 = vmatprep.subr.bf16.mxu0 0
          %615 = vmatpush1.bf16.msra.mxu0 0
          %616 = vmatprep.subr.bf16.mxu0 0
          %617 = vmatpush1.bf16.msra.mxu0 0
          %618 = vmatprep.subr.bf16.mxu0 0
          %619 = vmatpush1.bf16.msra.mxu0 0
          %620 = vmatprep.subr.bf16.mxu0 0
          %621 = vmatpush1.bf16.msra.mxu0 0
          %622 = vmatprep.subr.bf16.mxu0 0
          %623 = vmatpush1.bf16.msra.mxu0 0
          %624 = vmatprep.subr.bf16.mxu0 0
          %625 = vmatpush1.bf16.msra.mxu0 0
          %626 = vmatprep.subr.bf16.mxu0 0
          %627 = vmatpush1.bf16.msra.mxu0 0
          %628 = vmatprep.subr.bf16.mxu0 0
          %629 = vmatpush1.bf16.msra.mxu0 0
          %630 = vmatprep.subr.bf16.mxu0 0
          %631 = vmatpush1.bf16.msra.mxu0 0
          %632 = vmatprep.subr.bf16.mxu0 0
          %633 = vmatpush1.bf16.msra.mxu0 0
          %634 = vmatprep.subr.bf16.mxu0 0
          %635 = vmatpush1.bf16.msra.mxu0 0
          %636 = vmatprep.mubr.f32.mxu0 0.0
          %637 = vmatmul.mubr.f32.gmra.mrb[0].mxu0 %v574
          %v638 = vpop.f32.mrb[0].mxu0
          %v639 = vadd.f32 %v499, %v638
          %v640 = vpop.f32.mrb[0].mxu0
          %v641 = vadd.f32 %v503, %v640
          %642 = vdwg.mxu0
          %643 = vmatprep.subr.bf16.mxu0 %v590
          %644 = vmatpush1.bf16.msra.mxu0 %v587
          %645 = vmatprep.subr.bf16.mxu0 0
          %646 = vmatpush1.bf16.msra.mxu0 0
          %647 = vmatprep.subr.bf16.mxu0 0
          %648 = vmatpush1.bf16.msra.mxu0 0
          %649 = vmatprep.subr.bf16.mxu0 0
          %650 = vmatpush1.bf16.msra.mxu0 0
          %651 = vmatprep.subr.bf16.mxu0 0
          %652 = vmatpush1.bf16.msra.mxu0 0
          %653 = vmatprep.subr.bf16.mxu0 0
          %654 = vmatpush1.bf16.msra.mxu0 0
          %655 = vmatprep.subr.bf16.mxu0 0
          %656 = vmatpush1.bf16.msra.mxu0 0
          %657 = vmatprep.subr.bf16.mxu0 0
          %658 = vmatpush1.bf16.msra.mxu0 0
          %659 = vmatprep.subr.bf16.mxu0 0
          %660 = vmatpush1.bf16.msra.mxu0 0
          %661 = vmatprep.subr.bf16.mxu0 0
          %662 = vmatpush1.bf16.msra.mxu0 0
          %663 = vmatprep.subr.bf16.mxu0 0
          %664 = vmatpush1.bf16.msra.mxu0 0
          %665 = vmatprep.subr.bf16.mxu0 0
          %666 = vmatpush1.bf16.msra.mxu0 0
          %667 = vmatprep.subr.bf16.mxu0 0
          %668 = vmatpush1.bf16.msra.mxu0 0
          %669 = vmatprep.subr.bf16.mxu0 0
          %670 = vmatpush1.bf16.msra.mxu0 0
          %671 = vmatprep.subr.bf16.mxu0 0
          %672 = vmatpush1.bf16.msra.mxu0 0
          %673 = vmatprep.subr.bf16.mxu0 0
          %674 = vmatpush1.bf16.msra.mxu0 0
          %675 = vmatprep.mubr.f32.mxu0 0.0
          %676 = vmatmul.mubr.f32.gmra.mrb[0].mxu0 %v574
          %v677 = vpop.f32.mrb[0].mxu0
          %v678 = vadd.f32 %v507, %v677
          %v679 = vpop.f32.mrb[0].mxu0
          %v680 = vadd.f32 %v511, %v679
          %681 = vdwg.mxu0
          %682 = vmatprep.subr.bf16.mxu0 %v596
          %683 = vmatpush1.bf16.msra.mxu0 %v593
          %684 = vmatprep.subr.bf16.mxu0 0
          %685 = vmatpush1.bf16.msra.mxu0 0
          %686 = vmatprep.subr.bf16.mxu0 0
          %687 = vmatpush1.bf16.msra.mxu0 0
          %688 = vmatprep.subr.bf16.mxu0 0
          %689 = vmatpush1.bf16.msra.mxu0 0
          %690 = vmatprep.subr.bf16.mxu0 0
          %691 = vmatpush1.bf16.msra.mxu0 0
          %692 = vmatprep.subr.bf16.mxu0 0
          %693 = vmatpush1.bf16.msra.mxu0 0
          %694 = vmatprep.subr.bf16.mxu0 0
          %695 = vmatpush1.bf16.msra.mxu0 0
          %696 = vmatprep.subr.bf16.mxu0 0
          %697 = vmatpush1.bf16.msra.mxu0 0
          %698 = vmatprep.subr.bf16.mxu0 0
          %699 = vmatpush1.bf16.msra.mxu0 0
          %700 = vmatprep.subr.bf16.mxu0 0
          %701 = vmatpush1.bf16.msra.mxu0 0
          %702 = vmatprep.subr.bf16.mxu0 0
          %703 = vmatpush1.bf16.msra.mxu0 0
          %704 = vmatprep.subr.bf16.mxu0 0
          %705 = vmatpush1.bf16.msra.mxu0 0
          %706 = vmatprep.subr.bf16.mxu0 0
          %707 = vmatpush1.bf16.msra.mxu0 0
          %708 = vmatprep.subr.bf16.mxu0 0
          %709 = vmatpush1.bf16.msra.mxu0 0
          %710 = vmatprep.subr.bf16.mxu0 0
          %711 = vmatpush1.bf16.msra.mxu0 0
          %712 = vmatprep.subr.bf16.mxu0 0
          %713 = vmatpush1.bf16.msra.mxu0 0
          %714 = vmatprep.mubr.f32.mxu0 0.0
          %715 = vmatmul.mubr.f32.gmra.mrb[0].mxu0 %v574
          %v716 = vpop.f32.mrb[0].mxu0
          %v717 = vadd.f32 %v515, %v716
          %v718 = vpop.f32.mrb[0].mxu0
          %v719 = vadd.f32 %v519, %v718
          %720 = vdwg.mxu0
          %721 = vmatprep.subr.bf16.mxu0 %v602
          %722 = vmatpush1.bf16.msra.mxu0 %v599
          %723 = vmatprep.subr.bf16.mxu0 0
          %724 = vmatpush1.bf16.msra.mxu0 0
          %725 = vmatprep.subr.bf16.mxu0 0
          %726 = vmatpush1.bf16.msra.mxu0 0
          %727 = vmatprep.subr.bf16.mxu0 0
          %728 = vmatpush1.bf16.msra.mxu0 0
          %729 = vmatprep.subr.bf16.mxu0 0
          %730 = vmatpush1.bf16.msra.mxu0 0
          %731 = vmatprep.subr.bf16.mxu0 0
          %732 = vmatpush1.bf16.msra.mxu0 0
          %733 = vmatprep.subr.bf16.mxu0 0
          %734 = vmatpush1.bf16.msra.mxu0 0
          %735 = vmatprep.subr.bf16.mxu0 0
          %736 = vmatpush1.bf16.msra.mxu0 0
          %737 = vmatprep.subr.bf16.mxu0 0
          %738 = vmatpush1.bf16.msra.mxu0 0
          %739 = vmatprep.subr.bf16.mxu0 0
          %740 = vmatpush1.bf16.msra.mxu0 0
          %741 = vmatprep.subr.bf16.mxu0 0
          %742 = vmatpush1.bf16.msra.mxu0 0
          %743 = vmatprep.subr.bf16.mxu0 0
          %744 = vmatpush1.bf16.msra.mxu0 0
          %745 = vmatprep.subr.bf16.mxu0 0
          %746 = vmatpush1.bf16.msra.mxu0 0
          %747 = vmatprep.subr.bf16.mxu0 0
          %748 = vmatpush1.bf16.msra.mxu0 0
          %749 = vmatprep.subr.bf16.mxu0 0
          %750 = vmatpush1.bf16.msra.mxu0 0
          %751 = vmatprep.subr.bf16.mxu0 0
          %752 = vmatpush1.bf16.msra.mxu0 0
          %753 = vmatprep.mubr.f32.mxu0 0.0
          %754 = vmatmul.mubr.f32.gmra.mrb[0].mxu0 %v574
          %v755 = vpop.f32.mrb[0].mxu0
          %v756 = vadd.f32 %v523, %v755
          %v757 = vpop.f32.mrb[0].mxu0
          %v758 = vadd.f32 %v527, %v757
          %759 = vdwg.mxu0
          %v768 = vcombine.low %v639, %v641
          %v769 = vcombine.low %v678, %v680
          %v771 = vunpack.c.l.s4 1983009808
          %v772 = vunpack.c.0.s8 %v771
          %v773 = vlaneseq
          %v774 = vshrl.u32 %v773, 7
          %v775 = vsub.s32 %v772, %v774
          %v776 = vrot.slane %v768, %v775
          %v778 = vunpack.c.l.s4 1983009808
          %v779 = vunpack.c.0.s8 %v778
          %v780 = vlaneseq
          %v781 = vshrl.u32 %v780, 7
          %v782 = vsub.s32 %v779, %v781
          %v783 = vrot.slane %v769, %v782
          %v784 = vcombine.low %v776, %v783
          %v785 = vcombine.low %v717, %v719
          %v786 = vcombine.low %v756, %v758
          %v788 = vunpack.c.l.s4 1983009808
          %v789 = vunpack.c.0.s8 %v788
          %v790 = vlaneseq
          %v791 = vshrl.u32 %v790, 7
          %v792 = vsub.s32 %v789, %v791
          %v793 = vrot.slane %v785, %v792
          %v795 = vunpack.c.l.s4 1983009808
          %v796 = vunpack.c.0.s8 %v795
          %v797 = vlaneseq
          %v798 = vshrl.u32 %v797, 7
          %v799 = vsub.s32 %v796, %v798
          %v800 = vrot.slane %v786, %v799
          %v801 = vcombine.low %v793, %v800
          %804 = vst [vmem:[#allocation2] sm:$0xff] %v784
          %805 = vst [vmem:[#allocation2 + $0x8] sm:$0xff] %v801
        $region84: #{dueling_net_forward.3} parent=71 // pred_fallthru
          _
        %v806 = vld [vmem:[#allocation2] sm:$0xff]
        %v807 = vld [vmem:[#allocation2 + $0x8] sm:$0xff]
        %v808 = vld [vmem:[%s477] sm:$0xff]
        %v809 = vld [vmem:[%s484] sm:$0xff]
        %v810 = vld [vmem:[%s484 + $0x8] sm:$0xff]
        %v811 = vld [vmem:[%s484 + $0x10] sm:$0xff]
        %v812 = vld [vmem:[%s484 + $0x18] sm:$0xff]
        %v813 = vld [vmem:[%s484 + $0x20] sm:$0xff]
        %v814 = vld [vmem:[%s484 + $0x28] sm:$0xff]
        %v815 = vld [vmem:[%s484 + $0x30] sm:$0xff]
        %v816 = vld [vmem:[%s484 + $0x38] sm:$0xff]
        %v817 = vld [vmem:[%s484 + $0x40] sm:$0xff]
        %v818 = vld [vmem:[%s484 + $0x48] sm:$0xff]
        %v819 = vld [vmem:[%s484 + $0x50] sm:$0xff]
        %v820 = vld [vmem:[%s484 + $0x58] sm:$0xff]
        %v821 = vld [vmem:[%s484 + $0x60] sm:$0xff]
        %v822 = vld [vmem:[%s484 + $0x68] sm:$0xff]
        %v823 = vld [vmem:[%s484 + $0x70] sm:$0xff]
        %v824 = vld [vmem:[%s484 + $0x78] sm:$0xff]
        %v825 = vld [vmem:[%s484 + $0x80] sm:$0xff]
        %v826 = vld [vmem:[%s484 + $0x88] sm:$0xff]
        %v827 = vld [vmem:[%s484 + $0x90] sm:$0xff]
        %v828 = vld [vmem:[%s484 + $0x98] sm:$0xff]
        %v829 = vld [vmem:[%s484 + $0xa0] sm:$0xff]
        %v830 = vld [vmem:[%s484 + $0xa8] sm:$0xff]
        %v831 = vld [vmem:[%s484 + $0xb0] sm:$0xff]
        %v832 = vld [vmem:[%s484 + $0xb8] sm:$0xff]
        %v833 = vld [vmem:[%s484 + $0xc0] sm:$0xff]
        %v834 = vld [vmem:[%s484 + $0xc8] sm:$0xff]
        %v835 = vld [vmem:[%s484 + $0xd0] sm:$0xff]
        %v836 = vld [vmem:[%s484 + $0xd8] sm:$0xff]
        %v837 = vld [vmem:[%s484 + $0xe0] sm:$0xff]
        %v838 = vld [vmem:[%s484 + $0xe8] sm:$0xff]
        %v839 = vld [vmem:[%s484 + $0xf0] sm:$0xff]
        %v840 = vld [vmem:[%s484 + $0xf8] sm:$0xff]
        %v841 = vld [vmem:[%s484 + $0x100] sm:$0xff]
        %v842 = vld [vmem:[%s484 + $0x108] sm:$0xff]
        %v843 = vld [vmem:[%s484 + $0x110] sm:$0xff]
        %v844 = vld [vmem:[%s484 + $0x118] sm:$0xff]
        %v845 = vld [vmem:[%s484 + $0x120] sm:$0xff]
        %v846 = vld [vmem:[%s484 + $0x128] sm:$0xff]
        %v847 = vld [vmem:[%s484 + $0x130] sm:$0xff]
        %v848 = vld [vmem:[%s484 + $0x138] sm:$0xff]
        %v849 = vld [vmem:[%s484 + $0x140] sm:$0xff]
        %v850 = vld [vmem:[%s484 + $0x148] sm:$0xff]
        %v851 = vld [vmem:[%s484 + $0x150] sm:$0xff]
        %v852 = vld [vmem:[%s484 + $0x158] sm:$0xff]
        %v853 = vld [vmem:[%s484 + $0x160] sm:$0xff]
        %v854 = vld [vmem:[%s484 + $0x168] sm:$0xff]
        %v855 = vld [vmem:[%s484 + $0x170] sm:$0xff]
        %v856 = vld [vmem:[%s484 + $0x178] sm:$0xff]
        %v857 = vld [vmem:[%s484 + $0x180] sm:$0xff]
        %v858 = vld [vmem:[%s484 + $0x188] sm:$0xff]
        %v859 = vld [vmem:[%s484 + $0x190] sm:$0xff]
        %v860 = vld [vmem:[%s484 + $0x198] sm:$0xff]
        %v861 = vld [vmem:[%s484 + $0x1a0] sm:$0xff]
        %v862 = vld [vmem:[%s484 + $0x1a8] sm:$0xff]
        %v863 = vld [vmem:[%s484 + $0x1b0] sm:$0xff]
        %v864 = vld [vmem:[%s484 + $0x1b8] sm:$0xff]
        %v865 = vld [vmem:[%s484 + $0x1c0] sm:$0xff]
        %v866 = vld [vmem:[%s484 + $0x1c8] sm:$0xff]
        %v867 = vld [vmem:[%s484 + $0x1d0] sm:$0xff]
        %v868 = vld [vmem:[%s484 + $0x1d8] sm:$0xff]
        %v869 = vld [vmem:[%s484 + $0x1e0] sm:$0xff]
        %v870 = vld [vmem:[%s484 + $0x1e8] sm:$0xff]
        %v871 = vld [vmem:[%s484 + $0x1f0] sm:$0xff]
        %v872 = vld [vmem:[%s484 + $0x1f8] sm:$0xff]
        %v873 = vld [vmem:[%s484 + $0x200] sm:$0xff]
        %v874 = vld [vmem:[%s484 + $0x208] sm:$0xff]
        %v875 = vld [vmem:[%s484 + $0x210] sm:$0xff]
        %v876 = vld [vmem:[%s484 + $0x218] sm:$0xff]
        %v877 = vld [vmem:[%s484 + $0x220] sm:$0xff]
        %v878 = vld [vmem:[%s484 + $0x228] sm:$0xff]
        %v879 = vld [vmem:[%s484 + $0x230] sm:$0xff]
        %v880 = vld [vmem:[%s484 + $0x238] sm:$0xff]
        %v881 = vld [vmem:[%s484 + $0x240] sm:$0xff]
        %v882 = vld [vmem:[%s484 + $0x248] sm:$0xff]
        %v883 = vld [vmem:[%s484 + $0x250] sm:$0xff]
        %v884 = vld [vmem:[%s484 + $0x258] sm:$0xff]
        %v885 = vld [vmem:[%s484 + $0x260] sm:$0xff]
        %v886 = vld [vmem:[%s484 + $0x268] sm:$0xff]
        %v887 = vld [vmem:[%s484 + $0x270] sm:$0xff]
        %v888 = vld [vmem:[%s484 + $0x278] sm:$0xff]
        %v889 = vld [vmem:[%s484 + $0x280] sm:$0xff]
        %v890 = vld [vmem:[%s484 + $0x288] sm:$0xff]
        %v891 = vld [vmem:[%s484 + $0x290] sm:$0xff]
        %v892 = vld [vmem:[%s484 + $0x298] sm:$0xff]
        %v893 = vld [vmem:[%s484 + $0x2a0] sm:$0xff]
        %v894 = vld [vmem:[%s484 + $0x2a8] sm:$0xff]
        %v895 = vld [vmem:[%s484 + $0x2b0] sm:$0xff]
        %v896 = vld [vmem:[%s484 + $0x2b8] sm:$0xff]
        %v897 = vld [vmem:[%s484 + $0x2c0] sm:$0xff]
        %v898 = vld [vmem:[%s484 + $0x2c8] sm:$0xff]
        %v899 = vld [vmem:[%s484 + $0x2d0] sm:$0xff]
        %v900 = vld [vmem:[%s484 + $0x2d8] sm:$0xff]
        %v901 = vld [vmem:[%s484 + $0x2e0] sm:$0xff]
        %v902 = vld [vmem:[%s484 + $0x2e8] sm:$0xff]
        %v903 = vld [vmem:[%s484 + $0x2f0] sm:$0xff]
        %v904 = vld [vmem:[%s484 + $0x2f8] sm:$0xff]
        %v905 = vld [vmem:[%s484 + $0x300] sm:$0xff]
        %v906 = vld [vmem:[%s484 + $0x308] sm:$0xff]
        %v907 = vld [vmem:[%s484 + $0x310] sm:$0xff]
        %v908 = vld [vmem:[%s484 + $0x318] sm:$0xff]
        %v909 = vld [vmem:[%s484 + $0x320] sm:$0xff]
        %v910 = vld [vmem:[%s484 + $0x328] sm:$0xff]
        %v911 = vld [vmem:[%s484 + $0x330] sm:$0xff]
        %v912 = vld [vmem:[%s484 + $0x338] sm:$0xff]
        %v913 = vld [vmem:[%s484 + $0x340] sm:$0xff]
        %v914 = vld [vmem:[%s484 + $0x348] sm:$0xff]
        %v915 = vld [vmem:[%s484 + $0x350] sm:$0xff]
        %v916 = vld [vmem:[%s484 + $0x358] sm:$0xff]
        %v917 = vld [vmem:[%s484 + $0x360] sm:$0xff]
        %v918 = vld [vmem:[%s484 + $0x368] sm:$0xff]
        %v919 = vld [vmem:[%s484 + $0x370] sm:$0xff]
        %v920 = vld [vmem:[%s484 + $0x378] sm:$0xff]
        %v921 = vld [vmem:[%s484 + $0x380] sm:$0xff]
        %v922 = vld [vmem:[%s484 + $0x388] sm:$0xff]
        %v923 = vld [vmem:[%s484 + $0x390] sm:$0xff]
        %v924 = vld [vmem:[%s484 + $0x398] sm:$0xff]
        %v925 = vld [vmem:[%s484 + $0x3a0] sm:$0xff]
        %v926 = vld [vmem:[%s484 + $0x3a8] sm:$0xff]
        %v927 = vld [vmem:[%s484 + $0x3b0] sm:$0xff]
        %v928 = vld [vmem:[%s484 + $0x3b8] sm:$0xff]
        %v929 = vld [vmem:[%s484 + $0x3c0] sm:$0xff]
        %v930 = vld [vmem:[%s484 + $0x3c8] sm:$0xff]
        %v931 = vld [vmem:[%s484 + $0x3d0] sm:$0xff]
        %v932 = vld [vmem:[%s484 + $0x3d8] sm:$0xff]
        %v933 = vld [vmem:[%s484 + $0x3e0] sm:$0xff]
        %v934 = vld [vmem:[%s484 + $0x3e8] sm:$0xff]
        %v935 = vld [vmem:[%s484 + $0x3f0] sm:$0xff]
        %v936 = vld [vmem:[%s484 + $0x3f8] sm:$0xff]
        %v937 = vld [vmem:[%s484 + $0x400] sm:$0xff]
        %v938 = vld [vmem:[%s484 + $0x408] sm:$0xff]
        %v939 = vld [vmem:[%s484 + $0x410] sm:$0xff]
        %v940 = vld [vmem:[%s484 + $0x418] sm:$0xff]
        %v941 = vld [vmem:[%s484 + $0x420] sm:$0xff]
        %v942 = vld [vmem:[%s484 + $0x428] sm:$0xff]
        %v943 = vld [vmem:[%s484 + $0x430] sm:$0xff]
        %v944 = vld [vmem:[%s484 + $0x438] sm:$0xff]
        %v945 = vld [vmem:[%s484 + $0x440] sm:$0xff]
        %v946 = vld [vmem:[%s484 + $0x448] sm:$0xff]
        %v947 = vld [vmem:[%s484 + $0x450] sm:$0xff]
        %v948 = vld [vmem:[%s484 + $0x458] sm:$0xff]
        %v949 = vld [vmem:[%s484 + $0x460] sm:$0xff]
        %v950 = vld [vmem:[%s484 + $0x468] sm:$0xff]
        %v951 = vld [vmem:[%s484 + $0x470] sm:$0xff]
        %v952 = vld [vmem:[%s484 + $0x478] sm:$0xff]
        %v953 = vld [vmem:[%s484 + $0x480] sm:$0xff]
        %v954 = vld [vmem:[%s484 + $0x488] sm:$0xff]
        %v955 = vld [vmem:[%s484 + $0x490] sm:$0xff]
        %v956 = vld [vmem:[%s484 + $0x498] sm:$0xff]
        %v957 = vld [vmem:[%s484 + $0x4a0] sm:$0xff]
        %v958 = vld [vmem:[%s484 + $0x4a8] sm:$0xff]
        %v959 = vld [vmem:[%s484 + $0x4b0] sm:$0xff]
        %v960 = vld [vmem:[%s484 + $0x4b8] sm:$0xff]
        %v961 = vld [vmem:[%s484 + $0x4c0] sm:$0xff]
        %v962 = vld [vmem:[%s484 + $0x4c8] sm:$0xff]
        %v963 = vld [vmem:[%s484 + $0x4d0] sm:$0xff]
        %v964 = vld [vmem:[%s484 + $0x4d8] sm:$0xff]
        %v965 = vld [vmem:[%s484 + $0x4e0] sm:$0xff]
        %v966 = vld [vmem:[%s484 + $0x4e8] sm:$0xff]
        %v967 = vld [vmem:[%s484 + $0x4f0] sm:$0xff]
        %v968 = vld [vmem:[%s484 + $0x4f8] sm:$0xff]
        %v969 = vld [vmem:[%s484 + $0x500] sm:$0xff]
        %v970 = vld [vmem:[%s484 + $0x508] sm:$0xff]
        %v971 = vld [vmem:[%s484 + $0x510] sm:$0xff]
        %v972 = vld [vmem:[%s484 + $0x518] sm:$0xff]
        %v973 = vld [vmem:[%s484 + $0x520] sm:$0xff]
        %v974 = vld [vmem:[%s484 + $0x528] sm:$0xff]
        %v975 = vld [vmem:[%s484 + $0x530] sm:$0xff]
        %v976 = vld [vmem:[%s484 + $0x538] sm:$0xff]
        %v977 = vld [vmem:[%s484 + $0x540] sm:$0xff]
        %v978 = vld [vmem:[%s484 + $0x548] sm:$0xff]
        %v979 = vld [vmem:[%s484 + $0x550] sm:$0xff]
        %v980 = vld [vmem:[%s484 + $0x558] sm:$0xff]
        %v981 = vld [vmem:[%s484 + $0x560] sm:$0xff]
        %v982 = vld [vmem:[%s484 + $0x568] sm:$0xff]
        %v983 = vld [vmem:[%s484 + $0x570] sm:$0xff]
        %v984 = vld [vmem:[%s484 + $0x578] sm:$0xff]
        %v985 = vld [vmem:[%s484 + $0x580] sm:$0xff]
        %v986 = vld [vmem:[%s484 + $0x588] sm:$0xff]
        %v987 = vld [vmem:[%s484 + $0x590] sm:$0xff]
        %v988 = vld [vmem:[%s484 + $0x598] sm:$0xff]
        %v989 = vld [vmem:[%s484 + $0x5a0] sm:$0xff]
        %v990 = vld [vmem:[%s484 + $0x5a8] sm:$0xff]
        %v991 = vld [vmem:[%s484 + $0x5b0] sm:$0xff]
        %v992 = vld [vmem:[%s484 + $0x5b8] sm:$0xff]
        %v993 = vld [vmem:[%s484 + $0x5c0] sm:$0xff]
        %v994 = vld [vmem:[%s484 + $0x5c8] sm:$0xff]
        %v995 = vld [vmem:[%s484 + $0x5d0] sm:$0xff]
        %v996 = vld [vmem:[%s484 + $0x5d8] sm:$0xff]
        %v997 = vld [vmem:[%s484 + $0x5e0] sm:$0xff]
        %v998 = vld [vmem:[%s484 + $0x5e8] sm:$0xff]
        %v999 = vld [vmem:[%s484 + $0x5f0] sm:$0xff]
        %v1000 = vld [vmem:[%s484 + $0x5f8] sm:$0xff]
        %v1001 = vld [vmem:[%s484 + $0x600] sm:$0xff]
        %v1002 = vld [vmem:[%s484 + $0x608] sm:$0xff]
        %v1003 = vld [vmem:[%s484 + $0x610] sm:$0xff]
        %v1004 = vld [vmem:[%s484 + $0x618] sm:$0xff]
        %v1005 = vld [vmem:[%s484 + $0x620] sm:$0xff]
        %v1006 = vld [vmem:[%s484 + $0x628] sm:$0xff]
        %v1007 = vld [vmem:[%s484 + $0x630] sm:$0xff]
        %v1008 = vld [vmem:[%s484 + $0x638] sm:$0xff]
        %v1009 = vld [vmem:[%s484 + $0x640] sm:$0xff]
        %v1010 = vld [vmem:[%s484 + $0x648] sm:$0xff]
        %v1011 = vld [vmem:[%s484 + $0x650] sm:$0xff]
        %v1012 = vld [vmem:[%s484 + $0x658] sm:$0xff]
        %v1013 = vld [vmem:[%s484 + $0x660] sm:$0xff]
        %v1014 = vld [vmem:[%s484 + $0x668] sm:$0xff]
        %v1015 = vld [vmem:[%s484 + $0x670] sm:$0xff]
        %v1016 = vld [vmem:[%s484 + $0x678] sm:$0xff]
        %v1017 = vld [vmem:[%s484 + $0x680] sm:$0xff]
        %v1018 = vld [vmem:[%s484 + $0x688] sm:$0xff]
        %v1019 = vld [vmem:[%s484 + $0x690] sm:$0xff]
        %v1020 = vld [vmem:[%s484 + $0x698] sm:$0xff]
        %v1021 = vld [vmem:[%s484 + $0x6a0] sm:$0xff]
        %v1022 = vld [vmem:[%s484 + $0x6a8] sm:$0xff]
        %v1023 = vld [vmem:[%s484 + $0x6b0] sm:$0xff]
        %v1024 = vld [vmem:[%s484 + $0x6b8] sm:$0xff]
        %v1025 = vld [vmem:[%s484 + $0x6c0] sm:$0xff]
        %v1026 = vld [vmem:[%s484 + $0x6c8] sm:$0xff]
        %v1027 = vld [vmem:[%s484 + $0x6d0] sm:$0xff]
        %v1028 = vld [vmem:[%s484 + $0x6d8] sm:$0xff]
        %v1029 = vld [vmem:[%s484 + $0x6e0] sm:$0xff]
        %v1030 = vld [vmem:[%s484 + $0x6e8] sm:$0xff]
        %v1031 = vld [vmem:[%s484 + $0x6f0] sm:$0xff]
        %v1032 = vld [vmem:[%s484 + $0x6f8] sm:$0xff]
        %v1033 = vld [vmem:[%s484 + $0x700] sm:$0xff]
        %v1034 = vld [vmem:[%s484 + $0x708] sm:$0xff]
        %v1035 = vld [vmem:[%s484 + $0x710] sm:$0xff]
        %v1036 = vld [vmem:[%s484 + $0x718] sm:$0xff]
        %v1037 = vld [vmem:[%s484 + $0x720] sm:$0xff]
        %v1038 = vld [vmem:[%s484 + $0x728] sm:$0xff]
        %v1039 = vld [vmem:[%s484 + $0x730] sm:$0xff]
        %v1040 = vld [vmem:[%s484 + $0x738] sm:$0xff]
        %v1041 = vld [vmem:[%s484 + $0x740] sm:$0xff]
        %v1042 = vld [vmem:[%s484 + $0x748] sm:$0xff]
        %v1043 = vld [vmem:[%s484 + $0x750] sm:$0xff]
        %v1044 = vld [vmem:[%s484 + $0x758] sm:$0xff]
        %v1045 = vld [vmem:[%s484 + $0x760] sm:$0xff]
        %v1046 = vld [vmem:[%s484 + $0x768] sm:$0xff]
        %v1047 = vld [vmem:[%s484 + $0x770] sm:$0xff]
        %v1048 = vld [vmem:[%s484 + $0x778] sm:$0xff]
        %v1049 = vld [vmem:[%s484 + $0x780] sm:$0xff]
        %v1050 = vld [vmem:[%s484 + $0x788] sm:$0xff]
        %v1051 = vld [vmem:[%s484 + $0x790] sm:$0xff]
        %v1052 = vld [vmem:[%s484 + $0x798] sm:$0xff]
        %v1053 = vld [vmem:[%s484 + $0x7a0] sm:$0xff]
        %v1054 = vld [vmem:[%s484 + $0x7a8] sm:$0xff]
        %v1055 = vld [vmem:[%s484 + $0x7b0] sm:$0xff]
        %v1056 = vld [vmem:[%s484 + $0x7b8] sm:$0xff]
        %v1057 = vld [vmem:[%s484 + $0x7c0] sm:$0xff]
        %v1058 = vld [vmem:[%s484 + $0x7c8] sm:$0xff]
        %v1059 = vld [vmem:[%s484 + $0x7d0] sm:$0xff]
        %v1060 = vld [vmem:[%s484 + $0x7d8] sm:$0xff]
        %v1061 = vld [vmem:[%s484 + $0x7e0] sm:$0xff]
        %v1062 = vld [vmem:[%s484 + $0x7e8] sm:$0xff]
        %v1063 = vld [vmem:[%s484 + $0x7f0] sm:$0xff]
        %v1064 = vld [vmem:[%s484 + $0x7f8] sm:$0xff]
        %v1066 = vcombine.high %v808, %v808
        %v1068 = vunpack.c.l.s4 1983009808
        %v1069 = vunpack.c.0.s8 %v1068
        %v1070 = vlaneseq
        %v1071 = vshrl.u32 %v1070, 7
        %v1072 = vsub.s32 %v1069, %v1071
        %v1073 = vrot.slane %v808, %v1072
        %v1075 = vunpack.c.l.s4 1983009808
        %v1076 = vunpack.c.0.s8 %v1075
        %v1077 = vlaneseq
        %v1078 = vshrl.u32 %v1077, 7
        %v1079 = vsub.s32 %v1076, %v1078
        %v1080 = vrot.slane %v1066, %v1079
        %v1081 = vcombine.high %v1073, %v1073
        %v1082 = vcombine.high %v1080, %v1080
        %v1343 = vunpack.c.l.b16 %v809
        %v1344 = vunpack.c.h.b16 %v809
        %v1345 = vunpack.c.l.b16 %v810
        %v1346 = vunpack.c.h.b16 %v810
        %v1347 = vunpack.c.l.b16 %v811
        %v1348 = vunpack.c.h.b16 %v811
        %v1349 = vunpack.c.l.b16 %v812
        %v1350 = vunpack.c.h.b16 %v812
        %v1351 = vunpack.c.l.b16 %v813
        %v1352 = vunpack.c.h.b16 %v813
        %v1353 = vunpack.c.l.b16 %v814
        %v1354 = vunpack.c.h.b16 %v814
        %v1355 = vunpack.c.l.b16 %v815
        %v1356 = vunpack.c.h.b16 %v815
        %v1357 = vunpack.c.l.b16 %v816
        %v1358 = vunpack.c.h.b16 %v816
        %v1359 = vunpack.c.l.b16 %v817
        %v1360 = vunpack.c.h.b16 %v817
        %v1361 = vunpack.c.l.b16 %v818
        %v1362 = vunpack.c.h.b16 %v818
        %v1363 = vunpack.c.l.b16 %v819
        %v1364 = vunpack.c.h.b16 %v819
        %v1365 = vunpack.c.l.b16 %v820
        %v1366 = vunpack.c.h.b16 %v820
        %v1367 = vunpack.c.l.b16 %v821
        %v1368 = vunpack.c.h.b16 %v821
        %v1369 = vunpack.c.l.b16 %v822
        %v1370 = vunpack.c.h.b16 %v822
        %v1371 = vunpack.c.l.b16 %v823
        %v1372 = vunpack.c.h.b16 %v823
        %v1373 = vunpack.c.l.b16 %v824
        %v1374 = vunpack.c.h.b16 %v824
        %v1375 = vunpack.c.l.b16 %v825
        %v1376 = vunpack.c.h.b16 %v825
        %v1377 = vunpack.c.l.b16 %v826
        %v1378 = vunpack.c.h.b16 %v826
        %v1379 = vunpack.c.l.b16 %v827
        %v1380 = vunpack.c.h.b16 %v827
        %v1381 = vunpack.c.l.b16 %v828
        %v1382 = vunpack.c.h.b16 %v828
        %v1383 = vunpack.c.l.b16 %v829
        %v1384 = vunpack.c.h.b16 %v829
        %v1385 = vunpack.c.l.b16 %v830
        %v1386 = vunpack.c.h.b16 %v830
        %v1387 = vunpack.c.l.b16 %v831
        %v1388 = vunpack.c.h.b16 %v831
        %v1389 = vunpack.c.l.b16 %v832
        %v1390 = vunpack.c.h.b16 %v832
        %v1391 = vunpack.c.l.b16 %v833
        %v1392 = vunpack.c.h.b16 %v833
        %v1393 = vunpack.c.l.b16 %v834
        %v1394 = vunpack.c.h.b16 %v834
        %v1395 = vunpack.c.l.b16 %v835
        %v1396 = vunpack.c.h.b16 %v835
        %v1397 = vunpack.c.l.b16 %v836
        %v1398 = vunpack.c.h.b16 %v836
        %v1399 = vunpack.c.l.b16 %v837
        %v1400 = vunpack.c.h.b16 %v837
        %v1401 = vunpack.c.l.b16 %v838
        %v1402 = vunpack.c.h.b16 %v838
        %v1403 = vunpack.c.l.b16 %v839
        %v1404 = vunpack.c.h.b16 %v839
        %v1405 = vunpack.c.l.b16 %v840
        %v1406 = vunpack.c.h.b16 %v840
        %v1407 = vunpack.c.l.b16 %v841
        %v1408 = vunpack.c.h.b16 %v841
        %v1409 = vunpack.c.l.b16 %v842
        %v1410 = vunpack.c.h.b16 %v842
        %v1411 = vunpack.c.l.b16 %v843
        %v1412 = vunpack.c.h.b16 %v843
        %v1413 = vunpack.c.l.b16 %v844
        %v1414 = vunpack.c.h.b16 %v844
        %v1415 = vunpack.c.l.b16 %v845
        %v1416 = vunpack.c.h.b16 %v845
        %v1417 = vunpack.c.l.b16 %v846
        %v1418 = vunpack.c.h.b16 %v846
        %v1419 = vunpack.c.l.b16 %v847
        %v1420 = vunpack.c.h.b16 %v847
        %v1421 = vunpack.c.l.b16 %v848
        %v1422 = vunpack.c.h.b16 %v848
        %v1423 = vunpack.c.l.b16 %v849
        %v1424 = vunpack.c.h.b16 %v849
        %v1425 = vunpack.c.l.b16 %v850
        %v1426 = vunpack.c.h.b16 %v850
        %v1427 = vunpack.c.l.b16 %v851
        %v1428 = vunpack.c.h.b16 %v851
        %v1429 = vunpack.c.l.b16 %v852
        %v1430 = vunpack.c.h.b16 %v852
        %v1431 = vunpack.c.l.b16 %v853
        %v1432 = vunpack.c.h.b16 %v853
        %v1433 = vunpack.c.l.b16 %v854
        %v1434 = vunpack.c.h.b16 %v854
        %v1435 = vunpack.c.l.b16 %v855
        %v1436 = vunpack.c.h.b16 %v855
        %v1437 = vunpack.c.l.b16 %v856
        %v1438 = vunpack.c.h.b16 %v856
        %v1439 = vunpack.c.l.b16 %v857
        %v1440 = vunpack.c.h.b16 %v857
        %v1441 = vunpack.c.l.b16 %v858
        %v1442 = vunpack.c.h.b16 %v858
        %v1443 = vunpack.c.l.b16 %v859
        %v1444 = vunpack.c.h.b16 %v859
        %v1445 = vunpack.c.l.b16 %v860
        %v1446 = vunpack.c.h.b16 %v860
        %v1447 = vunpack.c.l.b16 %v861
        %v1448 = vunpack.c.h.b16 %v861
        %v1449 = vunpack.c.l.b16 %v862
        %v1450 = vunpack.c.h.b16 %v862
        %v1451 = vunpack.c.l.b16 %v863
        %v1452 = vunpack.c.h.b16 %v863
        %v1453 = vunpack.c.l.b16 %v864
        %v1454 = vunpack.c.h.b16 %v864
        %v1455 = vunpack.c.l.b16 %v865
        %v1456 = vunpack.c.h.b16 %v865
        %v1457 = vunpack.c.l.b16 %v866
        %v1458 = vunpack.c.h.b16 %v866
        %v1459 = vunpack.c.l.b16 %v867
        %v1460 = vunpack.c.h.b16 %v867
        %v1461 = vunpack.c.l.b16 %v868
        %v1462 = vunpack.c.h.b16 %v868
        %v1463 = vunpack.c.l.b16 %v869
        %v1464 = vunpack.c.h.b16 %v869
        %v1465 = vunpack.c.l.b16 %v870
        %v1466 = vunpack.c.h.b16 %v870
        %v1467 = vunpack.c.l.b16 %v871
        %v1468 = vunpack.c.h.b16 %v871
        %v1469 = vunpack.c.l.b16 %v872
        %v1470 = vunpack.c.h.b16 %v872
        %v1471 = vunpack.c.l.b16 %v873
        %v1472 = vunpack.c.h.b16 %v873
        %v1473 = vunpack.c.l.b16 %v874
        %v1474 = vunpack.c.h.b16 %v874
        %v1475 = vunpack.c.l.b16 %v875
        %v1476 = vunpack.c.h.b16 %v875
        %v1477 = vunpack.c.l.b16 %v876
        %v1478 = vunpack.c.h.b16 %v876
        %v1479 = vunpack.c.l.b16 %v877
        %v1480 = vunpack.c.h.b16 %v877
        %v1481 = vunpack.c.l.b16 %v878
        %v1482 = vunpack.c.h.b16 %v878
        %v1483 = vunpack.c.l.b16 %v879
        %v1484 = vunpack.c.h.b16 %v879
        %v1485 = vunpack.c.l.b16 %v880
        %v1486 = vunpack.c.h.b16 %v880
        %v1487 = vunpack.c.l.b16 %v881
        %v1488 = vunpack.c.h.b16 %v881
        %v1489 = vunpack.c.l.b16 %v882
        %v1490 = vunpack.c.h.b16 %v882
        %v1491 = vunpack.c.l.b16 %v883
        %v1492 = vunpack.c.h.b16 %v883
        %v1493 = vunpack.c.l.b16 %v884
        %v1494 = vunpack.c.h.b16 %v884
        %v1495 = vunpack.c.l.b16 %v885
        %v1496 = vunpack.c.h.b16 %v885
        %v1497 = vunpack.c.l.b16 %v886
        %v1498 = vunpack.c.h.b16 %v886
        %v1499 = vunpack.c.l.b16 %v887
        %v1500 = vunpack.c.h.b16 %v887
        %v1501 = vunpack.c.l.b16 %v888
        %v1502 = vunpack.c.h.b16 %v888
        %v1503 = vunpack.c.l.b16 %v889
        %v1504 = vunpack.c.h.b16 %v889
        %v1505 = vunpack.c.l.b16 %v890
        %v1506 = vunpack.c.h.b16 %v890
        %v1507 = vunpack.c.l.b16 %v891
        %v1508 = vunpack.c.h.b16 %v891
        %v1509 = vunpack.c.l.b16 %v892
        %v1510 = vunpack.c.h.b16 %v892
        %v1511 = vunpack.c.l.b16 %v893
        %v1512 = vunpack.c.h.b16 %v893
        %v1513 = vunpack.c.l.b16 %v894
        %v1514 = vunpack.c.h.b16 %v894
        %v1515 = vunpack.c.l.b16 %v895
        %v1516 = vunpack.c.h.b16 %v895
        %v1517 = vunpack.c.l.b16 %v896
        %v1518 = vunpack.c.h.b16 %v896
        %v1519 = vunpack.c.l.b16 %v897
        %v1520 = vunpack.c.h.b16 %v897
        %v1521 = vunpack.c.l.b16 %v898
        %v1522 = vunpack.c.h.b16 %v898
        %v1523 = vunpack.c.l.b16 %v899
        %v1524 = vunpack.c.h.b16 %v899
        %v1525 = vunpack.c.l.b16 %v900
        %v1526 = vunpack.c.h.b16 %v900
        %v1527 = vunpack.c.l.b16 %v901
        %v1528 = vunpack.c.h.b16 %v901
        %v1529 = vunpack.c.l.b16 %v902
        %v1530 = vunpack.c.h.b16 %v902
        %v1531 = vunpack.c.l.b16 %v903
        %v1532 = vunpack.c.h.b16 %v903
        %v1533 = vunpack.c.l.b16 %v904
        %v1534 = vunpack.c.h.b16 %v904
        %v1535 = vunpack.c.l.b16 %v905
        %v1536 = vunpack.c.h.b16 %v905
        %v1537 = vunpack.c.l.b16 %v906
        %v1538 = vunpack.c.h.b16 %v906
        %v1539 = vunpack.c.l.b16 %v907
        %v1540 = vunpack.c.h.b16 %v907
        %v1541 = vunpack.c.l.b16 %v908
        %v1542 = vunpack.c.h.b16 %v908
        %v1543 = vunpack.c.l.b16 %v909
        %v1544 = vunpack.c.h.b16 %v909
        %v1545 = vunpack.c.l.b16 %v910
        %v1546 = vunpack.c.h.b16 %v910
        %v1547 = vunpack.c.l.b16 %v911
        %v1548 = vunpack.c.h.b16 %v911
        %v1549 = vunpack.c.l.b16 %v912
        %v1550 = vunpack.c.h.b16 %v912
        %v1551 = vunpack.c.l.b16 %v913
        %v1552 = vunpack.c.h.b16 %v913
        %v1553 = vunpack.c.l.b16 %v914
        %v1554 = vunpack.c.h.b16 %v914
        %v1555 = vunpack.c.l.b16 %v915
        %v1556 = vunpack.c.h.b16 %v915
        %v1557 = vunpack.c.l.b16 %v916
        %v1558 = vunpack.c.h.b16 %v916
        %v1559 = vunpack.c.l.b16 %v917
        %v1560 = vunpack.c.h.b16 %v917
        %v1561 = vunpack.c.l.b16 %v918
        %v1562 = vunpack.c.h.b16 %v918
        %v1563 = vunpack.c.l.b16 %v919
        %v1564 = vunpack.c.h.b16 %v919
        %v1565 = vunpack.c.l.b16 %v920
        %v1566 = vunpack.c.h.b16 %v920
        %v1567 = vunpack.c.l.b16 %v921
        %v1568 = vunpack.c.h.b16 %v921
        %v1569 = vunpack.c.l.b16 %v922
        %v1570 = vunpack.c.h.b16 %v922
        %v1571 = vunpack.c.l.b16 %v923
        %v1572 = vunpack.c.h.b16 %v923
        %v1573 = vunpack.c.l.b16 %v924
        %v1574 = vunpack.c.h.b16 %v924
        %v1575 = vunpack.c.l.b16 %v925
        %v1576 = vunpack.c.h.b16 %v925
        %v1577 = vunpack.c.l.b16 %v926
        %v1578 = vunpack.c.h.b16 %v926
        %v1579 = vunpack.c.l.b16 %v927
        %v1580 = vunpack.c.h.b16 %v927
        %v1581 = vunpack.c.l.b16 %v928
        %v1582 = vunpack.c.h.b16 %v928
        %v1583 = vunpack.c.l.b16 %v929
        %v1584 = vunpack.c.h.b16 %v929
        %v1585 = vunpack.c.l.b16 %v930
        %v1586 = vunpack.c.h.b16 %v930
        %v1587 = vunpack.c.l.b16 %v931
        %v1588 = vunpack.c.h.b16 %v931
        %v1589 = vunpack.c.l.b16 %v932
        %v1590 = vunpack.c.h.b16 %v932
        %v1591 = vunpack.c.l.b16 %v933
        %v1592 = vunpack.c.h.b16 %v933
        %v1593 = vunpack.c.l.b16 %v934
        %v1594 = vunpack.c.h.b16 %v934
        %v1595 = vunpack.c.l.b16 %v935
        %v1596 = vunpack.c.h.b16 %v935
        %v1597 = vunpack.c.l.b16 %v936
        %v1598 = vunpack.c.h.b16 %v936
        %v1599 = vunpack.c.l.b16 %v937
        %v1600 = vunpack.c.h.b16 %v937
        %v1601 = vunpack.c.l.b16 %v938
        %v1602 = vunpack.c.h.b16 %v938
        %v1603 = vunpack.c.l.b16 %v939
        %v1604 = vunpack.c.h.b16 %v939
        %v1605 = vunpack.c.l.b16 %v940
        %v1606 = vunpack.c.h.b16 %v940
        %v1607 = vunpack.c.l.b16 %v941
        %v1608 = vunpack.c.h.b16 %v941
        %v1609 = vunpack.c.l.b16 %v942
        %v1610 = vunpack.c.h.b16 %v942
        %v1611 = vunpack.c.l.b16 %v943
        %v1612 = vunpack.c.h.b16 %v943
        %v1613 = vunpack.c.l.b16 %v944
        %v1614 = vunpack.c.h.b16 %v944
        %v1615 = vunpack.c.l.b16 %v945
        %v1616 = vunpack.c.h.b16 %v945
        %v1617 = vunpack.c.l.b16 %v946
        %v1618 = vunpack.c.h.b16 %v946
        %v1619 = vunpack.c.l.b16 %v947
        %v1620 = vunpack.c.h.b16 %v947
        %v1621 = vunpack.c.l.b16 %v948
        %v1622 = vunpack.c.h.b16 %v948
        %v1623 = vunpack.c.l.b16 %v949
        %v1624 = vunpack.c.h.b16 %v949
        %v1625 = vunpack.c.l.b16 %v950
        %v1626 = vunpack.c.h.b16 %v950
        %v1627 = vunpack.c.l.b16 %v951
        %v1628 = vunpack.c.h.b16 %v951
        %v1629 = vunpack.c.l.b16 %v952
        %v1630 = vunpack.c.h.b16 %v952
        %v1631 = vunpack.c.l.b16 %v953
        %v1632 = vunpack.c.h.b16 %v953
        %v1633 = vunpack.c.l.b16 %v954
        %v1634 = vunpack.c.h.b16 %v954
        %v1635 = vunpack.c.l.b16 %v955
        %v1636 = vunpack.c.h.b16 %v955
        %v1637 = vunpack.c.l.b16 %v956
        %v1638 = vunpack.c.h.b16 %v956
        %v1639 = vunpack.c.l.b16 %v957
        %v1640 = vunpack.c.h.b16 %v957
        %v1641 = vunpack.c.l.b16 %v958
        %v1642 = vunpack.c.h.b16 %v958
        %v1643 = vunpack.c.l.b16 %v959
        %v1644 = vunpack.c.h.b16 %v959
        %v1645 = vunpack.c.l.b16 %v960
        %v1646 = vunpack.c.h.b16 %v960
        %v1647 = vunpack.c.l.b16 %v961
        %v1648 = vunpack.c.h.b16 %v961
        %v1649 = vunpack.c.l.b16 %v962
        %v1650 = vunpack.c.h.b16 %v962
        %v1651 = vunpack.c.l.b16 %v963
        %v1652 = vunpack.c.h.b16 %v963
        %v1653 = vunpack.c.l.b16 %v964
        %v1654 = vunpack.c.h.b16 %v964
        %v1655 = vunpack.c.l.b16 %v965
        %v1656 = vunpack.c.h.b16 %v965
        %v1657 = vunpack.c.l.b16 %v966
        %v1658 = vunpack.c.h.b16 %v966
        %v1659 = vunpack.c.l.b16 %v967
        %v1660 = vunpack.c.h.b16 %v967
        %v1661 = vunpack.c.l.b16 %v968
        %v1662 = vunpack.c.h.b16 %v968
        %v1663 = vunpack.c.l.b16 %v969
        %v1664 = vunpack.c.h.b16 %v969
        %v1665 = vunpack.c.l.b16 %v970
        %v1666 = vunpack.c.h.b16 %v970
        %v1667 = vunpack.c.l.b16 %v971
        %v1668 = vunpack.c.h.b16 %v971
        %v1669 = vunpack.c.l.b16 %v972
        %v1670 = vunpack.c.h.b16 %v972
        %v1671 = vunpack.c.l.b16 %v973
        %v1672 = vunpack.c.h.b16 %v973
        %v1673 = vunpack.c.l.b16 %v974
        %v1674 = vunpack.c.h.b16 %v974
        %v1675 = vunpack.c.l.b16 %v975
        %v1676 = vunpack.c.h.b16 %v975
        %v1677 = vunpack.c.l.b16 %v976
        %v1678 = vunpack.c.h.b16 %v976
        %v1679 = vunpack.c.l.b16 %v977
        %v1680 = vunpack.c.h.b16 %v977
        %v1681 = vunpack.c.l.b16 %v978
        %v1682 = vunpack.c.h.b16 %v978
        %v1683 = vunpack.c.l.b16 %v979
        %v1684 = vunpack.c.h.b16 %v979
        %v1685 = vunpack.c.l.b16 %v980
        %v1686 = vunpack.c.h.b16 %v980
        %v1687 = vunpack.c.l.b16 %v981
        %v1688 = vunpack.c.h.b16 %v981
        %v1689 = vunpack.c.l.b16 %v982
        %v1690 = vunpack.c.h.b16 %v982
        %v1691 = vunpack.c.l.b16 %v983
        %v1692 = vunpack.c.h.b16 %v983
        %v1693 = vunpack.c.l.b16 %v984
        %v1694 = vunpack.c.h.b16 %v984
        %v1695 = vunpack.c.l.b16 %v985
        %v1696 = vunpack.c.h.b16 %v985
        %v1697 = vunpack.c.l.b16 %v986
        %v1698 = vunpack.c.h.b16 %v986
        %v1699 = vunpack.c.l.b16 %v987
        %v1700 = vunpack.c.h.b16 %v987
        %v1701 = vunpack.c.l.b16 %v988
        %v1702 = vunpack.c.h.b16 %v988
        %v1703 = vunpack.c.l.b16 %v989
        %v1704 = vunpack.c.h.b16 %v989
        %v1705 = vunpack.c.l.b16 %v990
        %v1706 = vunpack.c.h.b16 %v990
        %v1707 = vunpack.c.l.b16 %v991
        %v1708 = vunpack.c.h.b16 %v991
        %v1709 = vunpack.c.l.b16 %v992
        %v1710 = vunpack.c.h.b16 %v992
        %v1711 = vunpack.c.l.b16 %v993
        %v1712 = vunpack.c.h.b16 %v993
        %v1713 = vunpack.c.l.b16 %v994
        %v1714 = vunpack.c.h.b16 %v994
        %v1715 = vunpack.c.l.b16 %v995
        %v1716 = vunpack.c.h.b16 %v995
        %v1717 = vunpack.c.l.b16 %v996
        %v1718 = vunpack.c.h.b16 %v996
        %v1719 = vunpack.c.l.b16 %v997
        %v1720 = vunpack.c.h.b16 %v997
        %v1721 = vunpack.c.l.b16 %v998
        %v1722 = vunpack.c.h.b16 %v998
        %v1723 = vunpack.c.l.b16 %v999
        %v1724 = vunpack.c.h.b16 %v999
        %v1725 = vunpack.c.l.b16 %v1000
        %v1726 = vunpack.c.h.b16 %v1000
        %v1727 = vunpack.c.l.b16 %v1001
        %v1728 = vunpack.c.h.b16 %v1001
        %v1729 = vunpack.c.l.b16 %v1002
        %v1730 = vunpack.c.h.b16 %v1002
        %v1731 = vunpack.c.l.b16 %v1003
        %v1732 = vunpack.c.h.b16 %v1003
        %v1733 = vunpack.c.l.b16 %v1004
        %v1734 = vunpack.c.h.b16 %v1004
        %v1735 = vunpack.c.l.b16 %v1005
        %v1736 = vunpack.c.h.b16 %v1005
        %v1737 = vunpack.c.l.b16 %v1006
        %v1738 = vunpack.c.h.b16 %v1006
        %v1739 = vunpack.c.l.b16 %v1007
        %v1740 = vunpack.c.h.b16 %v1007
        %v1741 = vunpack.c.l.b16 %v1008
        %v1742 = vunpack.c.h.b16 %v1008
        %v1743 = vunpack.c.l.b16 %v1009
        %v1744 = vunpack.c.h.b16 %v1009
        %v1745 = vunpack.c.l.b16 %v1010
        %v1746 = vunpack.c.h.b16 %v1010
        %v1747 = vunpack.c.l.b16 %v1011
        %v1748 = vunpack.c.h.b16 %v1011
        %v1749 = vunpack.c.l.b16 %v1012
        %v1750 = vunpack.c.h.b16 %v1012
        %v1751 = vunpack.c.l.b16 %v1013
        %v1752 = vunpack.c.h.b16 %v1013
        %v1753 = vunpack.c.l.b16 %v1014
        %v1754 = vunpack.c.h.b16 %v1014
        %v1755 = vunpack.c.l.b16 %v1015
        %v1756 = vunpack.c.h.b16 %v1015
        %v1757 = vunpack.c.l.b16 %v1016
        %v1758 = vunpack.c.h.b16 %v1016
        %v1759 = vunpack.c.l.b16 %v1017
        %v1760 = vunpack.c.h.b16 %v1017
        %v1761 = vunpack.c.l.b16 %v1018
        %v1762 = vunpack.c.h.b16 %v1018
        %v1763 = vunpack.c.l.b16 %v1019
        %v1764 = vunpack.c.h.b16 %v1019
        %v1765 = vunpack.c.l.b16 %v1020
        %v1766 = vunpack.c.h.b16 %v1020
        %v1767 = vunpack.c.l.b16 %v1021
        %v1768 = vunpack.c.h.b16 %v1021
        %v1769 = vunpack.c.l.b16 %v1022
        %v1770 = vunpack.c.h.b16 %v1022
        %v1771 = vunpack.c.l.b16 %v1023
        %v1772 = vunpack.c.h.b16 %v1023
        %v1773 = vunpack.c.l.b16 %v1024
        %v1774 = vunpack.c.h.b16 %v1024
        %v1775 = vunpack.c.l.b16 %v1025
        %v1776 = vunpack.c.h.b16 %v1025
        %v1777 = vunpack.c.l.b16 %v1026
        %v1778 = vunpack.c.h.b16 %v1026
        %v1779 = vunpack.c.l.b16 %v1027
        %v1780 = vunpack.c.h.b16 %v1027
        %v1781 = vunpack.c.l.b16 %v1028
        %v1782 = vunpack.c.h.b16 %v1028
        %v1783 = vunpack.c.l.b16 %v1029
        %v1784 = vunpack.c.h.b16 %v1029
        %v1785 = vunpack.c.l.b16 %v1030
        %v1786 = vunpack.c.h.b16 %v1030
        %v1787 = vunpack.c.l.b16 %v1031
        %v1788 = vunpack.c.h.b16 %v1031
        %v1789 = vunpack.c.l.b16 %v1032
        %v1790 = vunpack.c.h.b16 %v1032
        %v1791 = vunpack.c.l.b16 %v1033
        %v1792 = vunpack.c.h.b16 %v1033
        %v1793 = vunpack.c.l.b16 %v1034
        %v1794 = vunpack.c.h.b16 %v1034
        %v1795 = vunpack.c.l.b16 %v1035
        %v1796 = vunpack.c.h.b16 %v1035
        %v1797 = vunpack.c.l.b16 %v1036
        %v1798 = vunpack.c.h.b16 %v1036
        %v1799 = vunpack.c.l.b16 %v1037
        %v1800 = vunpack.c.h.b16 %v1037
        %v1801 = vunpack.c.l.b16 %v1038
        %v1802 = vunpack.c.h.b16 %v1038
        %v1803 = vunpack.c.l.b16 %v1039
        %v1804 = vunpack.c.h.b16 %v1039
        %v1805 = vunpack.c.l.b16 %v1040
        %v1806 = vunpack.c.h.b16 %v1040
        %v1807 = vunpack.c.l.b16 %v1041
        %v1808 = vunpack.c.h.b16 %v1041
        %v1809 = vunpack.c.l.b16 %v1042
        %v1810 = vunpack.c.h.b16 %v1042
        %v1811 = vunpack.c.l.b16 %v1043
        %v1812 = vunpack.c.h.b16 %v1043
        %v1813 = vunpack.c.l.b16 %v1044
        %v1814 = vunpack.c.h.b16 %v1044
        %v1815 = vunpack.c.l.b16 %v1045
        %v1816 = vunpack.c.h.b16 %v1045
        %v1817 = vunpack.c.l.b16 %v1046
        %v1818 = vunpack.c.h.b16 %v1046
        %v1819 = vunpack.c.l.b16 %v1047
        %v1820 = vunpack.c.h.b16 %v1047
        %v1821 = vunpack.c.l.b16 %v1048
        %v1822 = vunpack.c.h.b16 %v1048
        %v1823 = vunpack.c.l.b16 %v1049
        %v1824 = vunpack.c.h.b16 %v1049
        %v1825 = vunpack.c.l.b16 %v1050
        %v1826 = vunpack.c.h.b16 %v1050
        %v1827 = vunpack.c.l.b16 %v1051
        %v1828 = vunpack.c.h.b16 %v1051
        %v1829 = vunpack.c.l.b16 %v1052
        %v1830 = vunpack.c.h.b16 %v1052
        %v1831 = vunpack.c.l.b16 %v1053
        %v1832 = vunpack.c.h.b16 %v1053
        %v1833 = vunpack.c.l.b16 %v1054
        %v1834 = vunpack.c.h.b16 %v1054
        %v1835 = vunpack.c.l.b16 %v1055
        %v1836 = vunpack.c.h.b16 %v1055
        %v1837 = vunpack.c.l.b16 %v1056
        %v1838 = vunpack.c.h.b16 %v1056
        %v1839 = vunpack.c.l.b16 %v1057
        %v1840 = vunpack.c.h.b16 %v1057
        %v1841 = vunpack.c.l.b16 %v1058
        %v1842 = vunpack.c.h.b16 %v1058
        %v1843 = vunpack.c.l.b16 %v1059
        %v1844 = vunpack.c.h.b16 %v1059
        %v1845 = vunpack.c.l.b16 %v1060
        %v1846 = vunpack.c.h.b16 %v1060
        %v1847 = vunpack.c.l.b16 %v1061
        %v1848 = vunpack.c.h.b16 %v1061
        %v1849 = vunpack.c.l.b16 %v1062
        %v1850 = vunpack.c.h.b16 %v1062
        %v1851 = vunpack.c.l.b16 %v1063
        %v1852 = vunpack.c.h.b16 %v1063
        %v1853 = vunpack.c.l.b16 %v1064
        %v1854 = vunpack.c.h.b16 %v1064
        %v1855 = vpack.c.b16 %v1351, %v1343
        %v1856 = vpack.c.b16 %v1352, %v1344
        %v1857 = vpack.c.b16 %v1353, %v1345
        %v1858 = vpack.c.b16 %v1354, %v1346
        %v1859 = vpack.c.b16 %v1355, %v1347
        %v1860 = vpack.c.b16 %v1356, %v1348
        %v1861 = vpack.c.b16 %v1357, %v1349
        %v1862 = vpack.c.b16 %v1358, %v1350
        %v1863 = vpack.c.b16 %v1367, %v1359
        %v1864 = vpack.c.b16 %v1368, %v1360
        %v1865 = vpack.c.b16 %v1369, %v1361
        %v1866 = vpack.c.b16 %v1370, %v1362
        %v1867 = vpack.c.b16 %v1371, %v1363
        %v1868 = vpack.c.b16 %v1372, %v1364
        %v1869 = vpack.c.b16 %v1373, %v1365
        %v1870 = vpack.c.b16 %v1374, %v1366
        %v1871 = vpack.c.b16 %v1383, %v1375
        %v1872 = vpack.c.b16 %v1384, %v1376
        %v1873 = vpack.c.b16 %v1385, %v1377
        %v1874 = vpack.c.b16 %v1386, %v1378
        %v1875 = vpack.c.b16 %v1387, %v1379
        %v1876 = vpack.c.b16 %v1388, %v1380
        %v1877 = vpack.c.b16 %v1389, %v1381
        %v1878 = vpack.c.b16 %v1390, %v1382
        %v1879 = vpack.c.b16 %v1399, %v1391
        %v1880 = vpack.c.b16 %v1400, %v1392
        %v1881 = vpack.c.b16 %v1401, %v1393
        %v1882 = vpack.c.b16 %v1402, %v1394
        %v1883 = vpack.c.b16 %v1403, %v1395
        %v1884 = vpack.c.b16 %v1404, %v1396
        %v1885 = vpack.c.b16 %v1405, %v1397
        %v1886 = vpack.c.b16 %v1406, %v1398
        %v1887 = vpack.c.b16 %v1415, %v1407
        %v1888 = vpack.c.b16 %v1416, %v1408
        %v1889 = vpack.c.b16 %v1417, %v1409
        %v1890 = vpack.c.b16 %v1418, %v1410
        %v1891 = vpack.c.b16 %v1419, %v1411
        %v1892 = vpack.c.b16 %v1420, %v1412
        %v1893 = vpack.c.b16 %v1421, %v1413
        %v1894 = vpack.c.b16 %v1422, %v1414
        %v1895 = vpack.c.b16 %v1431, %v1423
        %v1896 = vpack.c.b16 %v1432, %v1424
        %v1897 = vpack.c.b16 %v1433, %v1425
        %v1898 = vpack.c.b16 %v1434, %v1426
        %v1899 = vpack.c.b16 %v1435, %v1427
        %v1900 = vpack.c.b16 %v1436, %v1428
        %v1901 = vpack.c.b16 %v1437, %v1429
        %v1902 = vpack.c.b16 %v1438, %v1430
        %v1903 = vpack.c.b16 %v1447, %v1439
        %v1904 = vpack.c.b16 %v1448, %v1440
        %v1905 = vpack.c.b16 %v1449, %v1441
        %v1906 = vpack.c.b16 %v1450, %v1442
        %v1907 = vpack.c.b16 %v1451, %v1443
        %v1908 = vpack.c.b16 %v1452, %v1444
        %v1909 = vpack.c.b16 %v1453, %v1445
        %v1910 = vpack.c.b16 %v1454, %v1446
        %v1911 = vpack.c.b16 %v1463, %v1455
        %v1912 = vpack.c.b16 %v1464, %v1456
        %v1913 = vpack.c.b16 %v1465, %v1457
        %v1914 = vpack.c.b16 %v1466, %v1458
        %v1915 = vpack.c.b16 %v1467, %v1459
        %v1916 = vpack.c.b16 %v1468, %v1460
        %v1917 = vpack.c.b16 %v1469, %v1461
        %v1918 = vpack.c.b16 %v1470, %v1462
        %v1919 = vpack.c.b16 %v1479, %v1471
        %v1920 = vpack.c.b16 %v1480, %v1472
        %v1921 = vpack.c.b16 %v1481, %v1473
        %v1922 = vpack.c.b16 %v1482, %v1474
        %v1923 = vpack.c.b16 %v1483, %v1475
        %v1924 = vpack.c.b16 %v1484, %v1476
        %v1925 = vpack.c.b16 %v1485, %v1477
        %v1926 = vpack.c.b16 %v1486, %v1478
        %v1927 = vpack.c.b16 %v1495, %v1487
        %v1928 = vpack.c.b16 %v1496, %v1488
        %v1929 = vpack.c.b16 %v1497, %v1489
        %v1930 = vpack.c.b16 %v1498, %v1490
        %v1931 = vpack.c.b16 %v1499, %v1491
        %v1932 = vpack.c.b16 %v1500, %v1492
        %v1933 = vpack.c.b16 %v1501, %v1493
        %v1934 = vpack.c.b16 %v1502, %v1494
        %v1935 = vpack.c.b16 %v1511, %v1503
        %v1936 = vpack.c.b16 %v1512, %v1504
        %v1937 = vpack.c.b16 %v1513, %v1505
        %v1938 = vpack.c.b16 %v1514, %v1506
        %v1939 = vpack.c.b16 %v1515, %v1507
        %v1940 = vpack.c.b16 %v1516, %v1508
        %v1941 = vpack.c.b16 %v1517, %v1509
        %v1942 = vpack.c.b16 %v1518, %v1510
        %v1943 = vpack.c.b16 %v1527, %v1519
        %v1944 = vpack.c.b16 %v1528, %v1520
        %v1945 = vpack.c.b16 %v1529, %v1521
        %v1946 = vpack.c.b16 %v1530, %v1522
        %v1947 = vpack.c.b16 %v1531, %v1523
        %v1948 = vpack.c.b16 %v1532, %v1524
        %v1949 = vpack.c.b16 %v1533, %v1525
        %v1950 = vpack.c.b16 %v1534, %v1526
        %v1951 = vpack.c.b16 %v1543, %v1535
        %v1952 = vpack.c.b16 %v1544, %v1536
        %v1953 = vpack.c.b16 %v1545, %v1537
        %v1954 = vpack.c.b16 %v1546, %v1538
        %v1955 = vpack.c.b16 %v1547, %v1539
        %v1956 = vpack.c.b16 %v1548, %v1540
        %v1957 = vpack.c.b16 %v1549, %v1541
        %v1958 = vpack.c.b16 %v1550, %v1542
        %v1959 = vpack.c.b16 %v1559, %v1551
        %v1960 = vpack.c.b16 %v1560, %v1552
        %v1961 = vpack.c.b16 %v1561, %v1553
        %v1962 = vpack.c.b16 %v1562, %v1554
        %v1963 = vpack.c.b16 %v1563, %v1555
        %v1964 = vpack.c.b16 %v1564, %v1556
        %v1965 = vpack.c.b16 %v1565, %v1557
        %v1966 = vpack.c.b16 %v1566, %v1558
        %v1967 = vpack.c.b16 %v1575, %v1567
        %v1968 = vpack.c.b16 %v1576, %v1568
        %v1969 = vpack.c.b16 %v1577, %v1569
        %v1970 = vpack.c.b16 %v1578, %v1570
        %v1971 = vpack.c.b16 %v1579, %v1571
        %v1972 = vpack.c.b16 %v1580, %v1572
        %v1973 = vpack.c.b16 %v1581, %v1573
        %v1974 = vpack.c.b16 %v1582, %v1574
        %v1975 = vpack.c.b16 %v1591, %v1583
        %v1976 = vpack.c.b16 %v1592, %v1584
        %v1977 = vpack.c.b16 %v1593, %v1585
        %v1978 = vpack.c.b16 %v1594, %v1586
        %v1979 = vpack.c.b16 %v1595, %v1587
        %v1980 = vpack.c.b16 %v1596, %v1588
        %v1981 = vpack.c.b16 %v1597, %v1589
        %v1982 = vpack.c.b16 %v1598, %v1590
        %v1983 = vpack.c.b16 %v1607, %v1599
        %v1984 = vpack.c.b16 %v1608, %v1600
        %v1985 = vpack.c.b16 %v1609, %v1601
        %v1986 = vpack.c.b16 %v1610, %v1602
        %v1987 = vpack.c.b16 %v1611, %v1603
        %v1988 = vpack.c.b16 %v1612, %v1604
        %v1989 = vpack.c.b16 %v1613, %v1605
        %v1990 = vpack.c.b16 %v1614, %v1606
        %v1991 = vpack.c.b16 %v1623, %v1615
        %v1992 = vpack.c.b16 %v1624, %v1616
        %v1993 = vpack.c.b16 %v1625, %v1617
        %v1994 = vpack.c.b16 %v1626, %v1618
        %v1995 = vpack.c.b16 %v1627, %v1619
        %v1996 = vpack.c.b16 %v1628, %v1620
        %v1997 = vpack.c.b16 %v1629, %v1621
        %v1998 = vpack.c.b16 %v1630, %v1622
        %v1999 = vpack.c.b16 %v1639, %v1631
        %v2000 = vpack.c.b16 %v1640, %v1632
        %v2001 = vpack.c.b16 %v1641, %v1633
        %v2002 = vpack.c.b16 %v1642, %v1634
        %v2003 = vpack.c.b16 %v1643, %v1635
        %v2004 = vpack.c.b16 %v1644, %v1636
        %v2005 = vpack.c.b16 %v1645, %v1637
        %v2006 = vpack.c.b16 %v1646, %v1638
        %v2007 = vpack.c.b16 %v1655, %v1647
        %v2008 = vpack.c.b16 %v1656, %v1648
        %v2009 = vpack.c.b16 %v1657, %v1649
        %v2010 = vpack.c.b16 %v1658, %v1650
        %v2011 = vpack.c.b16 %v1659, %v1651
        %v2012 = vpack.c.b16 %v1660, %v1652
        %v2013 = vpack.c.b16 %v1661, %v1653
        %v2014 = vpack.c.b16 %v1662, %v1654
        %v2015 = vpack.c.b16 %v1671, %v1663
        %v2016 = vpack.c.b16 %v1672, %v1664
        %v2017 = vpack.c.b16 %v1673, %v1665
        %v2018 = vpack.c.b16 %v1674, %v1666
        %v2019 = vpack.c.b16 %v1675, %v1667
        %v2020 = vpack.c.b16 %v1676, %v1668
        %v2021 = vpack.c.b16 %v1677, %v1669
        %v2022 = vpack.c.b16 %v1678, %v1670
        %v2023 = vpack.c.b16 %v1687, %v1679
        %v2024 = vpack.c.b16 %v1688, %v1680
        %v2025 = vpack.c.b16 %v1689, %v1681
        %v2026 = vpack.c.b16 %v1690, %v1682
        %v2027 = vpack.c.b16 %v1691, %v1683
        %v2028 = vpack.c.b16 %v1692, %v1684
        %v2029 = vpack.c.b16 %v1693, %v1685
        %v2030 = vpack.c.b16 %v1694, %v1686
        %v2031 = vpack.c.b16 %v1703, %v1695
        %v2032 = vpack.c.b16 %v1704, %v1696
        %v2033 = vpack.c.b16 %v1705, %v1697
        %v2034 = vpack.c.b16 %v1706, %v1698
        %v2035 = vpack.c.b16 %v1707, %v1699
        %v2036 = vpack.c.b16 %v1708, %v1700
        %v2037 = vpack.c.b16 %v1709, %v1701
        %v2038 = vpack.c.b16 %v1710, %v1702
        %v2039 = vpack.c.b16 %v1719, %v1711
        %v2040 = vpack.c.b16 %v1720, %v1712
        %v2041 = vpack.c.b16 %v1721, %v1713
        %v2042 = vpack.c.b16 %v1722, %v1714
        %v2043 = vpack.c.b16 %v1723, %v1715
        %v2044 = vpack.c.b16 %v1724, %v1716
        %v2045 = vpack.c.b16 %v1725, %v1717
        %v2046 = vpack.c.b16 %v1726, %v1718
        %v2047 = vpack.c.b16 %v1735, %v1727
        %v2048 = vpack.c.b16 %v1736, %v1728
        %v2049 = vpack.c.b16 %v1737, %v1729
        %v2050 = vpack.c.b16 %v1738, %v1730
        %v2051 = vpack.c.b16 %v1739, %v1731
        %v2052 = vpack.c.b16 %v1740, %v1732
        %v2053 = vpack.c.b16 %v1741, %v1733
        %v2054 = vpack.c.b16 %v1742, %v1734
        %v2055 = vpack.c.b16 %v1751, %v1743
        %v2056 = vpack.c.b16 %v1752, %v1744
        %v2057 = vpack.c.b16 %v1753, %v1745
        %v2058 = vpack.c.b16 %v1754, %v1746
        %v2059 = vpack.c.b16 %v1755, %v1747
        %v2060 = vpack.c.b16 %v1756, %v1748
        %v2061 = vpack.c.b16 %v1757, %v1749
        %v2062 = vpack.c.b16 %v1758, %v1750
        %v2063 = vpack.c.b16 %v1767, %v1759
        %v2064 = vpack.c.b16 %v1768, %v1760
        %v2065 = vpack.c.b16 %v1769, %v1761
        %v2066 = vpack.c.b16 %v1770, %v1762
        %v2067 = vpack.c.b16 %v1771, %v1763
        %v2068 = vpack.c.b16 %v1772, %v1764
        %v2069 = vpack.c.b16 %v1773, %v1765
        %v2070 = vpack.c.b16 %v1774, %v1766
        %v2071 = vpack.c.b16 %v1783, %v1775
        %v2072 = vpack.c.b16 %v1784, %v1776
        %v2073 = vpack.c.b16 %v1785, %v1777
        %v2074 = vpack.c.b16 %v1786, %v1778
        %v2075 = vpack.c.b16 %v1787, %v1779
        %v2076 = vpack.c.b16 %v1788, %v1780
        %v2077 = vpack.c.b16 %v1789, %v1781
        %v2078 = vpack.c.b16 %v1790, %v1782
        %v2079 = vpack.c.b16 %v1799, %v1791
        %v2080 = vpack.c.b16 %v1800, %v1792
        %v2081 = vpack.c.b16 %v1801, %v1793
        %v2082 = vpack.c.b16 %v1802, %v1794
        %v2083 = vpack.c.b16 %v1803, %v1795
        %v2084 = vpack.c.b16 %v1804, %v1796
        %v2085 = vpack.c.b16 %v1805, %v1797
        %v2086 = vpack.c.b16 %v1806, %v1798
        %v2087 = vpack.c.b16 %v1815, %v1807
        %v2088 = vpack.c.b16 %v1816, %v1808
        %v2089 = vpack.c.b16 %v1817, %v1809
        %v2090 = vpack.c.b16 %v1818, %v1810
        %v2091 = vpack.c.b16 %v1819, %v1811
        %v2092 = vpack.c.b16 %v1820, %v1812
        %v2093 = vpack.c.b16 %v1821, %v1813
        %v2094 = vpack.c.b16 %v1822, %v1814
        %v2095 = vpack.c.b16 %v1831, %v1823
        %v2096 = vpack.c.b16 %v1832, %v1824
        %v2097 = vpack.c.b16 %v1833, %v1825
        %v2098 = vpack.c.b16 %v1834, %v1826
        %v2099 = vpack.c.b16 %v1835, %v1827
        %v2100 = vpack.c.b16 %v1836, %v1828
        %v2101 = vpack.c.b16 %v1837, %v1829
        %v2102 = vpack.c.b16 %v1838, %v1830
        %v2103 = vpack.c.b16 %v1847, %v1839
        %v2104 = vpack.c.b16 %v1848, %v1840
        %v2105 = vpack.c.b16 %v1849, %v1841
        %v2106 = vpack.c.b16 %v1850, %v1842
        %v2107 = vpack.c.b16 %v1851, %v1843
        %v2108 = vpack.c.b16 %v1852, %v1844
        %v2109 = vpack.c.b16 %v1853, %v1845
        %v2110 = vpack.c.b16 %v1854, %v1846
        %2367 = vmatprep.subr.bf16.mxu0 %v1856
        %2368 = vmatpush1.bf16.msra.mxu0 %v1855
        %2369 = vmatprep.subr.bf16.mxu0 %v1864
        %2370 = vmatpush1.bf16.msra.mxu0 %v1863
        %2371 = vmatprep.subr.bf16.mxu0 %v1872
        %2372 = vmatpush1.bf16.msra.mxu0 %v1871
        %2373 = vmatprep.subr.bf16.mxu0 %v1880
        %2374 = vmatpush1.bf16.msra.mxu0 %v1879
        %2375 = vmatprep.subr.bf16.mxu0 %v1888
        %2376 = vmatpush1.bf16.msra.mxu0 %v1887
        %2377 = vmatprep.subr.bf16.mxu0 %v1896
        %2378 = vmatpush1.bf16.msra.mxu0 %v1895
        %2379 = vmatprep.subr.bf16.mxu0 %v1904
        %2380 = vmatpush1.bf16.msra.mxu0 %v1903
        %2381 = vmatprep.subr.bf16.mxu0 %v1912
        %2382 = vmatpush1.bf16.msra.mxu0 %v1911
        %2383 = vmatprep.subr.bf16.mxu0 %v1920
        %2384 = vmatpush1.bf16.msra.mxu0 %v1919
        %2385 = vmatprep.subr.bf16.mxu0 %v1928
        %2386 = vmatpush1.bf16.msra.mxu0 %v1927
        %2387 = vmatprep.subr.bf16.mxu0 %v1936
        %2388 = vmatpush1.bf16.msra.mxu0 %v1935
        %2389 = vmatprep.subr.bf16.mxu0 %v1944
        %2390 = vmatpush1.bf16.msra.mxu0 %v1943
        %2391 = vmatprep.subr.bf16.mxu0 %v1952
        %2392 = vmatpush1.bf16.msra.mxu0 %v1951
        %2393 = vmatprep.subr.bf16.mxu0 %v1960
        %2394 = vmatpush1.bf16.msra.mxu0 %v1959
        %2395 = vmatprep.subr.bf16.mxu0 %v1968
        %2396 = vmatpush1.bf16.msra.mxu0 %v1967
        %2397 = vmatprep.subr.bf16.mxu0 %v1976
        %2398 = vmatpush1.bf16.msra.mxu0 %v1975
        %2399 = vmatprep.mubr.f32.mxu0 %v1081
        %2400 = vmatmul.mubr.f32.gmra.mrb[0].mxu0 %v1073
        %v2401 = vpop.f32.mrb[0].mxu0
        %v2402 = vadd.f32 0.0, %v2401
        %v2403 = vpop.f32.mrb[0].mxu0
        %v2404 = vadd.f32 0.0, %v2403
        %2405 = vdwg.mxu0
        %2406 = vmatprep.subr.bf16.mxu0 %v1984
        %2407 = vmatpush1.bf16.msra.mxu0 %v1983
        %2408 = vmatprep.subr.bf16.mxu0 %v1992
        %2409 = vmatpush1.bf16.msra.mxu0 %v1991
        %2410 = vmatprep.subr.bf16.mxu0 %v2000
        %2411 = vmatpush1.bf16.msra.mxu0 %v1999
        %2412 = vmatprep.subr.bf16.mxu0 %v2008
        %2413 = vmatpush1.bf16.msra.mxu0 %v2007
        %2414 = vmatprep.subr.bf16.mxu0 %v2016
        %2415 = vmatpush1.bf16.msra.mxu0 %v2015
        %2416 = vmatprep.subr.bf16.mxu0 %v2024
        %2417 = vmatpush1.bf16.msra.mxu0 %v2023
        %2418 = vmatprep.subr.bf16.mxu0 %v2032
        %2419 = vmatpush1.bf16.msra.mxu0 %v2031
        %2420 = vmatprep.subr.bf16.mxu0 %v2040
        %2421 = vmatpush1.bf16.msra.mxu0 %v2039
        %2422 = vmatprep.subr.bf16.mxu0 %v2048
        %2423 = vmatpush1.bf16.msra.mxu0 %v2047
        %2424 = vmatprep.subr.bf16.mxu0 %v2056
        %2425 = vmatpush1.bf16.msra.mxu0 %v2055
        %2426 = vmatprep.subr.bf16.mxu0 %v2064
        %2427 = vmatpush1.bf16.msra.mxu0 %v2063
        %2428 = vmatprep.subr.bf16.mxu0 %v2072
        %2429 = vmatpush1.bf16.msra.mxu0 %v2071
        %2430 = vmatprep.subr.bf16.mxu0 %v2080
        %2431 = vmatpush1.bf16.msra.mxu0 %v2079
        %2432 = vmatprep.subr.bf16.mxu0 %v2088
        %2433 = vmatpush1.bf16.msra.mxu0 %v2087
        %2434 = vmatprep.subr.bf16.mxu0 %v2096
        %2435 = vmatpush1.bf16.msra.mxu0 %v2095
        %2436 = vmatprep.subr.bf16.mxu0 %v2104
        %2437 = vmatpush1.bf16.msra.mxu0 %v2103
        %2438 = vmatprep.mubr.f32.mxu0 %v1082
        %2439 = vmatmul.mubr.f32.gmra.mrb[0].mxu0 %v1080
        %v2440 = vpop.f32.mrb[0].mxu0
        %v2441 = vadd.f32 %v2402, %v2440
        %v2442 = vpop.f32.mrb[0].mxu0
        %v2443 = vadd.f32 %v2404, %v2442
        %2444 = vdwg.mxu0
        %2445 = vmatprep.subr.bf16.mxu0 %v1858
        %2446 = vmatpush1.bf16.msra.mxu0 %v1857
        %2447 = vmatprep.subr.bf16.mxu0 %v1866
        %2448 = vmatpush1.bf16.msra.mxu0 %v1865
        %2449 = vmatprep.subr.bf16.mxu0 %v1874
        %2450 = vmatpush1.bf16.msra.mxu0 %v1873
        %2451 = vmatprep.subr.bf16.mxu0 %v1882
        %2452 = vmatpush1.bf16.msra.mxu0 %v1881
        %2453 = vmatprep.subr.bf16.mxu0 %v1890
        %2454 = vmatpush1.bf16.msra.mxu0 %v1889
        %2455 = vmatprep.subr.bf16.mxu0 %v1898
        %2456 = vmatpush1.bf16.msra.mxu0 %v1897
        %2457 = vmatprep.subr.bf16.mxu0 %v1906
        %2458 = vmatpush1.bf16.msra.mxu0 %v1905
        %2459 = vmatprep.subr.bf16.mxu0 %v1914
        %2460 = vmatpush1.bf16.msra.mxu0 %v1913
        %2461 = vmatprep.subr.bf16.mxu0 %v1922
        %2462 = vmatpush1.bf16.msra.mxu0 %v1921
        %2463 = vmatprep.subr.bf16.mxu0 %v1930
        %2464 = vmatpush1.bf16.msra.mxu0 %v1929
        %2465 = vmatprep.subr.bf16.mxu0 %v1938
        %2466 = vmatpush1.bf16.msra.mxu0 %v1937
        %2467 = vmatprep.subr.bf16.mxu0 %v1946
        %2468 = vmatpush1.bf16.msra.mxu0 %v1945
        %2469 = vmatprep.subr.bf16.mxu0 %v1954
        %2470 = vmatpush1.bf16.msra.mxu0 %v1953
        %2471 = vmatprep.subr.bf16.mxu0 %v1962
        %2472 = vmatpush1.bf16.msra.mxu0 %v1961
        %2473 = vmatprep.subr.bf16.mxu0 %v1970
        %2474 = vmatpush1.bf16.msra.mxu0 %v1969
        %2475 = vmatprep.subr.bf16.mxu0 %v1978
        %2476 = vmatpush1.bf16.msra.mxu0 %v1977
        %2477 = vmatprep.mubr.f32.mxu0 %v1081
        %2478 = vmatmul.mubr.f32.gmra.mrb[0].mxu0 %v1073
        %v2479 = vpop.f32.mrb[0].mxu0
        %v2480 = vadd.f32 0.0, %v2479
        %v2481 = vpop.f32.mrb[0].mxu0
        %v2482 = vadd.f32 0.0, %v2481
        %2483 = vdwg.mxu0
        %2484 = vmatprep.subr.bf16.mxu0 %v1986
        %2485 = vmatpush1.bf16.msra.mxu0 %v1985
        %2486 = vmatprep.subr.bf16.mxu0 %v1994
        %2487 = vmatpush1.bf16.msra.mxu0 %v1993
        %2488 = vmatprep.subr.bf16.mxu0 %v2002
        %2489 = vmatpush1.bf16.msra.mxu0 %v2001
        %2490 = vmatprep.subr.bf16.mxu0 %v2010
        %2491 = vmatpush1.bf16.msra.mxu0 %v2009
        %2492 = vmatprep.subr.bf16.mxu0 %v2018
        %2493 = vmatpush1.bf16.msra.mxu0 %v2017
        %2494 = vmatprep.subr.bf16.mxu0 %v2026
        %2495 = vmatpush1.bf16.msra.mxu0 %v2025
        %2496 = vmatprep.subr.bf16.mxu0 %v2034
        %2497 = vmatpush1.bf16.msra.mxu0 %v2033
        %2498 = vmatprep.subr.bf16.mxu0 %v2042
        %2499 = vmatpush1.bf16.msra.mxu0 %v2041
        %2500 = vmatprep.subr.bf16.mxu0 %v2050
        %2501 = vmatpush1.bf16.msra.mxu0 %v2049
        %2502 = vmatprep.subr.bf16.mxu0 %v2058
        %2503 = vmatpush1.bf16.msra.mxu0 %v2057
        %2504 = vmatprep.subr.bf16.mxu0 %v2066
        %2505 = vmatpush1.bf16.msra.mxu0 %v2065
        %2506 = vmatprep.subr.bf16.mxu0 %v2074
        %2507 = vmatpush1.bf16.msra.mxu0 %v2073
        %2508 = vmatprep.subr.bf16.mxu0 %v2082
        %2509 = vmatpush1.bf16.msra.mxu0 %v2081
        %2510 = vmatprep.subr.bf16.mxu0 %v2090
        %2511 = vmatpush1.bf16.msra.mxu0 %v2089
        %2512 = vmatprep.subr.bf16.mxu0 %v2098
        %2513 = vmatpush1.bf16.msra.mxu0 %v2097
        %2514 = vmatprep.subr.bf16.mxu0 %v2106
        %2515 = vmatpush1.bf16.msra.mxu0 %v2105
        %2516 = vmatprep.mubr.f32.mxu0 %v1082
        %2517 = vmatmul.mubr.f32.gmra.mrb[0].mxu0 %v1080
        %v2518 = vpop.f32.mrb[0].mxu0
        %v2519 = vadd.f32 %v2480, %v2518
        %v2520 = vpop.f32.mrb[0].mxu0
        %v2521 = vadd.f32 %v2482, %v2520
        %2522 = vdwg.mxu0
        %2523 = vmatprep.subr.bf16.mxu0 %v1860
        %2524 = vmatpush1.bf16.msra.mxu0 %v1859
        %2525 = vmatprep.subr.bf16.mxu0 %v1868
        %2526 = vmatpush1.bf16.msra.mxu0 %v1867
        %2527 = vmatprep.subr.bf16.mxu0 %v1876
        %2528 = vmatpush1.bf16.msra.mxu0 %v1875
        %2529 = vmatprep.subr.bf16.mxu0 %v1884
        %2530 = vmatpush1.bf16.msra.mxu0 %v1883
        %2531 = vmatprep.subr.bf16.mxu0 %v1892
        %2532 = vmatpush1.bf16.msra.mxu0 %v1891
        %2533 = vmatprep.subr.bf16.mxu0 %v1900
        %2534 = vmatpush1.bf16.msra.mxu0 %v1899
        %2535 = vmatprep.subr.bf16.mxu0 %v1908
        %2536 = vmatpush1.bf16.msra.mxu0 %v1907
        %2537 = vmatprep.subr.bf16.mxu0 %v1916
        %2538 = vmatpush1.bf16.msra.mxu0 %v1915
        %2539 = vmatprep.subr.bf16.mxu0 %v1924
        %2540 = vmatpush1.bf16.msra.mxu0 %v1923
        %2541 = vmatprep.subr.bf16.mxu0 %v1932
        %2542 = vmatpush1.bf16.msra.mxu0 %v1931
        %2543 = vmatprep.subr.bf16.mxu0 %v1940
        %2544 = vmatpush1.bf16.msra.mxu0 %v1939
        %2545 = vmatprep.subr.bf16.mxu0 %v1948
        %2546 = vmatpush1.bf16.msra.mxu0 %v1947
        %2547 = vmatprep.subr.bf16.mxu0 %v1956
        %2548 = vmatpush1.bf16.msra.mxu0 %v1955
        %2549 = vmatprep.subr.bf16.mxu0 %v1964
        %2550 = vmatpush1.bf16.msra.mxu0 %v1963
        %2551 = vmatprep.subr.bf16.mxu0 %v1972
        %2552 = vmatpush1.bf16.msra.mxu0 %v1971
        %2553 = vmatprep.subr.bf16.mxu0 %v1980
        %2554 = vmatpush1.bf16.msra.mxu0 %v1979
        %2555 = vmatprep.mubr.f32.mxu0 %v1081
        %2556 = vmatmul.mubr.f32.gmra.mrb[0].mxu0 %v1073
        %v2557 = vpop.f32.mrb[0].mxu0
        %v2558 = vadd.f32 0.0, %v2557
        %v2559 = vpop.f32.mrb[0].mxu0
        %v2560 = vadd.f32 0.0, %v2559
        %2561 = vdwg.mxu0
        %2562 = vmatprep.subr.bf16.mxu0 %v1988
        %2563 = vmatpush1.bf16.msra.mxu0 %v1987
        %2564 = vmatprep.subr.bf16.mxu0 %v1996
        %2565 = vmatpush1.bf16.msra.mxu0 %v1995
        %2566 = vmatprep.subr.bf16.mxu0 %v2004
        %2567 = vmatpush1.bf16.msra.mxu0 %v2003
        %2568 = vmatprep.subr.bf16.mxu0 %v2012
        %2569 = vmatpush1.bf16.msra.mxu0 %v2011
        %2570 = vmatprep.subr.bf16.mxu0 %v2020
        %2571 = vmatpush1.bf16.msra.mxu0 %v2019
        %2572 = vmatprep.subr.bf16.mxu0 %v2028
        %2573 = vmatpush1.bf16.msra.mxu0 %v2027
        %2574 = vmatprep.subr.bf16.mxu0 %v2036
        %2575 = vmatpush1.bf16.msra.mxu0 %v2035
        %2576 = vmatprep.subr.bf16.mxu0 %v2044
        %2577 = vmatpush1.bf16.msra.mxu0 %v2043
        %2578 = vmatprep.subr.bf16.mxu0 %v2052
        %2579 = vmatpush1.bf16.msra.mxu0 %v2051
        %2580 = vmatprep.subr.bf16.mxu0 %v2060
        %2581 = vmatpush1.bf16.msra.mxu0 %v2059
        %2582 = vmatprep.subr.bf16.mxu0 %v2068
        %2583 = vmatpush1.bf16.msra.mxu0 %v2067
        %2584 = vmatprep.subr.bf16.mxu0 %v2076
        %2585 = vmatpush1.bf16.msra.mxu0 %v2075
        %2586 = vmatprep.subr.bf16.mxu0 %v2084
        %2587 = vmatpush1.bf16.msra.mxu0 %v2083
        %2588 = vmatprep.subr.bf16.mxu0 %v2092
        %2589 = vmatpush1.bf16.msra.mxu0 %v2091
        %2590 = vmatprep.subr.bf16.mxu0 %v2100
        %2591 = vmatpush1.bf16.msra.mxu0 %v2099
        %2592 = vmatprep.subr.bf16.mxu0 %v2108
        %2593 = vmatpush1.bf16.msra.mxu0 %v2107
        %2594 = vmatprep.mubr.f32.mxu0 %v1082
        %2595 = vmatmul.mubr.f32.gmra.mrb[0].mxu0 %v1080
        %v2596 = vpop.f32.mrb[0].mxu0
        %v2597 = vadd.f32 %v2558, %v2596
        %v2598 = vpop.f32.mrb[0].mxu0
        %v2599 = vadd.f32 %v2560, %v2598
        %2600 = vdwg.mxu0
        %2601 = vmatprep.subr.bf16.mxu0 %v1862
        %2602 = vmatpush1.bf16.msra.mxu0 %v1861
        %2603 = vmatprep.subr.bf16.mxu0 %v1870
        %2604 = vmatpush1.bf16.msra.mxu0 %v1869
        %2605 = vmatprep.subr.bf16.mxu0 %v1878
        %2606 = vmatpush1.bf16.msra.mxu0 %v1877
        %2607 = vmatprep.subr.bf16.mxu0 %v1886
        %2608 = vmatpush1.bf16.msra.mxu0 %v1885
        %2609 = vmatprep.subr.bf16.mxu0 %v1894
        %2610 = vmatpush1.bf16.msra.mxu0 %v1893
        %2611 = vmatprep.subr.bf16.mxu0 %v1902
        %2612 = vmatpush1.bf16.msra.mxu0 %v1901
        %2613 = vmatprep.subr.bf16.mxu0 %v1910
        %2614 = vmatpush1.bf16.msra.mxu0 %v1909
        %2615 = vmatprep.subr.bf16.mxu0 %v1918
        %2616 = vmatpush1.bf16.msra.mxu0 %v1917
        %2617 = vmatprep.subr.bf16.mxu0 %v1926
        %2618 = vmatpush1.bf16.msra.mxu0 %v1925
        %2619 = vmatprep.subr.bf16.mxu0 %v1934
        %2620 = vmatpush1.bf16.msra.mxu0 %v1933
        %2621 = vmatprep.subr.bf16.mxu0 %v1942
        %2622 = vmatpush1.bf16.msra.mxu0 %v1941
        %2623 = vmatprep.subr.bf16.mxu0 %v1950
        %2624 = vmatpush1.bf16.msra.mxu0 %v1949
        %2625 = vmatprep.subr.bf16.mxu0 %v1958
        %2626 = vmatpush1.bf16.msra.mxu0 %v1957
        %2627 = vmatprep.subr.bf16.mxu0 %v1966
        %2628 = vmatpush1.bf16.msra.mxu0 %v1965
        %2629 = vmatprep.subr.bf16.mxu0 %v1974
        %2630 = vmatpush1.bf16.msra.mxu0 %v1973
        %2631 = vmatprep.subr.bf16.mxu0 %v1982
        %2632 = vmatpush1.bf16.msra.mxu0 %v1981
        %2633 = vmatprep.mubr.f32.mxu0 %v1081
        %2634 = vmatmul.mubr.f32.gmra.mrb[0].mxu0 %v1073
        %v2635 = vpop.f32.mrb[0].mxu0
        %v2636 = vadd.f32 0.0, %v2635
        %v2637 = vpop.f32.mrb[0].mxu0
        %v2638 = vadd.f32 0.0, %v2637
        %2639 = vdwg.mxu0
        %2640 = vmatprep.subr.bf16.mxu0 %v1990
        %2641 = vmatpush1.bf16.msra.mxu0 %v1989
        %2642 = vmatprep.subr.bf16.mxu0 %v1998
        %2643 = vmatpush1.bf16.msra.mxu0 %v1997
        %2644 = vmatprep.subr.bf16.mxu0 %v2006
        %2645 = vmatpush1.bf16.msra.mxu0 %v2005
        %2646 = vmatprep.subr.bf16.mxu0 %v2014
        %2647 = vmatpush1.bf16.msra.mxu0 %v2013
        %2648 = vmatprep.subr.bf16.mxu0 %v2022
        %2649 = vmatpush1.bf16.msra.mxu0 %v2021
        %2650 = vmatprep.subr.bf16.mxu0 %v2030
        %2651 = vmatpush1.bf16.msra.mxu0 %v2029
        %2652 = vmatprep.subr.bf16.mxu0 %v2038
        %2653 = vmatpush1.bf16.msra.mxu0 %v2037
        %2654 = vmatprep.subr.bf16.mxu0 %v2046
        %2655 = vmatpush1.bf16.msra.mxu0 %v2045
        %2656 = vmatprep.subr.bf16.mxu0 %v2054
        %2657 = vmatpush1.bf16.msra.mxu0 %v2053
        %2658 = vmatprep.subr.bf16.mxu0 %v2062
        %2659 = vmatpush1.bf16.msra.mxu0 %v2061
        %2660 = vmatprep.subr.bf16.mxu0 %v2070
        %2661 = vmatpush1.bf16.msra.mxu0 %v2069
        %2662 = vmatprep.subr.bf16.mxu0 %v2078
        %2663 = vmatpush1.bf16.msra.mxu0 %v2077
        %2664 = vmatprep.subr.bf16.mxu0 %v2086
        %2665 = vmatpush1.bf16.msra.mxu0 %v2085
        %2666 = vmatprep.subr.bf16.mxu0 %v2094
        %2667 = vmatpush1.bf16.msra.mxu0 %v2093
        %2668 = vmatprep.subr.bf16.mxu0 %v2102
        %2669 = vmatpush1.bf16.msra.mxu0 %v2101
        %2670 = vmatprep.subr.bf16.mxu0 %v2110
        %2671 = vmatpush1.bf16.msra.mxu0 %v2109
        %2672 = vmatprep.mubr.f32.mxu0 %v1082
        %2673 = vmatmul.mubr.f32.gmra.mrb[0].mxu0 %v1080
        %v2674 = vpop.f32.mrb[0].mxu0
        %v2675 = vadd.f32 %v2636, %v2674
        %v2676 = vpop.f32.mrb[0].mxu0
        %v2677 = vadd.f32 %v2638, %v2676
        %2678 = vdwg.mxu0
        %v2687 = vcombine.low %v2441, %v2443
        %v2688 = vcombine.low %v2519, %v2521
        %v2690 = vunpack.c.l.s4 1983009808
        %v2691 = vunpack.c.0.s8 %v2690
        %v2692 = vlaneseq
        %v2693 = vshrl.u32 %v2692, 7
        %v2694 = vsub.s32 %v2691, %v2693
        %v2695 = vrot.slane %v2687, %v2694
        %v2697 = vunpack.c.l.s4 1983009808
        %v2698 = vunpack.c.0.s8 %v2697
        %v2699 = vlaneseq
        %v2700 = vshrl.u32 %v2699, 7
        %v2701 = vsub.s32 %v2698, %v2700
        %v2702 = vrot.slane %v2688, %v2701
        %v2703 = vcombine.low %v2695, %v2702
        %v2704 = vcombine.low %v2597, %v2599
        %v2705 = vcombine.low %v2675, %v2677
        %v2707 = vunpack.c.l.s4 1983009808
        %v2708 = vunpack.c.0.s8 %v2707
        %v2709 = vlaneseq
        %v2710 = vshrl.u32 %v2709, 7
        %v2711 = vsub.s32 %v2708, %v2710
        %v2712 = vrot.slane %v2704, %v2711
        %v2714 = vunpack.c.l.s4 1983009808
        %v2715 = vunpack.c.0.s8 %v2714
        %v2716 = vlaneseq
        %v2717 = vshrl.u32 %v2716, 7
        %v2718 = vsub.s32 %v2715, %v2717
        %v2719 = vrot.slane %v2705, %v2718
        %v2720 = vcombine.low %v2712, %v2719
        %v2723 = vadd.f32 %v806, %v2703
        %v2724 = vadd.f32 %v807, %v2720
        %2725 = vst [vmem:[#allocation2] sm:$0xff] %v2723
        %2726 = vst [vmem:[#allocation2 + $0x8] sm:$0xff] %v2724
        %p2727 = scmp.eq.s32.totalorder %s29, 3
        // Predicated region
        $region85: #{dueling_net_forward.3} parent=71 // pred_check
          %p2728 = pneg %p2727
        $region86: #{dueling_net_forward.3} parent=71 // pred_check_branch
          %2730 = sbr.rel (%p2728) target = $region88
        $region87: #{dueling_net_forward.3} parent=71 // pred_region
          %v2731 = vld [vmem:[#allocation2] sm:$0xff]
          %v2732 = vld [vmem:[#allocation2 + $0x8] sm:$0xff]
          %v2733 = vmax.f32 %v2731, 0.0
          %v2734 = vmax.f32 %v2732, 0.0
          %v2735 = vld [vmem:[#allocation4] sm:$0xff]
          %v2736 = vld [vmem:[#allocation4 + $0x8] sm:$0xff]
          %v2737 = vld [vmem:[#allocation4 + $0x10] sm:$0xff]
          %v2738 = vld [vmem:[#allocation4 + $0x18] sm:$0xff]
          %v2739 = vld [vmem:[#allocation4 + $0x20] sm:$0xff]
          %v2740 = vld [vmem:[#allocation4 + $0x28] sm:$0xff]
          %v2741 = vld [vmem:[#allocation4 + $0x30] sm:$0xff]
          %v2742 = vld [vmem:[#allocation4 + $0x38] sm:$0xff]
          %v2743 = vld [vmem:[#allocation4 + $0x40] sm:$0xff]
          %v2744 = vld [vmem:[#allocation4 + $0x48] sm:$0xff]
          %v2745 = vld [vmem:[#allocation4 + $0x50] sm:$0xff]
          %v2746 = vld [vmem:[#allocation4 + $0x58] sm:$0xff]
          %v2747 = vld [vmem:[#allocation4 + $0x60] sm:$0xff]
          %v2748 = vld [vmem:[#allocation4 + $0x68] sm:$0xff]
          %v2749 = vld [vmem:[#allocation4 + $0x70] sm:$0xff]
          %v2750 = vld [vmem:[#allocation4 + $0x78] sm:$0xff]
          %v2751 = vld [vmem:[#allocation4 + $0x80] sm:$0xff]
          %v2752 = vld [vmem:[#allocation4 + $0x88] sm:$0xff]
          %v2753 = vld [vmem:[#allocation4 + $0x90] sm:$0xff]
          %v2754 = vld [vmem:[#allocation4 + $0x98] sm:$0xff]
          %v2755 = vld [vmem:[#allocation4 + $0xa0] sm:$0xff]
          %v2756 = vld [vmem:[#allocation4 + $0xa8] sm:$0xff]
          %v2757 = vld [vmem:[#allocation4 + $0xb0] sm:$0xff]
          %v2758 = vld [vmem:[#allocation4 + $0xb8] sm:$0xff]
          %v2759 = vld [vmem:[#allocation4 + $0xc0] sm:$0xff]
          %v2760 = vld [vmem:[#allocation4 + $0xc8] sm:$0xff]
          %v2761 = vld [vmem:[#allocation4 + $0xd0] sm:$0xff]
          %v2762 = vld [vmem:[#allocation4 + $0xd8] sm:$0xff]
          %v2763 = vld [vmem:[#allocation4 + $0xe0] sm:$0xff]
          %v2764 = vld [vmem:[#allocation4 + $0xe8] sm:$0xff]
          %v2765 = vld [vmem:[#allocation4 + $0xf0] sm:$0xff]
          %v2766 = vld [vmem:[#allocation4 + $0xf8] sm:$0xff]
          %v2767 = vld [vmem:[#allocation4 + $0x100] sm:$0xff]
          %v2768 = vld [vmem:[#allocation4 + $0x108] sm:$0xff]
          %v2769 = vld [vmem:[#allocation4 + $0x110] sm:$0xff]
          %v2770 = vld [vmem:[#allocation4 + $0x118] sm:$0xff]
          %v2771 = vld [vmem:[#allocation4 + $0x120] sm:$0xff]
          %v2772 = vld [vmem:[#allocation4 + $0x128] sm:$0xff]
          %v2773 = vld [vmem:[#allocation4 + $0x130] sm:$0xff]
          %v2774 = vld [vmem:[#allocation4 + $0x138] sm:$0xff]
          %v2775 = vld [vmem:[#allocation4 + $0x140] sm:$0xff]
          %v2776 = vld [vmem:[#allocation4 + $0x148] sm:$0xff]
          %v2777 = vld [vmem:[#allocation4 + $0x150] sm:$0xff]
          %v2778 = vld [vmem:[#allocation4 + $0x158] sm:$0xff]
          %v2779 = vld [vmem:[#allocation4 + $0x160] sm:$0xff]
          %v2780 = vld [vmem:[#allocation4 + $0x168] sm:$0xff]
          %v2781 = vld [vmem:[#allocation4 + $0x170] sm:$0xff]
          %v2782 = vld [vmem:[#allocation4 + $0x178] sm:$0xff]
          %v2783 = vld [vmem:[#allocation4 + $0x180] sm:$0xff]
          %v2784 = vld [vmem:[#allocation4 + $0x188] sm:$0xff]
          %v2785 = vld [vmem:[#allocation4 + $0x190] sm:$0xff]
          %v2786 = vld [vmem:[#allocation4 + $0x198] sm:$0xff]
          %v2787 = vld [vmem:[#allocation4 + $0x1a0] sm:$0xff]
          %v2788 = vld [vmem:[#allocation4 + $0x1a8] sm:$0xff]
          %v2789 = vld [vmem:[#allocation4 + $0x1b0] sm:$0xff]
          %v2790 = vld [vmem:[#allocation4 + $0x1b8] sm:$0xff]
          %v2791 = vld [vmem:[#allocation4 + $0x1c0] sm:$0xff]
          %v2792 = vld [vmem:[#allocation4 + $0x1c8] sm:$0xff]
          %v2793 = vld [vmem:[#allocation4 + $0x1d0] sm:$0xff]
          %v2794 = vld [vmem:[#allocation4 + $0x1d8] sm:$0xff]
          %v2795 = vld [vmem:[#allocation4 + $0x1e0] sm:$0xff]
          %v2796 = vld [vmem:[#allocation4 + $0x1e8] sm:$0xff]
          %v2797 = vld [vmem:[#allocation4 + $0x1f0] sm:$0xff]
          %v2798 = vld [vmem:[#allocation4 + $0x1f8] sm:$0xff]
          %v2799 = vld [vmem:[%s6] sm:$0x3]
          %v2801 = vlaneseq
          %v2802 = vshrl.u32 %v2801, 7
          %v2803 = vsub.s32 0, %v2802
          %v2804 = vrot.slane %v2799, %v2803
          %v2805 = vlaneseq
          %v2806 = vshrl.u32 %v2805, 7
          %v2807 = vsub.s32 1, %v2806
          %v2808 = vrot.slane %v2799, %v2807
          %v2812 = vcombine.high %v2733, %v2733
          %v2814 = vunpack.c.l.s4 1983009808
          %v2815 = vunpack.c.0.s8 %v2814
          %v2816 = vlaneseq
          %v2817 = vshrl.u32 %v2816, 7
          %v2818 = vsub.s32 %v2815, %v2817
          %v2819 = vrot.slane %v2733, %v2818
          %v2821 = vunpack.c.l.s4 1983009808
          %v2822 = vunpack.c.0.s8 %v2821
          %v2823 = vlaneseq
          %v2824 = vshrl.u32 %v2823, 7
          %v2825 = vsub.s32 %v2822, %v2824
          %v2826 = vrot.slane %v2812, %v2825
          %v2827 = vcombine.high %v2819, %v2819
          %v2828 = vcombine.high %v2826, %v2826
          %v2897 = vunpack.c.l.b16 %v2735
          %v2898 = vunpack.c.h.b16 %v2735
          %v2899 = vunpack.c.l.b16 %v2736
          %v2900 = vunpack.c.h.b16 %v2736
          %v2901 = vunpack.c.l.b16 %v2737
          %v2902 = vunpack.c.h.b16 %v2737
          %v2903 = vunpack.c.l.b16 %v2738
          %v2904 = vunpack.c.h.b16 %v2738
          %v2905 = vunpack.c.l.b16 %v2739
          %v2906 = vunpack.c.h.b16 %v2739
          %v2907 = vunpack.c.l.b16 %v2740
          %v2908 = vunpack.c.h.b16 %v2740
          %v2909 = vunpack.c.l.b16 %v2741
          %v2910 = vunpack.c.h.b16 %v2741
          %v2911 = vunpack.c.l.b16 %v2742
          %v2912 = vunpack.c.h.b16 %v2742
          %v2913 = vunpack.c.l.b16 %v2743
          %v2914 = vunpack.c.h.b16 %v2743
          %v2915 = vunpack.c.l.b16 %v2744
          %v2916 = vunpack.c.h.b16 %v2744
          %v2917 = vunpack.c.l.b16 %v2745
          %v2918 = vunpack.c.h.b16 %v2745
          %v2919 = vunpack.c.l.b16 %v2746
          %v2920 = vunpack.c.h.b16 %v2746
          %v2921 = vunpack.c.l.b16 %v2747
          %v2922 = vunpack.c.h.b16 %v2747
          %v2923 = vunpack.c.l.b16 %v2748
          %v2924 = vunpack.c.h.b16 %v2748
          %v2925 = vunpack.c.l.b16 %v2749
          %v2926 = vunpack.c.h.b16 %v2749
          %v2927 = vunpack.c.l.b16 %v2750
          %v2928 = vunpack.c.h.b16 %v2750
          %v2929 = vunpack.c.l.b16 %v2751
          %v2930 = vunpack.c.h.b16 %v2751
          %v2931 = vunpack.c.l.b16 %v2752
          %v2932 = vunpack.c.h.b16 %v2752
          %v2933 = vunpack.c.l.b16 %v2753
          %v2934 = vunpack.c.h.b16 %v2753
          %v2935 = vunpack.c.l.b16 %v2754
          %v2936 = vunpack.c.h.b16 %v2754
          %v2937 = vunpack.c.l.b16 %v2755
          %v2938 = vunpack.c.h.b16 %v2755
          %v2939 = vunpack.c.l.b16 %v2756
          %v2940 = vunpack.c.h.b16 %v2756
          %v2941 = vunpack.c.l.b16 %v2757
          %v2942 = vunpack.c.h.b16 %v2757
          %v2943 = vunpack.c.l.b16 %v2758
          %v2944 = vunpack.c.h.b16 %v2758
          %v2945 = vunpack.c.l.b16 %v2759
          %v2946 = vunpack.c.h.b16 %v2759
          %v2947 = vunpack.c.l.b16 %v2760
          %v2948 = vunpack.c.h.b16 %v2760
          %v2949 = vunpack.c.l.b16 %v2761
          %v2950 = vunpack.c.h.b16 %v2761
          %v2951 = vunpack.c.l.b16 %v2762
          %v2952 = vunpack.c.h.b16 %v2762
          %v2953 = vunpack.c.l.b16 %v2763
          %v2954 = vunpack.c.h.b16 %v2763
          %v2955 = vunpack.c.l.b16 %v2764
          %v2956 = vunpack.c.h.b16 %v2764
          %v2957 = vunpack.c.l.b16 %v2765
          %v2958 = vunpack.c.h.b16 %v2765
          %v2959 = vunpack.c.l.b16 %v2766
          %v2960 = vunpack.c.h.b16 %v2766
          %v2961 = vunpack.c.l.b16 %v2767
          %v2962 = vunpack.c.h.b16 %v2767
          %v2963 = vunpack.c.l.b16 %v2768
          %v2964 = vunpack.c.h.b16 %v2768
          %v2965 = vunpack.c.l.b16 %v2769
          %v2966 = vunpack.c.h.b16 %v2769
          %v2967 = vunpack.c.l.b16 %v2770
          %v2968 = vunpack.c.h.b16 %v2770
          %v2969 = vunpack.c.l.b16 %v2771
          %v2970 = vunpack.c.h.b16 %v2771
          %v2971 = vunpack.c.l.b16 %v2772
          %v2972 = vunpack.c.h.b16 %v2772
          %v2973 = vunpack.c.l.b16 %v2773
          %v2974 = vunpack.c.h.b16 %v2773
          %v2975 = vunpack.c.l.b16 %v2774
          %v2976 = vunpack.c.h.b16 %v2774
          %v2977 = vunpack.c.l.b16 %v2775
          %v2978 = vunpack.c.h.b16 %v2775
          %v2979 = vunpack.c.l.b16 %v2776
          %v2980 = vunpack.c.h.b16 %v2776
          %v2981 = vunpack.c.l.b16 %v2777
          %v2982 = vunpack.c.h.b16 %v2777
          %v2983 = vunpack.c.l.b16 %v2778
          %v2984 = vunpack.c.h.b16 %v2778
          %v2985 = vunpack.c.l.b16 %v2779
          %v2986 = vunpack.c.h.b16 %v2779
          %v2987 = vunpack.c.l.b16 %v2780
          %v2988 = vunpack.c.h.b16 %v2780
          %v2989 = vunpack.c.l.b16 %v2781
          %v2990 = vunpack.c.h.b16 %v2781
          %v2991 = vunpack.c.l.b16 %v2782
          %v2992 = vunpack.c.h.b16 %v2782
          %v2993 = vunpack.c.l.b16 %v2783
          %v2994 = vunpack.c.h.b16 %v2783
          %v2995 = vunpack.c.l.b16 %v2784
          %v2996 = vunpack.c.h.b16 %v2784
          %v2997 = vunpack.c.l.b16 %v2785
          %v2998 = vunpack.c.h.b16 %v2785
          %v2999 = vunpack.c.l.b16 %v2786
          %v3000 = vunpack.c.h.b16 %v2786
          %v3001 = vunpack.c.l.b16 %v2787
          %v3002 = vunpack.c.h.b16 %v2787
          %v3003 = vunpack.c.l.b16 %v2788
          %v3004 = vunpack.c.h.b16 %v2788
          %v3005 = vunpack.c.l.b16 %v2789
          %v3006 = vunpack.c.h.b16 %v2789
          %v3007 = vunpack.c.l.b16 %v2790
          %v3008 = vunpack.c.h.b16 %v2790
          %v3009 = vunpack.c.l.b16 %v2791
          %v3010 = vunpack.c.h.b16 %v2791
          %v3011 = vunpack.c.l.b16 %v2792
          %v3012 = vunpack.c.h.b16 %v2792
          %v3013 = vunpack.c.l.b16 %v2793
          %v3014 = vunpack.c.h.b16 %v2793
          %v3015 = vunpack.c.l.b16 %v2794
          %v3016 = vunpack.c.h.b16 %v2794
          %v3017 = vunpack.c.l.b16 %v2795
          %v3018 = vunpack.c.h.b16 %v2795
          %v3019 = vunpack.c.l.b16 %v2796
          %v3020 = vunpack.c.h.b16 %v2796
          %v3021 = vunpack.c.l.b16 %v2797
          %v3022 = vunpack.c.h.b16 %v2797
          %v3023 = vunpack.c.l.b16 %v2798
          %v3024 = vunpack.c.h.b16 %v2798
          %v3025 = vpack.c.b16 %v2899, %v2897
          %v3026 = vpack.c.b16 %v2900, %v2898
          %v3027 = vpack.c.b16 %v2903, %v2901
          %v3028 = vpack.c.b16 %v2904, %v2902
          %v3029 = vpack.c.b16 %v2907, %v2905
          %v3030 = vpack.c.b16 %v2908, %v2906
          %v3031 = vpack.c.b16 %v2911, %v2909
          %v3032 = vpack.c.b16 %v2912, %v2910
          %v3033 = vpack.c.b16 %v2915, %v2913
          %v3034 = vpack.c.b16 %v2916, %v2914
          %v3035 = vpack.c.b16 %v2919, %v2917
          %v3036 = vpack.c.b16 %v2920, %v2918
          %v3037 = vpack.c.b16 %v2923, %v2921
          %v3038 = vpack.c.b16 %v2924, %v2922
          %v3039 = vpack.c.b16 %v2927, %v2925
          %v3040 = vpack.c.b16 %v2928, %v2926
          %v3041 = vpack.c.b16 %v2931, %v2929
          %v3042 = vpack.c.b16 %v2932, %v2930
          %v3043 = vpack.c.b16 %v2935, %v2933
          %v3044 = vpack.c.b16 %v2936, %v2934
          %v3045 = vpack.c.b16 %v2939, %v2937
          %v3046 = vpack.c.b16 %v2940, %v2938
          %v3047 = vpack.c.b16 %v2943, %v2941
          %v3048 = vpack.c.b16 %v2944, %v2942
          %v3049 = vpack.c.b16 %v2947, %v2945
          %v3050 = vpack.c.b16 %v2948, %v2946
          %v3051 = vpack.c.b16 %v2951, %v2949
          %v3052 = vpack.c.b16 %v2952, %v2950
          %v3053 = vpack.c.b16 %v2955, %v2953
          %v3054 = vpack.c.b16 %v2956, %v2954
          %v3055 = vpack.c.b16 %v2959, %v2957
          %v3056 = vpack.c.b16 %v2960, %v2958
          %v3057 = vpack.c.b16 %v2963, %v2961
          %v3058 = vpack.c.b16 %v2964, %v2962
          %v3059 = vpack.c.b16 %v2967, %v2965
          %v3060 = vpack.c.b16 %v2968, %v2966
          %v3061 = vpack.c.b16 %v2971, %v2969
          %v3062 = vpack.c.b16 %v2972, %v2970
          %v3063 = vpack.c.b16 %v2975, %v2973
          %v3064 = vpack.c.b16 %v2976, %v2974
          %v3065 = vpack.c.b16 %v2979, %v2977
          %v3066 = vpack.c.b16 %v2980, %v2978
          %v3067 = vpack.c.b16 %v2983, %v2981
          %v3068 = vpack.c.b16 %v2984, %v2982
          %v3069 = vpack.c.b16 %v2987, %v2985
          %v3070 = vpack.c.b16 %v2988, %v2986
          %v3071 = vpack.c.b16 %v2991, %v2989
          %v3072 = vpack.c.b16 %v2992, %v2990
          %v3073 = vpack.c.b16 %v2995, %v2993
          %v3074 = vpack.c.b16 %v2996, %v2994
          %v3075 = vpack.c.b16 %v2999, %v2997
          %v3076 = vpack.c.b16 %v3000, %v2998
          %v3077 = vpack.c.b16 %v3003, %v3001
          %v3078 = vpack.c.b16 %v3004, %v3002
          %v3079 = vpack.c.b16 %v3007, %v3005
          %v3080 = vpack.c.b16 %v3008, %v3006
          %v3081 = vpack.c.b16 %v3011, %v3009
          %v3082 = vpack.c.b16 %v3012, %v3010
          %v3083 = vpack.c.b16 %v3015, %v3013
          %v3084 = vpack.c.b16 %v3016, %v3014
          %v3085 = vpack.c.b16 %v3019, %v3017
          %v3086 = vpack.c.b16 %v3020, %v3018
          %v3087 = vpack.c.b16 %v3023, %v3021
          %v3088 = vpack.c.b16 %v3024, %v3022
          %3153 = vmatprep.subr.bf16.mxu0 %v3026
          %3154 = vmatpush1.bf16.msra.mxu0 %v3025
          %3155 = vmatprep.subr.bf16.mxu0 %v3028
          %3156 = vmatpush1.bf16.msra.mxu0 %v3027
          %3157 = vmatprep.subr.bf16.mxu0 %v3030
          %3158 = vmatpush1.bf16.msra.mxu0 %v3029
          %3159 = vmatprep.subr.bf16.mxu0 %v3032
          %3160 = vmatpush1.bf16.msra.mxu0 %v3031
          %3161 = vmatprep.subr.bf16.mxu0 %v3034
          %3162 = vmatpush1.bf16.msra.mxu0 %v3033
          %3163 = vmatprep.subr.bf16.mxu0 %v3036
          %3164 = vmatpush1.bf16.msra.mxu0 %v3035
          %3165 = vmatprep.subr.bf16.mxu0 %v3038
          %3166 = vmatpush1.bf16.msra.mxu0 %v3037
          %3167 = vmatprep.subr.bf16.mxu0 %v3040
          %3168 = vmatpush1.bf16.msra.mxu0 %v3039
          %3169 = vmatprep.subr.bf16.mxu0 %v3042
          %3170 = vmatpush1.bf16.msra.mxu0 %v3041
          %3171 = vmatprep.subr.bf16.mxu0 %v3044
          %3172 = vmatpush1.bf16.msra.mxu0 %v3043
          %3173 = vmatprep.subr.bf16.mxu0 %v3046
          %3174 = vmatpush1.bf16.msra.mxu0 %v3045
          %3175 = vmatprep.subr.bf16.mxu0 %v3048
          %3176 = vmatpush1.bf16.msra.mxu0 %v3047
          %3177 = vmatprep.subr.bf16.mxu0 %v3050
          %3178 = vmatpush1.bf16.msra.mxu0 %v3049
          %3179 = vmatprep.subr.bf16.mxu0 %v3052
          %3180 = vmatpush1.bf16.msra.mxu0 %v3051
          %3181 = vmatprep.subr.bf16.mxu0 %v3054
          %3182 = vmatpush1.bf16.msra.mxu0 %v3053
          %3183 = vmatprep.subr.bf16.mxu0 %v3056
          %3184 = vmatpush1.bf16.msra.mxu0 %v3055
          %3185 = vmatprep.mubr.f32.mxu0 %v2827
          %3186 = vmatmul.mubr.f32.gmra.mrb[0].mxu0 %v2819
          %v3187 = vpop.f32.mrb[0].mxu0
          %v3188 = vadd.f32 %v2804, %v3187
          %v3189 = vpop.f32.mrb[0].mxu0
          %v3190 = vadd.f32 %v2808, %v3189
          %3191 = vdwg.mxu0
          %3192 = vmatprep.subr.bf16.mxu0 %v3058
          %3193 = vmatpush1.bf16.msra.mxu0 %v3057
          %3194 = vmatprep.subr.bf16.mxu0 %v3060
          %3195 = vmatpush1.bf16.msra.mxu0 %v3059
          %3196 = vmatprep.subr.bf16.mxu0 %v3062
          %3197 = vmatpush1.bf16.msra.mxu0 %v3061
          %3198 = vmatprep.subr.bf16.mxu0 %v3064
          %3199 = vmatpush1.bf16.msra.mxu0 %v3063
          %3200 = vmatprep.subr.bf16.mxu0 %v3066
          %3201 = vmatpush1.bf16.msra.mxu0 %v3065
          %3202 = vmatprep.subr.bf16.mxu0 %v3068
          %3203 = vmatpush1.bf16.msra.mxu0 %v3067
          %3204 = vmatprep.subr.bf16.mxu0 %v3070
          %3205 = vmatpush1.bf16.msra.mxu0 %v3069
          %3206 = vmatprep.subr.bf16.mxu0 %v3072
          %3207 = vmatpush1.bf16.msra.mxu0 %v3071
          %3208 = vmatprep.subr.bf16.mxu0 %v3074
          %3209 = vmatpush1.bf16.msra.mxu0 %v3073
          %3210 = vmatprep.subr.bf16.mxu0 %v3076
          %3211 = vmatpush1.bf16.msra.mxu0 %v3075
          %3212 = vmatprep.subr.bf16.mxu0 %v3078
          %3213 = vmatpush1.bf16.msra.mxu0 %v3077
          %3214 = vmatprep.subr.bf16.mxu0 %v3080
          %3215 = vmatpush1.bf16.msra.mxu0 %v3079
          %3216 = vmatprep.subr.bf16.mxu0 %v3082
          %3217 = vmatpush1.bf16.msra.mxu0 %v3081
          %3218 = vmatprep.subr.bf16.mxu0 %v3084
          %3219 = vmatpush1.bf16.msra.mxu0 %v3083
          %3220 = vmatprep.subr.bf16.mxu0 %v3086
          %3221 = vmatpush1.bf16.msra.mxu0 %v3085
          %3222 = vmatprep.subr.bf16.mxu0 %v3088
          %3223 = vmatpush1.bf16.msra.mxu0 %v3087
          %3224 = vmatprep.mubr.f32.mxu0 %v2828
          %3225 = vmatmul.mubr.f32.gmra.mrb[0].mxu0 %v2826
          %v3226 = vpop.f32.mrb[0].mxu0
          %v3227 = vadd.f32 %v3188, %v3226
          %v3228 = vpop.f32.mrb[0].mxu0
          %v3229 = vadd.f32 %v3190, %v3228
          %3230 = vdwg.mxu0
          %v3231 = vmax.f32 %v3227, 0.0
          %v3232 = vmax.f32 %v3229, 0.0
          %v3233 = vld [vmem:[%s7] sm:$0xf]
          %v3234 = vld [vmem:[%s7 + $0x4] sm:$0xf]
          %v3235 = vld [vmem:[%s7 + $0x8] sm:$0xf]
          %v3236 = vld [vmem:[%s7 + $0xc] sm:$0xf]
          %v3237 = vld [vmem:[%s7 + $0x10] sm:$0xf]
          %v3238 = vld [vmem:[%s7 + $0x14] sm:$0xf]
          %v3239 = vld [vmem:[%s7 + $0x18] sm:$0xf]
          %v3240 = vld [vmem:[%s7 + $0x1c] sm:$0xf]
          %v3241 = vld [vmem:[%s7 + $0x20] sm:$0xf]
          %v3242 = vld [vmem:[%s7 + $0x24] sm:$0xf]
          %v3243 = vld [vmem:[%s7 + $0x28] sm:$0xf]
          %v3244 = vld [vmem:[%s7 + $0x2c] sm:$0xf]
          %v3245 = vld [vmem:[%s7 + $0x30] sm:$0xf]
          %v3246 = vld [vmem:[%s7 + $0x34] sm:$0xf]
          %v3247 = vld [vmem:[%s7 + $0x38] sm:$0xf]
          %v3248 = vld [vmem:[%s7 + $0x3c] sm:$0xf]
          %v3249 = vld [vmem:[%s7 + $0x40] sm:$0xf]
          %v3250 = vld [vmem:[%s7 + $0x44] sm:$0xf]
          %v3251 = vld [vmem:[%s7 + $0x48] sm:$0xf]
          %v3252 = vld [vmem:[%s7 + $0x4c] sm:$0xf]
          %v3253 = vld [vmem:[%s7 + $0x50] sm:$0xf]
          %v3254 = vld [vmem:[%s7 + $0x54] sm:$0xf]
          %v3255 = vld [vmem:[%s7 + $0x58] sm:$0xf]
          %v3256 = vld [vmem:[%s7 + $0x5c] sm:$0xf]
          %v3257 = vld [vmem:[%s7 + $0x60] sm:$0xf]
          %v3258 = vld [vmem:[%s7 + $0x64] sm:$0xf]
          %v3259 = vld [vmem:[%s7 + $0x68] sm:$0xf]
          %v3260 = vld [vmem:[%s7 + $0x6c] sm:$0xf]
          %v3261 = vld [vmem:[%s7 + $0x70] sm:$0xf]
          %v3262 = vld [vmem:[%s7 + $0x74] sm:$0xf]
          %v3263 = vld [vmem:[%s7 + $0x78] sm:$0xf]
          %v3264 = vld [vmem:[%s7 + $0x7c] sm:$0xf]
          %v3265 = vld [vmem:[#allocation3] sm:$0x1]
          %v3267 = vlaneseq
          %v3268 = vshrl.u32 %v3267, 7
          %v3269 = vsub.s32 0, %v3268
          %v3270 = vrot.slane %v3265, %v3269
          %v3304 = vunpack.c.l.b16 %v3233
          %v3305 = vunpack.c.l.b16 %v3234
          %v3306 = vunpack.c.l.b16 %v3235
          %v3307 = vunpack.c.l.b16 %v3236
          %v3308 = vunpack.c.l.b16 %v3237
          %v3309 = vunpack.c.l.b16 %v3238
          %v3310 = vunpack.c.l.b16 %v3239
          %v3311 = vunpack.c.l.b16 %v3240
          %v3312 = vunpack.c.l.b16 %v3241
          %v3313 = vunpack.c.l.b16 %v3242
          %v3314 = vunpack.c.l.b16 %v3243
          %v3315 = vunpack.c.l.b16 %v3244
          %v3316 = vunpack.c.l.b16 %v3245
          %v3317 = vunpack.c.l.b16 %v3246
          %v3318 = vunpack.c.l.b16 %v3247
          %v3319 = vunpack.c.l.b16 %v3248
          %v3320 = vunpack.c.l.b16 %v3249
          %v3321 = vunpack.c.l.b16 %v3250
          %v3322 = vunpack.c.l.b16 %v3251
          %v3323 = vunpack.c.l.b16 %v3252
          %v3324 = vunpack.c.l.b16 %v3253
          %v3325 = vunpack.c.l.b16 %v3254
          %v3326 = vunpack.c.l.b16 %v3255
          %v3327 = vunpack.c.l.b16 %v3256
          %v3328 = vunpack.c.l.b16 %v3257
          %v3329 = vunpack.c.l.b16 %v3258
          %v3330 = vunpack.c.l.b16 %v3259
          %v3331 = vunpack.c.l.b16 %v3260
          %v3332 = vunpack.c.l.b16 %v3261
          %v3333 = vunpack.c.l.b16 %v3262
          %v3334 = vunpack.c.l.b16 %v3263
          %v3335 = vunpack.c.l.b16 %v3264
          %v3336 = vpack.c.b16 %v3305, %v3304
          %v3337 = vpack.c.b16 %v3307, %v3306
          %v3338 = vpack.c.b16 %v3309, %v3308
          %v3339 = vpack.c.b16 %v3311, %v3310
          %v3340 = vpack.c.b16 %v3313, %v3312
          %v3341 = vpack.c.b16 %v3315, %v3314
          %v3342 = vpack.c.b16 %v3317, %v3316
          %v3343 = vpack.c.b16 %v3319, %v3318
          %v3344 = vpack.c.b16 %v3321, %v3320
          %v3345 = vpack.c.b16 %v3323, %v3322
          %v3346 = vpack.c.b16 %v3325, %v3324
          %v3347 = vpack.c.b16 %v3327, %v3326
          %v3348 = vpack.c.b16 %v3329, %v3328
          %v3349 = vpack.c.b16 %v3331, %v3330
          %v3350 = vpack.c.b16 %v3333, %v3332
          %v3351 = vpack.c.b16 %v3335, %v3334
          %3368 = vmatprep.subr.bf16.mxu0 0
          %3369 = vmatpush1.bf16.msra.mxu0 %v3336
          %3370 = vmatprep.subr.bf16.mxu0 0
          %3371 = vmatpush1.bf16.msra.mxu0 %v3337
          %3372 = vmatprep.subr.bf16.mxu0 0
          %3373 = vmatpush1.bf16.msra.mxu0 %v3338
          %3374 = vmatprep.subr.bf16.mxu0 0
          %3375 = vmatpush1.bf16.msra.mxu0 %v3339
          %3376 = vmatprep.subr.bf16.mxu0 0
          %3377 = vmatpush1.bf16.msra.mxu0 %v3340
          %3378 = vmatprep.subr.bf16.mxu0 0
          %3379 = vmatpush1.bf16.msra.mxu0 %v3341
          %3380 = vmatprep.subr.bf16.mxu0 0
          %3381 = vmatpush1.bf16.msra.mxu0 %v3342
          %3382 = vmatprep.subr.bf16.mxu0 0
          %3383 = vmatpush1.bf16.msra.mxu0 %v3343
          %3384 = vmatprep.subr.bf16.mxu0 0
          %3385 = vmatpush1.bf16.msra.mxu0 %v3344
          %3386 = vmatprep.subr.bf16.mxu0 0
          %3387 = vmatpush1.bf16.msra.mxu0 %v3345
          %3388 = vmatprep.subr.bf16.mxu0 0
          %3389 = vmatpush1.bf16.msra.mxu0 %v3346
          %3390 = vmatprep.subr.bf16.mxu0 0
          %3391 = vmatpush1.bf16.msra.mxu0 %v3347
          %3392 = vmatprep.subr.bf16.mxu0 0
          %3393 = vmatpush1.bf16.msra.mxu0 %v3348
          %3394 = vmatprep.subr.bf16.mxu0 0
          %3395 = vmatpush1.bf16.msra.mxu0 %v3349
          %3396 = vmatprep.subr.bf16.mxu0 0
          %3397 = vmatpush1.bf16.msra.mxu0 %v3350
          %3398 = vmatprep.subr.bf16.mxu0 0
          %3399 = vmatpush1.bf16.msra.mxu0 %v3351
          %3400 = vmatprep.mubr.f32.mxu0 %v3232
          %3401 = vmatmul.mubr.f32.gmra.mrb[0].mxu0 %v3231
          %v3402 = vpop.f32.mrb[0].mxu0
          %v3403 = vadd.f32 %v3270, %v3402
          %v3404 = vpop.f32.mrb[0].mxu0
          %3405 = vdwg.mxu0
          %v3406 = vld [vmem:[#allocation7] sm:$0xff]
          %v3407 = vld [vmem:[#allocation7 + $0x8] sm:$0xff]
          %v3408 = vld [vmem:[#allocation7 + $0x10] sm:$0xff]
          %v3409 = vld [vmem:[#allocation7 + $0x18] sm:$0xff]
          %v3410 = vld [vmem:[#allocation7 + $0x20] sm:$0xff]
          %v3411 = vld [vmem:[#allocation7 + $0x28] sm:$0xff]
          %v3412 = vld [vmem:[#allocation7 + $0x30] sm:$0xff]
          %v3413 = vld [vmem:[#allocation7 + $0x38] sm:$0xff]
          %v3414 = vld [vmem:[#allocation7 + $0x40] sm:$0xff]
          %v3415 = vld [vmem:[#allocation7 + $0x48] sm:$0xff]
          %v3416 = vld [vmem:[#allocation7 + $0x50] sm:$0xff]
          %v3417 = vld [vmem:[#allocation7 + $0x58] sm:$0xff]
          %v3418 = vld [vmem:[#allocation7 + $0x60] sm:$0xff]
          %v3419 = vld [vmem:[#allocation7 + $0x68] sm:$0xff]
          %v3420 = vld [vmem:[#allocation7 + $0x70] sm:$0xff]
          %v3421 = vld [vmem:[#allocation7 + $0x78] sm:$0xff]
          %v3422 = vld [vmem:[#allocation7 + $0x80] sm:$0xff]
          %v3423 = vld [vmem:[#allocation7 + $0x88] sm:$0xff]
          %v3424 = vld [vmem:[#allocation7 + $0x90] sm:$0xff]
          %v3425 = vld [vmem:[#allocation7 + $0x98] sm:$0xff]
          %v3426 = vld [vmem:[#allocation7 + $0xa0] sm:$0xff]
          %v3427 = vld [vmem:[#allocation7 + $0xa8] sm:$0xff]
          %v3428 = vld [vmem:[#allocation7 + $0xb0] sm:$0xff]
          %v3429 = vld [vmem:[#allocation7 + $0xb8] sm:$0xff]
          %v3430 = vld [vmem:[#allocation7 + $0xc0] sm:$0xff]
          %v3431 = vld [vmem:[#allocation7 + $0xc8] sm:$0xff]
          %v3432 = vld [vmem:[#allocation7 + $0xd0] sm:$0xff]
          %v3433 = vld [vmem:[#allocation7 + $0xd8] sm:$0xff]
          %v3434 = vld [vmem:[#allocation7 + $0xe0] sm:$0xff]
          %v3435 = vld [vmem:[#allocation7 + $0xe8] sm:$0xff]
          %v3436 = vld [vmem:[#allocation7 + $0xf0] sm:$0xff]
          %v3437 = vld [vmem:[#allocation7 + $0xf8] sm:$0xff]
          %v3438 = vld [vmem:[#allocation7 + $0x100] sm:$0xff]
          %v3439 = vld [vmem:[#allocation7 + $0x108] sm:$0xff]
          %v3440 = vld [vmem:[#allocation7 + $0x110] sm:$0xff]
          %v3441 = vld [vmem:[#allocation7 + $0x118] sm:$0xff]
          %v3442 = vld [vmem:[#allocation7 + $0x120] sm:$0xff]
          %v3443 = vld [vmem:[#allocation7 + $0x128] sm:$0xff]
          %v3444 = vld [vmem:[#allocation7 + $0x130] sm:$0xff]
          %v3445 = vld [vmem:[#allocation7 + $0x138] sm:$0xff]
          %v3446 = vld [vmem:[#allocation7 + $0x140] sm:$0xff]
          %v3447 = vld [vmem:[#allocation7 + $0x148] sm:$0xff]
          %v3448 = vld [vmem:[#allocation7 + $0x150] sm:$0xff]
          %v3449 = vld [vmem:[#allocation7 + $0x158] sm:$0xff]
          %v3450 = vld [vmem:[#allocation7 + $0x160] sm:$0xff]
          %v3451 = vld [vmem:[#allocation7 + $0x168] sm:$0xff]
          %v3452 = vld [vmem:[#allocation7 + $0x170] sm:$0xff]
          %v3453 = vld [vmem:[#allocation7 + $0x178] sm:$0xff]
          %v3454 = vld [vmem:[#allocation7 + $0x180] sm:$0xff]
          %v3455 = vld [vmem:[#allocation7 + $0x188] sm:$0xff]
          %v3456 = vld [vmem:[#allocation7 + $0x190] sm:$0xff]
          %v3457 = vld [vmem:[#allocation7 + $0x198] sm:$0xff]
          %v3458 = vld [vmem:[#allocation7 + $0x1a0] sm:$0xff]
          %v3459 = vld [vmem:[#allocation7 + $0x1a8] sm:$0xff]
          %v3460 = vld [vmem:[#allocation7 + $0x1b0] sm:$0xff]
          %v3461 = vld [vmem:[#allocation7 + $0x1b8] sm:$0xff]
          %v3462 = vld [vmem:[#allocation7 + $0x1c0] sm:$0xff]
          %v3463 = vld [vmem:[#allocation7 + $0x1c8] sm:$0xff]
          %v3464 = vld [vmem:[#allocation7 + $0x1d0] sm:$0xff]
          %v3465 = vld [vmem:[#allocation7 + $0x1d8] sm:$0xff]
          %v3466 = vld [vmem:[#allocation7 + $0x1e0] sm:$0xff]
          %v3467 = vld [vmem:[#allocation7 + $0x1e8] sm:$0xff]
          %v3468 = vld [vmem:[#allocation7 + $0x1f0] sm:$0xff]
          %v3469 = vld [vmem:[#allocation7 + $0x1f8] sm:$0xff]
          %v3470 = vld [vmem:[%s10] sm:$0x3]
          %v3472 = vlaneseq
          %v3473 = vshrl.u32 %v3472, 7
          %v3474 = vsub.s32 0, %v3473
          %v3475 = vrot.slane %v3470, %v3474
          %v3476 = vlaneseq
          %v3477 = vshrl.u32 %v3476, 7
          %v3478 = vsub.s32 1, %v3477
          %v3479 = vrot.slane %v3470, %v3478
          %v3483 = vcombine.high %v2734, %v2734
          %v3485 = vunpack.c.l.s4 1983009808
          %v3486 = vunpack.c.0.s8 %v3485
          %v3487 = vlaneseq
          %v3488 = vshrl.u32 %v3487, 7
          %v3489 = vsub.s32 %v3486, %v3488
          %v3490 = vrot.slane %v2734, %v3489
          %v3492 = vunpack.c.l.s4 1983009808
          %v3493 = vunpack.c.0.s8 %v3492
          %v3494 = vlaneseq
          %v3495 = vshrl.u32 %v3494, 7
          %v3496 = vsub.s32 %v3493, %v3495
          %v3497 = vrot.slane %v3483, %v3496
          %v3498 = vcombine.high %v3490, %v3490
          %v3499 = vcombine.high %v3497, %v3497
          %v3568 = vunpack.c.l.b16 %v3406
          %v3569 = vunpack.c.h.b16 %v3406
          %v3570 = vunpack.c.l.b16 %v3407
          %v3571 = vunpack.c.h.b16 %v3407
          %v3572 = vunpack.c.l.b16 %v3408
          %v3573 = vunpack.c.h.b16 %v3408
          %v3574 = vunpack.c.l.b16 %v3409
          %v3575 = vunpack.c.h.b16 %v3409
          %v3576 = vunpack.c.l.b16 %v3410
          %v3577 = vunpack.c.h.b16 %v3410
          %v3578 = vunpack.c.l.b16 %v3411
          %v3579 = vunpack.c.h.b16 %v3411
          %v3580 = vunpack.c.l.b16 %v3412
          %v3581 = vunpack.c.h.b16 %v3412
          %v3582 = vunpack.c.l.b16 %v3413
          %v3583 = vunpack.c.h.b16 %v3413
          %v3584 = vunpack.c.l.b16 %v3414
          %v3585 = vunpack.c.h.b16 %v3414
          %v3586 = vunpack.c.l.b16 %v3415
          %v3587 = vunpack.c.h.b16 %v3415
          %v3588 = vunpack.c.l.b16 %v3416
          %v3589 = vunpack.c.h.b16 %v3416
          %v3590 = vunpack.c.l.b16 %v3417
          %v3591 = vunpack.c.h.b16 %v3417
          %v3592 = vunpack.c.l.b16 %v3418
          %v3593 = vunpack.c.h.b16 %v3418
          %v3594 = vunpack.c.l.b16 %v3419
          %v3595 = vunpack.c.h.b16 %v3419
          %v3596 = vunpack.c.l.b16 %v3420
          %v3597 = vunpack.c.h.b16 %v3420
          %v3598 = vunpack.c.l.b16 %v3421
          %v3599 = vunpack.c.h.b16 %v3421
          %v3600 = vunpack.c.l.b16 %v3422
          %v3601 = vunpack.c.h.b16 %v3422
          %v3602 = vunpack.c.l.b16 %v3423
          %v3603 = vunpack.c.h.b16 %v3423
          %v3604 = vunpack.c.l.b16 %v3424
          %v3605 = vunpack.c.h.b16 %v3424
          %v3606 = vunpack.c.l.b16 %v3425
          %v3607 = vunpack.c.h.b16 %v3425
          %v3608 = vunpack.c.l.b16 %v3426
          %v3609 = vunpack.c.h.b16 %v3426
          %v3610 = vunpack.c.l.b16 %v3427
          %v3611 = vunpack.c.h.b16 %v3427
          %v3612 = vunpack.c.l.b16 %v3428
          %v3613 = vunpack.c.h.b16 %v3428
          %v3614 = vunpack.c.l.b16 %v3429
          %v3615 = vunpack.c.h.b16 %v3429
          %v3616 = vunpack.c.l.b16 %v3430
          %v3617 = vunpack.c.h.b16 %v3430
          %v3618 = vunpack.c.l.b16 %v3431
          %v3619 = vunpack.c.h.b16 %v3431
          %v3620 = vunpack.c.l.b16 %v3432
          %v3621 = vunpack.c.h.b16 %v3432
          %v3622 = vunpack.c.l.b16 %v3433
          %v3623 = vunpack.c.h.b16 %v3433
          %v3624 = vunpack.c.l.b16 %v3434
          %v3625 = vunpack.c.h.b16 %v3434
          %v3626 = vunpack.c.l.b16 %v3435
          %v3627 = vunpack.c.h.b16 %v3435
          %v3628 = vunpack.c.l.b16 %v3436
          %v3629 = vunpack.c.h.b16 %v3436
          %v3630 = vunpack.c.l.b16 %v3437
          %v3631 = vunpack.c.h.b16 %v3437
          %v3632 = vunpack.c.l.b16 %v3438
          %v3633 = vunpack.c.h.b16 %v3438
          %v3634 = vunpack.c.l.b16 %v3439
          %v3635 = vunpack.c.h.b16 %v3439
          %v3636 = vunpack.c.l.b16 %v3440
          %v3637 = vunpack.c.h.b16 %v3440
          %v3638 = vunpack.c.l.b16 %v3441
          %v3639 = vunpack.c.h.b16 %v3441
          %v3640 = vunpack.c.l.b16 %v3442
          %v3641 = vunpack.c.h.b16 %v3442
          %v3642 = vunpack.c.l.b16 %v3443
          %v3643 = vunpack.c.h.b16 %v3443
          %v3644 = vunpack.c.l.b16 %v3444
          %v3645 = vunpack.c.h.b16 %v3444
          %v3646 = vunpack.c.l.b16 %v3445
          %v3647 = vunpack.c.h.b16 %v3445
          %v3648 = vunpack.c.l.b16 %v3446
          %v3649 = vunpack.c.h.b16 %v3446
          %v3650 = vunpack.c.l.b16 %v3447
          %v3651 = vunpack.c.h.b16 %v3447
          %v3652 = vunpack.c.l.b16 %v3448
          %v3653 = vunpack.c.h.b16 %v3448
          %v3654 = vunpack.c.l.b16 %v3449
          %v3655 = vunpack.c.h.b16 %v3449
          %v3656 = vunpack.c.l.b16 %v3450
          %v3657 = vunpack.c.h.b16 %v3450
          %v3658 = vunpack.c.l.b16 %v3451
          %v3659 = vunpack.c.h.b16 %v3451
          %v3660 = vunpack.c.l.b16 %v3452
          %v3661 = vunpack.c.h.b16 %v3452
          %v3662 = vunpack.c.l.b16 %v3453
          %v3663 = vunpack.c.h.b16 %v3453
          %v3664 = vunpack.c.l.b16 %v3454
          %v3665 = vunpack.c.h.b16 %v3454
          %v3666 = vunpack.c.l.b16 %v3455
          %v3667 = vunpack.c.h.b16 %v3455
          %v3668 = vunpack.c.l.b16 %v3456
          %v3669 = vunpack.c.h.b16 %v3456
          %v3670 = vunpack.c.l.b16 %v3457
          %v3671 = vunpack.c.h.b16 %v3457
          %v3672 = vunpack.c.l.b16 %v3458
          %v3673 = vunpack.c.h.b16 %v3458
          %v3674 = vunpack.c.l.b16 %v3459
          %v3675 = vunpack.c.h.b16 %v3459
          %v3676 = vunpack.c.l.b16 %v3460
          %v3677 = vunpack.c.h.b16 %v3460
          %v3678 = vunpack.c.l.b16 %v3461
          %v3679 = vunpack.c.h.b16 %v3461
          %v3680 = vunpack.c.l.b16 %v3462
          %v3681 = vunpack.c.h.b16 %v3462
          %v3682 = vunpack.c.l.b16 %v3463
          %v3683 = vunpack.c.h.b16 %v3463
          %v3684 = vunpack.c.l.b16 %v3464
          %v3685 = vunpack.c.h.b16 %v3464
          %v3686 = vunpack.c.l.b16 %v3465
          %v3687 = vunpack.c.h.b16 %v3465
          %v3688 = vunpack.c.l.b16 %v3466
          %v3689 = vunpack.c.h.b16 %v3466
          %v3690 = vunpack.c.l.b16 %v3467
          %v3691 = vunpack.c.h.b16 %v3467
          %v3692 = vunpack.c.l.b16 %v3468
          %v3693 = vunpack.c.h.b16 %v3468
          %v3694 = vunpack.c.l.b16 %v3469
          %v3695 = vunpack.c.h.b16 %v3469
          %v3696 = vpack.c.b16 %v3570, %v3568
          %v3697 = vpack.c.b16 %v3571, %v3569
          %v3698 = vpack.c.b16 %v3574, %v3572
          %v3699 = vpack.c.b16 %v3575, %v3573
          %v3700 = vpack.c.b16 %v3578, %v3576
          %v3701 = vpack.c.b16 %v3579, %v3577
          %v3702 = vpack.c.b16 %v3582, %v3580
          %v3703 = vpack.c.b16 %v3583, %v3581
          %v3704 = vpack.c.b16 %v3586, %v3584
          %v3705 = vpack.c.b16 %v3587, %v3585
          %v3706 = vpack.c.b16 %v3590, %v3588
          %v3707 = vpack.c.b16 %v3591, %v3589
          %v3708 = vpack.c.b16 %v3594, %v3592
          %v3709 = vpack.c.b16 %v3595, %v3593
          %v3710 = vpack.c.b16 %v3598, %v3596
          %v3711 = vpack.c.b16 %v3599, %v3597
          %v3712 = vpack.c.b16 %v3602, %v3600
          %v3713 = vpack.c.b16 %v3603, %v3601
          %v3714 = vpack.c.b16 %v3606, %v3604
          %v3715 = vpack.c.b16 %v3607, %v3605
          %v3716 = vpack.c.b16 %v3610, %v3608
          %v3717 = vpack.c.b16 %v3611, %v3609
          %v3718 = vpack.c.b16 %v3614, %v3612
          %v3719 = vpack.c.b16 %v3615, %v3613
          %v3720 = vpack.c.b16 %v3618, %v3616
          %v3721 = vpack.c.b16 %v3619, %v3617
          %v3722 = vpack.c.b16 %v3622, %v3620
          %v3723 = vpack.c.b16 %v3623, %v3621
          %v3724 = vpack.c.b16 %v3626, %v3624
          %v3725 = vpack.c.b16 %v3627, %v3625
          %v3726 = vpack.c.b16 %v3630, %v3628
          %v3727 = vpack.c.b16 %v3631, %v3629
          %v3728 = vpack.c.b16 %v3634, %v3632
          %v3729 = vpack.c.b16 %v3635, %v3633
          %v3730 = vpack.c.b16 %v3638, %v3636
          %v3731 = vpack.c.b16 %v3639, %v3637
          %v3732 = vpack.c.b16 %v3642, %v3640
          %v3733 = vpack.c.b16 %v3643, %v3641
          %v3734 = vpack.c.b16 %v3646, %v3644
          %v3735 = vpack.c.b16 %v3647, %v3645
          %v3736 = vpack.c.b16 %v3650, %v3648
          %v3737 = vpack.c.b16 %v3651, %v3649
          %v3738 = vpack.c.b16 %v3654, %v3652
          %v3739 = vpack.c.b16 %v3655, %v3653
          %v3740 = vpack.c.b16 %v3658, %v3656
          %v3741 = vpack.c.b16 %v3659, %v3657
          %v3742 = vpack.c.b16 %v3662, %v3660
          %v3743 = vpack.c.b16 %v3663, %v3661
          %v3744 = vpack.c.b16 %v3666, %v3664
          %v3745 = vpack.c.b16 %v3667, %v3665
          %v3746 = vpack.c.b16 %v3670, %v3668
          %v3747 = vpack.c.b16 %v3671, %v3669
          %v3748 = vpack.c.b16 %v3674, %v3672
          %v3749 = vpack.c.b16 %v3675, %v3673
          %v3750 = vpack.c.b16 %v3678, %v3676
          %v3751 = vpack.c.b16 %v3679, %v3677
          %v3752 = vpack.c.b16 %v3682, %v3680
          %v3753 = vpack.c.b16 %v3683, %v3681
          %v3754 = vpack.c.b16 %v3686, %v3684
          %v3755 = vpack.c.b16 %v3687, %v3685
          %v3756 = vpack.c.b16 %v3690, %v3688
          %v3757 = vpack.c.b16 %v3691, %v3689
          %v3758 = vpack.c.b16 %v3694, %v3692
          %v3759 = vpack.c.b16 %v3695, %v3693
          %3824 = vmatprep.subr.bf16.mxu0 %v3697
          %3825 = vmatpush1.bf16.msra.mxu0 %v3696
          %3826 = vmatprep.subr.bf16.mxu0 %v3699
          %3827 = vmatpush1.bf16.msra.mxu0 %v3698
          %3828 = vmatprep.subr.bf16.mxu0 %v3701
          %3829 = vmatpush1.bf16.msra.mxu0 %v3700
          %3830 = vmatprep.subr.bf16.mxu0 %v3703
          %3831 = vmatpush1.bf16.msra.mxu0 %v3702
          %3832 = vmatprep.subr.bf16.mxu0 %v3705
          %3833 = vmatpush1.bf16.msra.mxu0 %v3704
          %3834 = vmatprep.subr.bf16.mxu0 %v3707
          %3835 = vmatpush1.bf16.msra.mxu0 %v3706
          %3836 = vmatprep.subr.bf16.mxu0 %v3709
          %3837 = vmatpush1.bf16.msra.mxu0 %v3708
          %3838 = vmatprep.subr.bf16.mxu0 %v3711
          %3839 = vmatpush1.bf16.msra.mxu0 %v3710
          %3840 = vmatprep.subr.bf16.mxu0 %v3713
          %3841 = vmatpush1.bf16.msra.mxu0 %v3712
          %3842 = vmatprep.subr.bf16.mxu0 %v3715
          %3843 = vmatpush1.bf16.msra.mxu0 %v3714
          %3844 = vmatprep.subr.bf16.mxu0 %v3717
          %3845 = vmatpush1.bf16.msra.mxu0 %v3716
          %3846 = vmatprep.subr.bf16.mxu0 %v3719
          %3847 = vmatpush1.bf16.msra.mxu0 %v3718
          %3848 = vmatprep.subr.bf16.mxu0 %v3721
          %3849 = vmatpush1.bf16.msra.mxu0 %v3720
          %3850 = vmatprep.subr.bf16.mxu0 %v3723
          %3851 = vmatpush1.bf16.msra.mxu0 %v3722
          %3852 = vmatprep.subr.bf16.mxu0 %v3725
          %3853 = vmatpush1.bf16.msra.mxu0 %v3724
          %3854 = vmatprep.subr.bf16.mxu0 %v3727
          %3855 = vmatpush1.bf16.msra.mxu0 %v3726
          %3856 = vmatprep.mubr.f32.mxu0 %v3498
          %3857 = vmatmul.mubr.f32.gmra.mrb[0].mxu0 %v3490
          %v3858 = vpop.f32.mrb[0].mxu0
          %v3859 = vadd.f32 %v3475, %v3858
          %v3860 = vpop.f32.mrb[0].mxu0
          %v3861 = vadd.f32 %v3479, %v3860
          %3862 = vdwg.mxu0
          %3863 = vmatprep.subr.bf16.mxu0 %v3729
          %3864 = vmatpush1.bf16.msra.mxu0 %v3728
          %3865 = vmatprep.subr.bf16.mxu0 %v3731
          %3866 = vmatpush1.bf16.msra.mxu0 %v3730
          %3867 = vmatprep.subr.bf16.mxu0 %v3733
          %3868 = vmatpush1.bf16.msra.mxu0 %v3732
          %3869 = vmatprep.subr.bf16.mxu0 %v3735
          %3870 = vmatpush1.bf16.msra.mxu0 %v3734
          %3871 = vmatprep.subr.bf16.mxu0 %v3737
          %3872 = vmatpush1.bf16.msra.mxu0 %v3736
          %3873 = vmatprep.subr.bf16.mxu0 %v3739
          %3874 = vmatpush1.bf16.msra.mxu0 %v3738
          %3875 = vmatprep.subr.bf16.mxu0 %v3741
          %3876 = vmatpush1.bf16.msra.mxu0 %v3740
          %3877 = vmatprep.subr.bf16.mxu0 %v3743
          %3878 = vmatpush1.bf16.msra.mxu0 %v3742
          %3879 = vmatprep.subr.bf16.mxu0 %v3745
          %3880 = vmatpush1.bf16.msra.mxu0 %v3744
          %3881 = vmatprep.subr.bf16.mxu0 %v3747
          %3882 = vmatpush1.bf16.msra.mxu0 %v3746
          %3883 = vmatprep.subr.bf16.mxu0 %v3749
          %3884 = vmatpush1.bf16.msra.mxu0 %v3748
          %3885 = vmatprep.subr.bf16.mxu0 %v3751
          %3886 = vmatpush1.bf16.msra.mxu0 %v3750
          %3887 = vmatprep.subr.bf16.mxu0 %v3753
          %3888 = vmatpush1.bf16.msra.mxu0 %v3752
          %3889 = vmatprep.subr.bf16.mxu0 %v3755
          %3890 = vmatpush1.bf16.msra.mxu0 %v3754
          %3891 = vmatprep.subr.bf16.mxu0 %v3757
          %3892 = vmatpush1.bf16.msra.mxu0 %v3756
          %3893 = vmatprep.subr.bf16.mxu0 %v3759
          %3894 = vmatpush1.bf16.msra.mxu0 %v3758
          %3895 = vmatprep.mubr.f32.mxu0 %v3499
          %3896 = vmatmul.mubr.f32.gmra.mrb[0].mxu0 %v3497
          %v3897 = vpop.f32.mrb[0].mxu0
          %v3898 = vadd.f32 %v3859, %v3897
          %v3899 = vpop.f32.mrb[0].mxu0
          %v3900 = vadd.f32 %v3861, %v3899
          %3901 = vdwg.mxu0
          %v3902 = vmax.f32 %v3898, 0.0
          %v3903 = vmax.f32 %v3900, 0.0
          %v3904 = vld [vmem:[%s11] sm:$0xf]
          %v3905 = vld [vmem:[%s11 + $0x4] sm:$0xf]
          %v3906 = vld [vmem:[%s11 + $0x8] sm:$0xf]
          %v3907 = vld [vmem:[%s11 + $0xc] sm:$0xf]
          %v3908 = vld [vmem:[%s11 + $0x10] sm:$0xf]
          %v3909 = vld [vmem:[%s11 + $0x14] sm:$0xf]
          %v3910 = vld [vmem:[%s11 + $0x18] sm:$0xf]
          %v3911 = vld [vmem:[%s11 + $0x1c] sm:$0xf]
          %v3912 = vld [vmem:[%s11 + $0x20] sm:$0xf]
          %v3913 = vld [vmem:[%s11 + $0x24] sm:$0xf]
          %v3914 = vld [vmem:[%s11 + $0x28] sm:$0xf]
          %v3915 = vld [vmem:[%s11 + $0x2c] sm:$0xf]
          %v3916 = vld [vmem:[%s11 + $0x30] sm:$0xf]
          %v3917 = vld [vmem:[%s11 + $0x34] sm:$0xf]
          %v3918 = vld [vmem:[%s11 + $0x38] sm:$0xf]
          %v3919 = vld [vmem:[%s11 + $0x3c] sm:$0xf]
          %v3920 = vld [vmem:[%s11 + $0x40] sm:$0xf]
          %v3921 = vld [vmem:[%s11 + $0x44] sm:$0xf]
          %v3922 = vld [vmem:[%s11 + $0x48] sm:$0xf]
          %v3923 = vld [vmem:[%s11 + $0x4c] sm:$0xf]
          %v3924 = vld [vmem:[%s11 + $0x50] sm:$0xf]
          %v3925 = vld [vmem:[%s11 + $0x54] sm:$0xf]
          %v3926 = vld [vmem:[%s11 + $0x58] sm:$0xf]
          %v3927 = vld [vmem:[%s11 + $0x5c] sm:$0xf]
          %v3928 = vld [vmem:[%s11 + $0x60] sm:$0xf]
          %v3929 = vld [vmem:[%s11 + $0x64] sm:$0xf]
          %v3930 = vld [vmem:[%s11 + $0x68] sm:$0xf]
          %v3931 = vld [vmem:[%s11 + $0x6c] sm:$0xf]
          %v3932 = vld [vmem:[%s11 + $0x70] sm:$0xf]
          %v3933 = vld [vmem:[%s11 + $0x74] sm:$0xf]
          %v3934 = vld [vmem:[%s11 + $0x78] sm:$0xf]
          %v3935 = vld [vmem:[%s11 + $0x7c] sm:$0xf]
          %v3936 = vld [vmem:[%s12] sm:$0x1]
          %v3938 = vlaneseq
          %v3939 = vshrl.u32 %v3938, 7
          %v3940 = vsub.s32 0, %v3939
          %v3941 = vrot.slane %v3936, %v3940
          %v3975 = vunpack.c.l.b16 %v3904
          %v3976 = vunpack.c.l.b16 %v3905
          %v3977 = vunpack.c.l.b16 %v3906
          %v3978 = vunpack.c.l.b16 %v3907
          %v3979 = vunpack.c.l.b16 %v3908
          %v3980 = vunpack.c.l.b16 %v3909
          %v3981 = vunpack.c.l.b16 %v3910
          %v3982 = vunpack.c.l.b16 %v3911
          %v3983 = vunpack.c.l.b16 %v3912
          %v3984 = vunpack.c.l.b16 %v3913
          %v3985 = vunpack.c.l.b16 %v3914
          %v3986 = vunpack.c.l.b16 %v3915
          %v3987 = vunpack.c.l.b16 %v3916
          %v3988 = vunpack.c.l.b16 %v3917
          %v3989 = vunpack.c.l.b16 %v3918
          %v3990 = vunpack.c.l.b16 %v3919
          %v3991 = vunpack.c.l.b16 %v3920
          %v3992 = vunpack.c.l.b16 %v3921
          %v3993 = vunpack.c.l.b16 %v3922
          %v3994 = vunpack.c.l.b16 %v3923
          %v3995 = vunpack.c.l.b16 %v3924
          %v3996 = vunpack.c.l.b16 %v3925
          %v3997 = vunpack.c.l.b16 %v3926
          %v3998 = vunpack.c.l.b16 %v3927
          %v3999 = vunpack.c.l.b16 %v3928
          %v4000 = vunpack.c.l.b16 %v3929
          %v4001 = vunpack.c.l.b16 %v3930
          %v4002 = vunpack.c.l.b16 %v3931
          %v4003 = vunpack.c.l.b16 %v3932
          %v4004 = vunpack.c.l.b16 %v3933
          %v4005 = vunpack.c.l.b16 %v3934
          %v4006 = vunpack.c.l.b16 %v3935
          %v4007 = vpack.c.b16 %v3976, %v3975
          %v4008 = vpack.c.b16 %v3978, %v3977
          %v4009 = vpack.c.b16 %v3980, %v3979
          %v4010 = vpack.c.b16 %v3982, %v3981
          %v4011 = vpack.c.b16 %v3984, %v3983
          %v4012 = vpack.c.b16 %v3986, %v3985
          %v4013 = vpack.c.b16 %v3988, %v3987
          %v4014 = vpack.c.b16 %v3990, %v3989
          %v4015 = vpack.c.b16 %v3992, %v3991
          %v4016 = vpack.c.b16 %v3994, %v3993
          %v4017 = vpack.c.b16 %v3996, %v3995
          %v4018 = vpack.c.b16 %v3998, %v3997
          %v4019 = vpack.c.b16 %v4000, %v3999
          %v4020 = vpack.c.b16 %v4002, %v4001
          %v4021 = vpack.c.b16 %v4004, %v4003
          %v4022 = vpack.c.b16 %v4006, %v4005
          %4039 = vmatprep.subr.bf16.mxu0 0
          %4040 = vmatpush1.bf16.msra.mxu0 %v4007
          %4041 = vmatprep.subr.bf16.mxu0 0
          %4042 = vmatpush1.bf16.msra.mxu0 %v4008
          %4043 = vmatprep.subr.bf16.mxu0 0
          %4044 = vmatpush1.bf16.msra.mxu0 %v4009
          %4045 = vmatprep.subr.bf16.mxu0 0
          %4046 = vmatpush1.bf16.msra.mxu0 %v4010
          %4047 = vmatprep.subr.bf16.mxu0 0
          %4048 = vmatpush1.bf16.msra.mxu0 %v4011
          %4049 = vmatprep.subr.bf16.mxu0 0
          %4050 = vmatpush1.bf16.msra.mxu0 %v4012
          %4051 = vmatprep.subr.bf16.mxu0 0
          %4052 = vmatpush1.bf16.msra.mxu0 %v4013
          %4053 = vmatprep.subr.bf16.mxu0 0
          %4054 = vmatpush1.bf16.msra.mxu0 %v4014
          %4055 = vmatprep.subr.bf16.mxu0 0
          %4056 = vmatpush1.bf16.msra.mxu0 %v4015
          %4057 = vmatprep.subr.bf16.mxu0 0
          %4058 = vmatpush1.bf16.msra.mxu0 %v4016
          %4059 = vmatprep.subr.bf16.mxu0 0
          %4060 = vmatpush1.bf16.msra.mxu0 %v4017
          %4061 = vmatprep.subr.bf16.mxu0 0
          %4062 = vmatpush1.bf16.msra.mxu0 %v4018
          %4063 = vmatprep.subr.bf16.mxu0 0
          %4064 = vmatpush1.bf16.msra.mxu0 %v4019
          %4065 = vmatprep.subr.bf16.mxu0 0
          %4066 = vmatpush1.bf16.msra.mxu0 %v4020
          %4067 = vmatprep.subr.bf16.mxu0 0
          %4068 = vmatpush1.bf16.msra.mxu0 %v4021
          %4069 = vmatprep.subr.bf16.mxu0 0
          %4070 = vmatpush1.bf16.msra.mxu0 %v4022
          %4071 = vmatprep.mubr.f32.mxu0 %v3903
          %4072 = vmatmul.mubr.f32.gmra.mrb[0].mxu0 %v3902
          %v4073 = vpop.f32.mrb[0].mxu0
          %v4074 = vadd.f32 %v3941, %v4073
          %v4075 = vpop.f32.mrb[0].mxu0
          %4076 = vdwg.mxu0
          %4078 = vset.pattern.permute.xlu0 0
          %4079 = vperm.xlu0 %4078, %v3403
          %v4080 = vpop.permute.xlu0 %4079
          %v4082 = vadd.f32 %v4080, %v4074
          %vm4083 = vcmask 33792
          %v4084 = vsel %vm4083, %v4074, 0.0
          %4085 = vadd.xlane.f32.xlu0 %v4084
          %v4086 = vpop.xlane.xlu0 %4085
          %v4087 = vrcp.pop 5.0
          %v4088 = vmul.f32 %v4086, %v4087
          %v4089 = vsub.f32 %v4082, %v4088
          %4090 = vst.msk [vmem:[#allocation9] sm:$0x3] %vm4083, %v4089
        $region88: #{dueling_net_forward.3} parent=71 // pred_fallthru
          _
        // Predicated region
        $region89: #{dueling_net_forward.3} parent=71 // pred_check
          %p4091 = pneg %p325
        $region90: #{dueling_net_forward.3} parent=71 // pred_check_branch
          %4093 = sbr.rel (%p4091) target = $region92
        $region91: #{dueling_net_forward.3} parent=71 // pred_region
          %s4095 = ssub.s32 32, 32
          %4096 = vsyncadd [#allocation6], %s4095
          %s4098 = sshll.u32 [#allocation9], 4
          %s4099 = int_to_ptr.vmem [resolvable:$true] %s4098
          %4101 = dma.vmem_to_hbm [thread:$0]  %s4099, 32, %s13, [#allocation6]
        $region92: #{dueling_net_forward.3} parent=71 // pred_fallthru
          _
        // Predicated region
        $region93: #{dueling_net_forward.3} parent=71 // pred_check
          %p4102 = pneg %p325
        $region94: #{dueling_net_forward.3} parent=71 // pred_check_branch
          %4104 = sbr.rel (%p4102) target = $region96
        $region95: #{dueling_net_forward.3} parent=71 // pred_region
          %4105 = dma.done [#allocation6], 32
        $region96: #{dueling_net_forward.3} parent=71 // pred_fallthru
          _
      $region72: #{dueling_net_forward.3} parent=5 // pred_fallthru
        _
      %p4106 = scmp.le.s32.totalorder 2, %s24
      // Predicated region
      $region97: #{dueling_net_forward.3} parent=5 // pred_check
        %p4107 = pneg %p4106
      $region98: #{dueling_net_forward.3} parent=5 // pred_check_branch
        %4109 = sbr.rel (%p4107) target = $region100
      $region99: #{dueling_net_forward.3} parent=5 // pred_region
        %s4110 = ssub.s32 %s24, 2
      $region100: #{dueling_net_forward.3} parent=5 // pred_fallthru
        _
    $region6: #{dueling_net_forward.3} parent=1 // loop_footer
      %s28 = sadd.s32 1, %s24
    $region7: #{dueling_net_forward.3} parent=1 // loop_footer_branch
      %23 = sbr.rel target = $region3
    $region8: #{dueling_net_forward.3} parent=1 // loop_exit
      _
    %4111 = vsyncpa [#allocation5], 1
    %s4112 = scalar_lea.sflag [#allocation5], 1
    %4113 = vsyncpa %s4112, 1
    %4114 = vsyncpa [#allocation8], 1
    %4115 = vsyncpa [#allocation6], 1
    %s4116 = scalar_lea.sflag [#allocation6], 1
    %4117 = vsyncpa %s4116, 1

</llo_original>
